<compile_context>
chip_gen: v6e
topology: v6e:2x2x1
jax: 0.10.0
libtpu: 0.0.40
codegen_flags: <defaults>
</compile_context>

<pallas_src>
import numpy as np

import jax
import jax.numpy as jnp
from jax import lax
from jax.experimental import pallas as pl
from jax.experimental.pallas import tpu as pltpu


# ------------------------------ layout constants -----------------------------

def _derive_dims(H, W, C=3, OC1=64, OC2=128):
    """Static layout constants for the flat-run formulation."""
    assert H % 4 == 0 and W % 4 == 0
    oh1, mw = H // 2, W // 4           # conv1 out rows; parity-paired col slabs
    oh2, ow2 = H // 4, W // 4          # conv2 out rows / cols
    QW = mw + 1                        # quads per padded input row (= per-row run stride)
    PR = (oh1 + 1) * QW                # flattened rows per input row-parity plane
    LRUN1 = (oh1 - 1) * QW + mw        # conv1 run length (valid + per-row pad slot)
    LRUN2 = 2 * QW * (oh2 - 1) + ow2   # conv2 run length
    G = (-QW) % 8                      # guard rows: 8-align conv1 store base ...
    if G == 0:
        G = 8                          # ... and keep the o2=0 left-pad read in bounds
    R1 = G + (oh1 + 2) * QW            # flat h1 rows actually addressed
    R1P = ((R1 + 7) // 8) * 8          # scratch allocation (sublane padded)
    return dict(H=H, W=W, C=C, OC1=OC1, OC2=OC2, oh1=oh1, mw=mw, oh2=oh2,
                ow2=ow2, QW=QW, PR=PR, LRUN1=LRUN1, LRUN2=LRUN2, G=G,
                R1=R1, R1P=R1P)


# ------------------------------ fused kernel ---------------------------------

def _make_kernel(d):
    QW, G = d["QW"], d["G"]
    LRUN1, LRUN2 = d["LRUN1"], d["LRUN2"]
    store_base = G + QW                # 8-aligned by construction of G

    def kernel(x_ref, mask1_ref, w1_ref, b1_ref, w2_ref, b2_ref,
               wl_ref, bl_ref, out_ref, h1_ref):
        """One sample per grid step; everything lives in VMEM.

        x_ref  : (1, 2, PR, 4*C) bf16  row-parity planes, columns as quads
        mask1  : (LRUN1, 128)    f32   zeros at the per-row run-pad slots
        w1_ref : (8, 4*C, 128)   bf16  conv1 structured weights [2*ki + quad_off]
        b1_ref : (1, 128)        f32   conv1 bias duplicated over column parity
        w2_ref : (12, 128, 128)  bf16  conv2 structured weights [3*ki + slab_off]
        b2_ref : (1, 128)        f32
        wl_ref : (LRUN2, 128)    f32   Linear weights scattered to run layout
        bl_ref : (1, 1)          f32
        out_ref: (1, 1, 128)     f32   sigmoid output, lane-broadcast
        h1_ref : (R1P, 128)      bf16  flat conv1 map; guard/pad slots are the
                                       zero padding conv2's edge taps read.
        """
        # Scratch persists across grid steps -> re-zero every step so the
        # guard rows / pad chunks / per-row pad slots stay exactly zero.
        h1_ref[...] = jnp.zeros(h1_ref.shape, h1_ref.dtype)

        # ---- conv1 (3->64, k4 s2 p1) + LeakyReLU(0.2) -----------------------
        # 8 big-M matmuls covering every output row at once (review item 3).
        bias1 = jnp.broadcast_to(b1_ref[...], (LRUN1, w1_ref.shape[-1]))
        acc1 = bias1.astype(jnp.float32)           # hoisted broadcast (item 6)
        for ki in range(4):                        # kernel row     (unrolled)
            for q in range(2):                     # quad offset    (unrolled)
                lhs = x_ref[0, ki % 2, pl.ds((ki // 2) * QW + q, LRUN1), :]
                acc1 = acc1 + jnp.dot(lhs, w1_ref[2 * ki + q],
                                      preferred_element_type=jnp.float32)
        act1 = jnp.where(acc1 > 0.0, acc1, 0.2 * acc1)
        act1 = act1 * mask1_ref[...]               # zero the per-row pad slots
        # single sublane-aligned slab store of the whole map (review item 10)
        h1_ref[pl.ds(store_base, LRUN1), :] = act1.astype(h1_ref.dtype)

        # ---- conv2 (64->128, k4 s2 p1) + LeakyReLU(0.2) ----------------------
        # 12 big-M matmuls over the flat run; the slots left zero in h1 are
        # exactly conv2's left/right/top/bottom padding (review item 4).
        bias2 = jnp.broadcast_to(b2_ref[...], (LRUN2, w2_ref.shape[-1]))
        acc2 = bias2.astype(jnp.float32)
        for ki in range(4):                        # kernel row     (unrolled)
            for t in range(3):                     # slab offset -1/0/+1
                patch = h1_ref[pl.ds(G + ki * QW + t - 1, LRUN2), :]
                acc2 = acc2 + jnp.dot(patch, w2_ref[3 * ki + t],
                                      preferred_element_type=jnp.float32)
        act2 = jnp.where(acc2 > 0.0, acc2, 0.2 * acc2)

        # ---- fused Flatten + Linear(->1) + Sigmoid ---------------------------
        # One VPU multiply against the run-layout Linear slab (zeros at the
        # run-pad positions) + full reduce; no tall-skinny MXU launch.
        lin = act2 * wl_ref[...]
        s = jnp.sum(lin, axis=1, keepdims=True)    # lane reduce   -> (LRUN2, 1)
        s = jnp.sum(s, axis=0, keepdims=True)      # sublane reduce -> (1, 1)
        sig = jax.nn.sigmoid(s + bl_ref[...])
        # lane-dense output block; wrapper slices back to (N, 1)  (item 9)
        out_ref[...] = jnp.broadcast_to(sig.reshape(1, 1, 1), out_ref.shape)

    return kernel


# ----------------------- one-time parameter re-layout ------------------------

def prepare_params(params, H, W):
    """Re-layout PyTorch-convention weights for the fused kernel (done once)."""
    d = _derive_dims(H, W)
    oh2, ow2, QW = d["oh2"], d["ow2"], d["QW"]
    LRUN1, LRUN2, mw = d["LRUN1"], d["LRUN2"], d["mw"]

    w1 = np.asarray(params["w1"], np.float32)      # (64, C, 4, 4)  OIHW
    b1 = np.asarray(params["b1"], np.float32)
    w2 = np.asarray(params["w2"], np.float32)      # (128, 64, 4, 4)
    b2 = np.asarray(params["b2"], np.float32)
    wl = np.asarray(params["wl"], np.float32)      # (128*oh2*ow2, 1)
    bl = np.asarray(params["bl"], np.float32)

    oc1, ic = w1.shape[0], w1.shape[1]
    oc2 = w2.shape[0]

    # conv1: input rows arrive as quads of 4 columns x C channels; per
    # (kernel row ki, quad offset q) one matmul produces parity-paired output
    # columns on the 128-lane axis (lane = parity*64 + out_channel).
    w1_t = np.transpose(w1, (2, 3, 1, 0))          # (ki, kj, c, o)
    a_w = np.zeros((4, 4, ic, 2, oc1), np.float32)
    b_w = np.zeros((4, 4, ic, 2, oc1), np.float32)
    a_w[:, :, :, 0, :] = w1_t                      # parity 0: quad col j = kj
    a_w[:, 2:4, :, 1, :] = w1_t[:, 0:2]            # parity 1, same quad: kj = j-2
    b_w[:, 0:2, :, 1, :] = w1_t[:, 2:4]            # parity 1, next quad: kj = j+2
    w1s = np.stack([a_w.reshape(4, 4 * ic, 2 * oc1),
                    b_w.reshape(4, 4 * ic, 2 * oc1)], axis=1)
    w1s = w1s.reshape(8, 4 * ic, 2 * oc1)          # index = 2*ki + q
    b1p = np.concatenate([b1, b1]).reshape(1, 2 * oc1)

    # conv2: per kernel row the 4 column taps collapse into 3 slab-offset
    # matmuls against the parity-paired conv1 lanes.
    w2_t = np.transpose(w2, (2, 3, 1, 0))          # (ki, kj, c1, o)
    w2s = np.zeros((4, 3, 2, oc1, oc2), np.float32)
    w2s[:, 0, 1] = w2_t[:, 0]                      # kj=0 -> slab o2-1, parity 1
    w2s[:, 1, 0] = w2_t[:, 1]                      # kj=1 -> slab o2,   parity 0
    w2s[:, 1, 1] = w2_t[:, 2]                      # kj=2 -> slab o2,   parity 1
    w2s[:, 2, 0] = w2_t[:, 3]                      # kj=3 -> slab o2+1, parity 0
    w2s = w2s.reshape(12, 2 * oc1, oc2)            # index = 3*ki + t
    b2r = b2.reshape(1, oc2)

    # Linear: fold PyTorch's (C, H, W) flatten order into a scatter of the
    # weight rows onto the conv2 flat-run layout (zeros at run-pad positions).
    wl_mat = wl[:, 0].reshape(oc2, oh2, ow2).transpose(1, 2, 0)   # (oh2,ow2,oc2)
    wl_run = np.zeros((LRUN2, oc2), np.float32)
    rows = (2 * QW) * np.arange(oh2)[:, None] + np.arange(ow2)[None, :]
    wl_run[rows.reshape(-1)] = wl_mat.reshape(oh2 * ow2, oc2)
    bl_m = bl.reshape(1, 1)

    # conv1 run mask: zero the one throwaway slot per row of the flat run.
    mask1 = ((np.arange(LRUN1) % QW) < mw).astype(np.float32)
    mask1 = np.repeat(mask1[:, None], 2 * oc1, axis=1)

    return {
        "w1s": jnp.asarray(w1s, jnp.bfloat16),
        "b1": jnp.asarray(b1p, jnp.float32),
        "w2s": jnp.asarray(w2s, jnp.bfloat16),
        "b2": jnp.asarray(b2r, jnp.float32),
        "wl": jnp.asarray(wl_run, jnp.float32),
        "bl": jnp.asarray(bl_m, jnp.float32),
        "mask1": jnp.asarray(mask1, jnp.float32),
    }


# ------------------------------ forward wrapper -------------------------------

def _prep_input(x_nchw, d):
    """NCHW -> padded, quad-column, row-parity-split, flattened bf16 layout."""
    n = x_nchw.shape[0]
    H, W, C, QW, oh1 = d["H"], d["W"], d["C"], d["QW"], d["oh1"]
    x = jnp.transpose(x_nchw, (0, 2, 3, 1))                    # NCHW -> NHWC
    x = jnp.pad(x, ((0, 0), (1, 1), (1, 4 * QW - W - 1), (0, 0)))
    x = x.reshape(n, H + 2, QW, 4 * C)                         # columns as quads
    x = jnp.stack([x[:, 0::2], x[:, 1::2]], axis=1)            # row parity split
    x = x.reshape(n, 2, (oh1 + 1) * QW, 4 * C)                 # flatten (row, quad)
    return x.astype(jnp.bfloat16)


@jax.jit
def discriminator_forward(x_nchw, kp):
    n, c, h, w = x_nchw.shape
    d = _derive_dims(h, w, c)
    xq = _prep_input(x_nchw, d)
    kernel = _make_kernel(d)

    def full(a):   # whole-array block, same every grid step (stays resident)
        return pl.BlockSpec(a.shape, lambda b, nd=a.ndim: (0,) * nd)

    out = pl.pallas_call(
        kernel,
        out_shape=jax.ShapeDtypeStruct((n, 1, 128), jnp.float32),
        grid=(n,),                                             # one sample / step
        in_specs=[
            pl.BlockSpec((1, 2, d["PR"], 4 * c), lambda b: (b, 0, 0, 0)),
            full(kp["mask1"]), full(kp["w1s"]), full(kp["b1"]),
            full(kp["w2s"]), full(kp["b2"]), full(kp["wl"]), full(kp["bl"]),
        ],
        out_specs=pl.BlockSpec((1, 1, 128), lambda b: (b, 0, 0)),
        scratch_shapes=[pltpu.VMEM((d["R1P"], 128), jnp.bfloat16)],
        compiler_params=pltpu.CompilerParams(
            dimension_semantics=("parallel",),                 # v7x megacore
            vmem_limit_bytes=32 * 1024 * 1024),
    )(xq, kp["mask1"], kp["w1s"], kp["b1"], kp["w2s"], kp["b2"],
      kp["wl"], kp["bl"])
    return out[:, 0, :1]                                       # (N, 1)


# ----------------------------- pure-JAX reference -----------------------------

def reference_forward(x_nchw, params):
    dn = ("NCHW", "OIHW", "NCHW")
    y = lax.conv_general_dilated(x_nchw, params["w1"], (2, 2), ((1, 1), (1, 1)),
                                 dimension_numbers=dn)
    y = y + params["b1"][None, :, None, None]
    y = jnp.where(y > 0, y, 0.2 * y)
    y = lax.conv_general_dilated(y, params["w2"], (2, 2), ((1, 1), (1, 1)),
                                 dimension_numbers=dn)
    y = y + params["b2"][None, :, None, None]
    y = jnp.where(y > 0, y, 0.2 * y)
    y = y.reshape(y.shape[0], -1)
    y = y @ params["wl"] + params["bl"]
    return jax.nn.sigmoid(y)


# ----------------------------------- main --------------------------------------

if __name__ == "__main__":
    key = jax.random.PRNGKey(0)
    N, C, H, W = 2, 3, 16, 16
    ks = jax.random.split(key, 7)

    # Original Linear(304128, 1) assumes 3x218x178 CelebA images; here the
    # Linear in-features follow the scaled-down input: 128 * (H//4) * (W//4).
    flat = 128 * (H // 4) * (W // 4)

    params = {
        "w1": jax.random.normal(ks[0], (64, 3, 4, 4), jnp.float32) * 0.05,
        "b1": jax.random.normal(ks[1], (64,), jnp.float32) * 0.05,
        "w2": jax.random.normal(ks[2], (128, 64, 4, 4), jnp.float32) * 0.05,
        "b2": jax.random.normal(ks[3], (128,), jnp.float32) * 0.05,
        "wl": jax.random.normal(ks[4], (flat, 1), jnp.float32) * 0.01,
        "bl": jax.random.normal(ks[5], (1,), jnp.float32) * 0.01,
    }
    x = jax.random.normal(ks[6], (N, C, H, W), jnp.float32)

    kparams = prepare_params(params, H, W)

    out = discriminator_forward(x, kparams)
    out = jax.block_until_ready(out)

    ref = reference_forward(x, params)
    assert out.shape == (N, 1), out.shape
    # Tolerance covers bf16 inputs/weights/activations with f32 accumulation
    # (the lax reference also runs default-precision TPU convs); structural
    # errors would be orders of magnitude larger.
    assert jnp.allclose(out, ref, atol=1e-2, rtol=1e-2), (out, ref)

    print("KERNEL_OK")
</pallas_src>

<mosaic_0001>
module attributes {stable_mosaic.version = 11 : i64} {
  func.func @kernel(%arg0: i32, %arg1: memref<1x2x45x12xbf16, #tpu.memory_space<vmem>>, %arg2: memref<39x128xf32, #tpu.memory_space<vmem>>, %arg3: memref<8x12x128xbf16, #tpu.memory_space<vmem>>, %arg4: memref<1x128xf32, #tpu.memory_space<vmem>>, %arg5: memref<12x128x128xbf16, #tpu.memory_space<vmem>>, %arg6: memref<1x128xf32, #tpu.memory_space<vmem>>, %arg7: memref<34x128xf32, #tpu.memory_space<vmem>>, %arg8: memref<1x1xf32, #tpu.memory_space<vmem>>, %arg9: memref<1x1x128xf32, #tpu.memory_space<vmem>>, %arg10: memref<56x128xbf16, #tpu.memory_space<vmem>>) attributes {dimension_semantics = [#tpu.dimension_semantics<parallel>], iteration_bounds = array<i64: 2>, scalar_prefetch = 0 : i64, scratch_operands = 1 : i64, tpu.core_type = #tpu.core_type<tc>, window_params = [{transform_indices = @transform_0, window_bounds = array<i64: 1, 2, 45, 12>}, {pipeline_mode = #tpu.pipeline_mode<synchronous>, transform_indices = @transform_1, window_bounds = array<i64: 39, 128>}, {pipeline_mode = #tpu.pipeline_mode<synchronous>, transform_indices = @transform_2, window_bounds = array<i64: 8, 12, 128>}, {pipeline_mode = #tpu.pipeline_mode<synchronous>, transform_indices = @transform_3, window_bounds = array<i64: 1, 128>}, {pipeline_mode = #tpu.pipeline_mode<synchronous>, transform_indices = @transform_4, window_bounds = array<i64: 12, 128, 128>}, {pipeline_mode = #tpu.pipeline_mode<synchronous>, transform_indices = @transform_5, window_bounds = array<i64: 1, 128>}, {pipeline_mode = #tpu.pipeline_mode<synchronous>, transform_indices = @transform_6, window_bounds = array<i64: 34, 128>}, {pipeline_mode = #tpu.pipeline_mode<synchronous>, transform_indices = @transform_7, window_bounds = array<i64: 1, 1>}, {transform_indices = @transform_8, window_bounds = array<i64: 1, 1, 128>}]} {
    %cst = arith.constant 0.000000e+00 : bf16
    %0 = vector.broadcast %cst : bf16 to vector<56x128xbf16>
    %c0 = arith.constant 0 : index
    %c0_0 = arith.constant 0 : index
    %1 = vector.load %arg10[%c0, %c0_0] : memref<56x128xbf16, #tpu.memory_space<vmem>>, vector<56x128xbf16>
    tpu.vector_store %arg10[%c0, %c0_0], %0 {strides = array<i32>} : memref<56x128xbf16, #tpu.memory_space<vmem>>, vector<56x128xbf16>,
    %c0_1 = arith.constant 0 : index
    %c0_2 = arith.constant 0 : index
    %2 = vector.load %arg4[%c0_1, %c0_2] : memref<1x128xf32, #tpu.memory_space<vmem>>, vector<1x128xf32>
    %3 = vector.shape_cast %2 : vector<1x128xf32> to vector<1x128xf32>
    %4 = vector.broadcast %3 : vector<1x128xf32> to vector<39x128xf32>
    %c0_3 = arith.constant 0 : index
    %c0_4 = arith.constant 0 : index
    %c0_5 = arith.constant 0 : index
    %c0_6 = arith.constant 0 : index
    %5 = vector.load %arg1[%c0_3, %c0_4, %c0_5, %c0_6] : memref<1x2x45x12xbf16, #tpu.memory_space<vmem>>, vector<1x1x39x12xbf16>
    %6 = vector.shape_cast %5 : vector<1x1x39x12xbf16> to vector<39x12xbf16>
    %c0_7 = arith.constant 0 : index
    %c0_8 = arith.constant 0 : index
    %c0_9 = arith.constant 0 : index
    %7 = vector.load %arg3[%c0_7, %c0_8, %c0_9] : memref<8x12x128xbf16, #tpu.memory_space<vmem>>, vector<1x12x128xbf16>
    %8 = vector.shape_cast %7 : vector<1x12x128xbf16> to vector<12x128xbf16>
    %cst_10 = arith.constant dense<0.000000e+00> : vector<39x128xf32>
    %9 = tpu.matmul %6, %8, %cst_10 {dimension_numbers = #tpu.dot_dimension_numbers<[1], [0], [0], [1], [0, 0, 1, 1], [], []>} : vector<39x12xbf16>, vector<12x128xbf16>, vector<39x128xf32> -> vector<39x128xf32>
    %10 = arith.addf %4, %9 : vector<39x128xf32>
    %c0_11 = arith.constant 0 : index
    %c0_12 = arith.constant 0 : index
    %c1 = arith.constant 1 : index
    %c0_13 = arith.constant 0 : index
    %11 = vector.load %arg1[%c0_11, %c0_12, %c1, %c0_13] : memref<1x2x45x12xbf16, #tpu.memory_space<vmem>>, vector<1x1x39x12xbf16>
    %12 = vector.shape_cast %11 : vector<1x1x39x12xbf16> to vector<39x12xbf16>
    %c1_14 = arith.constant 1 : index
    %c0_15 = arith.constant 0 : index
    %c0_16 = arith.constant 0 : index
    %13 = vector.load %arg3[%c1_14, %c0_15, %c0_16] : memref<8x12x128xbf16, #tpu.memory_space<vmem>>, vector<1x12x128xbf16>
    %14 = vector.shape_cast %13 : vector<1x12x128xbf16> to vector<12x128xbf16>
    %cst_17 = arith.constant dense<0.000000e+00> : vector<39x128xf32>
    %15 = tpu.matmul %12, %14, %cst_17 {dimension_numbers = #tpu.dot_dimension_numbers<[1], [0], [0], [1], [0, 0, 1, 1], [], []>} : vector<39x12xbf16>, vector<12x128xbf16>, vector<39x128xf32> -> vector<39x128xf32>
    %16 = arith.addf %10, %15 : vector<39x128xf32>
    %c0_18 = arith.constant 0 : index
    %c1_19 = arith.constant 1 : index
    %c0_20 = arith.constant 0 : index
    %c0_21 = arith.constant 0 : index
    %17 = vector.load %arg1[%c0_18, %c1_19, %c0_20, %c0_21] : memref<1x2x45x12xbf16, #tpu.memory_space<vmem>>, vector<1x1x39x12xbf16>
    %18 = vector.shape_cast %17 : vector<1x1x39x12xbf16> to vector<39x12xbf16>
    %c2 = arith.constant 2 : index
    %c0_22 = arith.constant 0 : index
    %c0_23 = arith.constant 0 : index
    %19 = vector.load %arg3[%c2, %c0_22, %c0_23] : memref<8x12x128xbf16, #tpu.memory_space<vmem>>, vector<1x12x128xbf16>
    %20 = vector.shape_cast %19 : vector<1x12x128xbf16> to vector<12x128xbf16>
    %cst_24 = arith.constant dense<0.000000e+00> : vector<39x128xf32>
    %21 = tpu.matmul %18, %20, %cst_24 {dimension_numbers = #tpu.dot_dimension_numbers<[1], [0], [0], [1], [0, 0, 1, 1], [], []>} : vector<39x12xbf16>, vector<12x128xbf16>, vector<39x128xf32> -> vector<39x128xf32>
    %22 = arith.addf %16, %21 : vector<39x128xf32>
    %c0_25 = arith.constant 0 : index
    %c1_26 = arith.constant 1 : index
    %c1_27 = arith.constant 1 : index
    %c0_28 = arith.constant 0 : index
    %23 = vector.load %arg1[%c0_25, %c1_26, %c1_27, %c0_28] : memref<1x2x45x12xbf16, #tpu.memory_space<vmem>>, vector<1x1x39x12xbf16>
    %24 = vector.shape_cast %23 : vector<1x1x39x12xbf16> to vector<39x12xbf16>
    %c3 = arith.constant 3 : index
    %c0_29 = arith.constant 0 : index
    %c0_30 = arith.constant 0 : index
    %25 = vector.load %arg3[%c3, %c0_29, %c0_30] : memref<8x12x128xbf16, #tpu.memory_space<vmem>>, vector<1x12x128xbf16>
    %26 = vector.shape_cast %25 : vector<1x12x128xbf16> to vector<12x128xbf16>
    %cst_31 = arith.constant dense<0.000000e+00> : vector<39x128xf32>
    %27 = tpu.matmul %24, %26, %cst_31 {dimension_numbers = #tpu.dot_dimension_numbers<[1], [0], [0], [1], [0, 0, 1, 1], [], []>} : vector<39x12xbf16>, vector<12x128xbf16>, vector<39x128xf32> -> vector<39x128xf32>
    %28 = arith.addf %22, %27 : vector<39x128xf32>
    %c0_32 = arith.constant 0 : index
    %c0_33 = arith.constant 0 : index
    %c5 = arith.constant 5 : index
    %c0_34 = arith.constant 0 : index
    %29 = vector.load %arg1[%c0_32, %c0_33, %c5, %c0_34] : memref<1x2x45x12xbf16, #tpu.memory_space<vmem>>, vector<1x1x39x12xbf16>
    %30 = vector.shape_cast %29 : vector<1x1x39x12xbf16> to vector<39x12xbf16>
    %c4 = arith.constant 4 : index
    %c0_35 = arith.constant 0 : index
    %c0_36 = arith.constant 0 : index
    %31 = vector.load %arg3[%c4, %c0_35, %c0_36] : memref<8x12x128xbf16, #tpu.memory_space<vmem>>, vector<1x12x128xbf16>
    %32 = vector.shape_cast %31 : vector<1x12x128xbf16> to vector<12x128xbf16>
    %cst_37 = arith.constant dense<0.000000e+00> : vector<39x128xf32>
    %33 = tpu.matmul %30, %32, %cst_37 {dimension_numbers = #tpu.dot_dimension_numbers<[1], [0], [0], [1], [0, 0, 1, 1], [], []>} : vector<39x12xbf16>, vector<12x128xbf16>, vector<39x128xf32> -> vector<39x128xf32>
    %34 = arith.addf %28, %33 : vector<39x128xf32>
    %c0_38 = arith.constant 0 : index
    %c0_39 = arith.constant 0 : index
    %c6 = arith.constant 6 : index
    %c0_40 = arith.constant 0 : index
    %35 = vector.load %arg1[%c0_38, %c0_39, %c6, %c0_40] : memref<1x2x45x12xbf16, #tpu.memory_space<vmem>>, vector<1x1x39x12xbf16>
    %36 = vector.shape_cast %35 : vector<1x1x39x12xbf16> to vector<39x12xbf16>
    %c5_41 = arith.constant 5 : index
    %c0_42 = arith.constant 0 : index
    %c0_43 = arith.constant 0 : index
    %37 = vector.load %arg3[%c5_41, %c0_42, %c0_43] : memref<8x12x128xbf16, #tpu.memory_space<vmem>>, vector<1x12x128xbf16>
    %38 = vector.shape_cast %37 : vector<1x12x128xbf16> to vector<12x128xbf16>
    %cst_44 = arith.constant dense<0.000000e+00> : vector<39x128xf32>
    %39 = tpu.matmul %36, %38, %cst_44 {dimension_numbers = #tpu.dot_dimension_numbers<[1], [0], [0], [1], [0, 0, 1, 1], [], []>} : vector<39x12xbf16>, vector<12x128xbf16>, vector<39x128xf32> -> vector<39x128xf32>
    %40 = arith.addf %34, %39 : vector<39x128xf32>
    %c0_45 = arith.constant 0 : index
    %c1_46 = arith.constant 1 : index
    %c5_47 = arith.constant 5 : index
    %c0_48 = arith.constant 0 : index
    %41 = vector.load %arg1[%c0_45, %c1_46, %c5_47, %c0_48] : memref<1x2x45x12xbf16, #tpu.memory_space<vmem>>, vector<1x1x39x12xbf16>
    %42 = vector.shape_cast %41 : vector<1x1x39x12xbf16> to vector<39x12xbf16>
    %c6_49 = arith.constant 6 : index
    %c0_50 = arith.constant 0 : index
    %c0_51 = arith.constant 0 : index
    %43 = vector.load %arg3[%c6_49, %c0_50, %c0_51] : memref<8x12x128xbf16, #tpu.memory_space<vmem>>, vector<1x12x128xbf16>
    %44 = vector.shape_cast %43 : vector<1x12x128xbf16> to vector<12x128xbf16>
    %cst_52 = arith.constant dense<0.000000e+00> : vector<39x128xf32>
    %45 = tpu.matmul %42, %44, %cst_52 {dimension_numbers = #tpu.dot_dimension_numbers<[1], [0], [0], [1], [0, 0, 1, 1], [], []>} : vector<39x12xbf16>, vector<12x128xbf16>, vector<39x128xf32> -> vector<39x128xf32>
    %46 = arith.addf %40, %45 : vector<39x128xf32>
    %c0_53 = arith.constant 0 : index
    %c1_54 = arith.constant 1 : index
    %c6_55 = arith.constant 6 : index
    %c0_56 = arith.constant 0 : index
    %47 = vector.load %arg1[%c0_53, %c1_54, %c6_55, %c0_56] : memref<1x2x45x12xbf16, #tpu.memory_space<vmem>>, vector<1x1x39x12xbf16>
    %48 = vector.shape_cast %47 : vector<1x1x39x12xbf16> to vector<39x12xbf16>
    %c7 = arith.constant 7 : index
    %c0_57 = arith.constant 0 : index
    %c0_58 = arith.constant 0 : index
    %49 = vector.load %arg3[%c7, %c0_57, %c0_58] : memref<8x12x128xbf16, #tpu.memory_space<vmem>>, vector<1x12x128xbf16>
    %50 = vector.shape_cast %49 : vector<1x12x128xbf16> to vector<12x128xbf16>
    %cst_59 = arith.constant dense<0.000000e+00> : vector<39x128xf32>
    %51 = tpu.matmul %48, %50, %cst_59 {dimension_numbers = #tpu.dot_dimension_numbers<[1], [0], [0], [1], [0, 0, 1, 1], [], []>} : vector<39x12xbf16>, vector<12x128xbf16>, vector<39x128xf32> -> vector<39x128xf32>
    %52 = arith.addf %46, %51 : vector<39x128xf32>
    %cst_60 = arith.constant 0.000000e+00 : f32
    %53 = vector.broadcast %cst_60 : f32 to vector<39x128xf32>
    %54 = arith.cmpf ogt, %52, %53 : vector<39x128xf32>
    %cst_61 = arith.constant 2.000000e-01 : f32
    %55 = vector.broadcast %cst_61 : f32 to vector<39x128xf32>
    %56 = arith.mulf %55, %52 : vector<39x128xf32>
    %57 = arith.select %54, %52, %56 : vector<39x128xi1>, vector<39x128xf32>
    %c0_62 = arith.constant 0 : index
    %c0_63 = arith.constant 0 : index
    %58 = vector.load %arg2[%c0_62, %c0_63] : memref<39x128xf32, #tpu.memory_space<vmem>>, vector<39x128xf32>
    %59 = arith.mulf %57, %58 : vector<39x128xf32>
    %60 = arith.truncf %59 : vector<39x128xf32> to vector<39x128xbf16>
    %c8 = arith.constant 8 : index
    %c0_64 = arith.constant 0 : index
    %61 = vector.load %arg10[%c8, %c0_64] : memref<56x128xbf16, #tpu.memory_space<vmem>>, vector<39x128xbf16>
    tpu.vector_store %arg10[%c8, %c0_64], %60 {strides = array<i32>} : memref<56x128xbf16, #tpu.memory_space<vmem>>, vector<39x128xbf16>,
    %c0_65 = arith.constant 0 : index
    %c0_66 = arith.constant 0 : index
    %62 = vector.load %arg6[%c0_65, %c0_66] : memref<1x128xf32, #tpu.memory_space<vmem>>, vector<1x128xf32>
    %63 = vector.shape_cast %62 : vector<1x128xf32> to vector<1x128xf32>
    %64 = vector.broadcast %63 : vector<1x128xf32> to vector<34x128xf32>
    %c2_67 = arith.constant 2 : index
    %c0_68 = arith.constant 0 : index
    %65 = vector.load %arg10[%c2_67, %c0_68] : memref<56x128xbf16, #tpu.memory_space<vmem>>, vector<34x128xbf16>
    %c0_69 = arith.constant 0 : index
    %c0_70 = arith.constant 0 : index
    %c0_71 = arith.constant 0 : index
    %66 = vector.load %arg5[%c0_69, %c0_70, %c0_71] : memref<12x128x128xbf16, #tpu.memory_space<vmem>>, vector<1x128x128xbf16>
    %67 = vector.shape_cast %66 : vector<1x128x128xbf16> to vector<128x128xbf16>
    %cst_72 = arith.constant dense<0.000000e+00> : vector<34x128xf32>
    %68 = tpu.matmul %65, %67, %cst_72 {dimension_numbers = #tpu.dot_dimension_numbers<[1], [0], [0], [1], [0, 0, 1, 1], [], []>} : vector<34x128xbf16>, vector<128x128xbf16>, vector<34x128xf32> -> vector<34x128xf32>
    %69 = arith.addf %64, %68 : vector<34x128xf32>
    %c3_73 = arith.constant 3 : index
    %c0_74 = arith.constant 0 : index
    %70 = vector.load %arg10[%c3_73, %c0_74] : memref<56x128xbf16, #tpu.memory_space<vmem>>, vector<34x128xbf16>
    %c1_75 = arith.constant 1 : index
    %c0_76 = arith.constant 0 : index
    %c0_77 = arith.constant 0 : index
    %71 = vector.load %arg5[%c1_75, %c0_76, %c0_77] : memref<12x128x128xbf16, #tpu.memory_space<vmem>>, vector<1x128x128xbf16>
    %72 = vector.shape_cast %71 : vector<1x128x128xbf16> to vector<128x128xbf16>
    %cst_78 = arith.constant dense<0.000000e+00> : vector<34x128xf32>
    %73 = tpu.matmul %70, %72, %cst_78 {dimension_numbers = #tpu.dot_dimension_numbers<[1], [0], [0], [1], [0, 0, 1, 1], [], []>} : vector<34x128xbf16>, vector<128x128xbf16>, vector<34x128xf32> -> vector<34x128xf32>
    %74 = arith.addf %69, %73 : vector<34x128xf32>
    %c4_79 = arith.constant 4 : index
    %c0_80 = arith.constant 0 : index
    %75 = vector.load %arg10[%c4_79, %c0_80] : memref<56x128xbf16, #tpu.memory_space<vmem>>, vector<34x128xbf16>
    %c2_81 = arith.constant 2 : index
    %c0_82 = arith.constant 0 : index
    %c0_83 = arith.constant 0 : index
    %76 = vector.load %arg5[%c2_81, %c0_82, %c0_83] : memref<12x128x128xbf16, #tpu.memory_space<vmem>>, vector<1x128x128xbf16>
    %77 = vector.shape_cast %76 : vector<1x128x128xbf16> to vector<128x128xbf16>
    %cst_84 = arith.constant dense<0.000000e+00> : vector<34x128xf32>
    %78 = tpu.matmul %75, %77, %cst_84 {dimension_numbers = #tpu.dot_dimension_numbers<[1], [0], [0], [1], [0, 0, 1, 1], [], []>} : vector<34x128xbf16>, vector<128x128xbf16>, vector<34x128xf32> -> vector<34x128xf32>
    %79 = arith.addf %74, %78 : vector<34x128xf32>
    %c7_85 = arith.constant 7 : index
    %c0_86 = arith.constant 0 : index
    %80 = vector.load %arg10[%c7_85, %c0_86] : memref<56x128xbf16, #tpu.memory_space<vmem>>, vector<34x128xbf16>
    %c3_87 = arith.constant 3 : index
    %c0_88 = arith.constant 0 : index
    %c0_89 = arith.constant 0 : index
    %81 = vector.load %arg5[%c3_87, %c0_88, %c0_89] : memref<12x128x128xbf16, #tpu.memory_space<vmem>>, vector<1x128x128xbf16>
    %82 = vector.shape_cast %81 : vector<1x128x128xbf16> to vector<128x128xbf16>
    %cst_90 = arith.constant dense<0.000000e+00> : vector<34x128xf32>
    %83 = tpu.matmul %80, %82, %cst_90 {dimension_numbers = #tpu.dot_dimension_numbers<[1], [0], [0], [1], [0, 0, 1, 1], [], []>} : vector<34x128xbf16>, vector<128x128xbf16>, vector<34x128xf32> -> vector<34x128xf32>
    %84 = arith.addf %79, %83 : vector<34x128xf32>
    %c8_91 = arith.constant 8 : index
    %c0_92 = arith.constant 0 : index
    %85 = vector.load %arg10[%c8_91, %c0_92] : memref<56x128xbf16, #tpu.memory_space<vmem>>, vector<34x128xbf16>
    %c4_93 = arith.constant 4 : index
    %c0_94 = arith.constant 0 : index
    %c0_95 = arith.constant 0 : index
    %86 = vector.load %arg5[%c4_93, %c0_94, %c0_95] : memref<12x128x128xbf16, #tpu.memory_space<vmem>>, vector<1x128x128xbf16>
    %87 = vector.shape_cast %86 : vector<1x128x128xbf16> to vector<128x128xbf16>
    %cst_96 = arith.constant dense<0.000000e+00> : vector<34x128xf32>
    %88 = tpu.matmul %85, %87, %cst_96 {dimension_numbers = #tpu.dot_dimension_numbers<[1], [0], [0], [1], [0, 0, 1, 1], [], []>} : vector<34x128xbf16>, vector<128x128xbf16>, vector<34x128xf32> -> vector<34x128xf32>
    %89 = arith.addf %84, %88 : vector<34x128xf32>
    %c9 = arith.constant 9 : index
    %c0_97 = arith.constant 0 : index
    %90 = vector.load %arg10[%c9, %c0_97] : memref<56x128xbf16, #tpu.memory_space<vmem>>, vector<34x128xbf16>
    %c5_98 = arith.constant 5 : index
    %c0_99 = arith.constant 0 : index
    %c0_100 = arith.constant 0 : index
    %91 = vector.load %arg5[%c5_98, %c0_99, %c0_100] : memref<12x128x128xbf16, #tpu.memory_space<vmem>>, vector<1x128x128xbf16>
    %92 = vector.shape_cast %91 : vector<1x128x128xbf16> to vector<128x128xbf16>
    %cst_101 = arith.constant dense<0.000000e+00> : vector<34x128xf32>
    %93 = tpu.matmul %90, %92, %cst_101 {dimension_numbers = #tpu.dot_dimension_numbers<[1], [0], [0], [1], [0, 0, 1, 1], [], []>} : vector<34x128xbf16>, vector<128x128xbf16>, vector<34x128xf32> -> vector<34x128xf32>
    %94 = arith.addf %89, %93 : vector<34x128xf32>
    %c12 = arith.constant 12 : index
    %c0_102 = arith.constant 0 : index
    %95 = vector.load %arg10[%c12, %c0_102] : memref<56x128xbf16, #tpu.memory_space<vmem>>, vector<34x128xbf16>
    %c6_103 = arith.constant 6 : index
    %c0_104 = arith.constant 0 : index
    %c0_105 = arith.constant 0 : index
    %96 = vector.load %arg5[%c6_103, %c0_104, %c0_105] : memref<12x128x128xbf16, #tpu.memory_space<vmem>>, vector<1x128x128xbf16>
    %97 = vector.shape_cast %96 : vector<1x128x128xbf16> to vector<128x128xbf16>
    %cst_106 = arith.constant dense<0.000000e+00> : vector<34x128xf32>
    %98 = tpu.matmul %95, %97, %cst_106 {dimension_numbers = #tpu.dot_dimension_numbers<[1], [0], [0], [1], [0, 0, 1, 1], [], []>} : vector<34x128xbf16>, vector<128x128xbf16>, vector<34x128xf32> -> vector<34x128xf32>
    %99 = arith.addf %94, %98 : vector<34x128xf32>
    %c13 = arith.constant 13 : index
    %c0_107 = arith.constant 0 : index
    %100 = vector.load %arg10[%c13, %c0_107] : memref<56x128xbf16, #tpu.memory_space<vmem>>, vector<34x128xbf16>
    %c7_108 = arith.constant 7 : index
    %c0_109 = arith.constant 0 : index
    %c0_110 = arith.constant 0 : index
    %101 = vector.load %arg5[%c7_108, %c0_109, %c0_110] : memref<12x128x128xbf16, #tpu.memory_space<vmem>>, vector<1x128x128xbf16>
    %102 = vector.shape_cast %101 : vector<1x128x128xbf16> to vector<128x128xbf16>
    %cst_111 = arith.constant dense<0.000000e+00> : vector<34x128xf32>
    %103 = tpu.matmul %100, %102, %cst_111 {dimension_numbers = #tpu.dot_dimension_numbers<[1], [0], [0], [1], [0, 0, 1, 1], [], []>} : vector<34x128xbf16>, vector<128x128xbf16>, vector<34x128xf32> -> vector<34x128xf32>
    %104 = arith.addf %99, %103 : vector<34x128xf32>
    %c14 = arith.constant 14 : index
    %c0_112 = arith.constant 0 : index
    %105 = vector.load %arg10[%c14, %c0_112] : memref<56x128xbf16, #tpu.memory_space<vmem>>, vector<34x128xbf16>
    %c8_113 = arith.constant 8 : index
    %c0_114 = arith.constant 0 : index
    %c0_115 = arith.constant 0 : index
    %106 = vector.load %arg5[%c8_113, %c0_114, %c0_115] : memref<12x128x128xbf16, #tpu.memory_space<vmem>>, vector<1x128x128xbf16>
    %107 = vector.shape_cast %106 : vector<1x128x128xbf16> to vector<128x128xbf16>
    %cst_116 = arith.constant dense<0.000000e+00> : vector<34x128xf32>
    %108 = tpu.matmul %105, %107, %cst_116 {dimension_numbers = #tpu.dot_dimension_numbers<[1], [0], [0], [1], [0, 0, 1, 1], [], []>} : vector<34x128xbf16>, vector<128x128xbf16>, vector<34x128xf32> -> vector<34x128xf32>
    %109 = arith.addf %104, %108 : vector<34x128xf32>
    %c17 = arith.constant 17 : index
    %c0_117 = arith.constant 0 : index
    %110 = vector.load %arg10[%c17, %c0_117] : memref<56x128xbf16, #tpu.memory_space<vmem>>, vector<34x128xbf16>
    %c9_118 = arith.constant 9 : index
    %c0_119 = arith.constant 0 : index
    %c0_120 = arith.constant 0 : index
    %111 = vector.load %arg5[%c9_118, %c0_119, %c0_120] : memref<12x128x128xbf16, #tpu.memory_space<vmem>>, vector<1x128x128xbf16>
    %112 = vector.shape_cast %111 : vector<1x128x128xbf16> to vector<128x128xbf16>
    %cst_121 = arith.constant dense<0.000000e+00> : vector<34x128xf32>
    %113 = tpu.matmul %110, %112, %cst_121 {dimension_numbers = #tpu.dot_dimension_numbers<[1], [0], [0], [1], [0, 0, 1, 1], [], []>} : vector<34x128xbf16>, vector<128x128xbf16>, vector<34x128xf32> -> vector<34x128xf32>
    %114 = arith.addf %109, %113 : vector<34x128xf32>
    %c18 = arith.constant 18 : index
    %c0_122 = arith.constant 0 : index
    %115 = vector.load %arg10[%c18, %c0_122] : memref<56x128xbf16, #tpu.memory_space<vmem>>, vector<34x128xbf16>
    %c10 = arith.constant 10 : index
    %c0_123 = arith.constant 0 : index
    %c0_124 = arith.constant 0 : index
    %116 = vector.load %arg5[%c10, %c0_123, %c0_124] : memref<12x128x128xbf16, #tpu.memory_space<vmem>>, vector<1x128x128xbf16>
    %117 = vector.shape_cast %116 : vector<1x128x128xbf16> to vector<128x128xbf16>
    %cst_125 = arith.constant dense<0.000000e+00> : vector<34x128xf32>
    %118 = tpu.matmul %115, %117, %cst_125 {dimension_numbers = #tpu.dot_dimension_numbers<[1], [0], [0], [1], [0, 0, 1, 1], [], []>} : vector<34x128xbf16>, vector<128x128xbf16>, vector<34x128xf32> -> vector<34x128xf32>
    %119 = arith.addf %114, %118 : vector<34x128xf32>
    %c19 = arith.constant 19 : index
    %c0_126 = arith.constant 0 : index
    %120 = vector.load %arg10[%c19, %c0_126] : memref<56x128xbf16, #tpu.memory_space<vmem>>, vector<34x128xbf16>
    %c11 = arith.constant 11 : index
    %c0_127 = arith.constant 0 : index
    %c0_128 = arith.constant 0 : index
    %121 = vector.load %arg5[%c11, %c0_127, %c0_128] : memref<12x128x128xbf16, #tpu.memory_space<vmem>>, vector<1x128x128xbf16>
    %122 = vector.shape_cast %121 : vector<1x128x128xbf16> to vector<128x128xbf16>
    %cst_129 = arith.constant dense<0.000000e+00> : vector<34x128xf32>
    %123 = tpu.matmul %120, %122, %cst_129 {dimension_numbers = #tpu.dot_dimension_numbers<[1], [0], [0], [1], [0, 0, 1, 1], [], []>} : vector<34x128xbf16>, vector<128x128xbf16>, vector<34x128xf32> -> vector<34x128xf32>
    %124 = arith.addf %119, %123 : vector<34x128xf32>
    %cst_130 = arith.constant 0.000000e+00 : f32
    %125 = vector.broadcast %cst_130 : f32 to vector<34x128xf32>
    %126 = arith.cmpf ogt, %124, %125 : vector<34x128xf32>
    %cst_131 = arith.constant 2.000000e-01 : f32
    %127 = vector.broadcast %cst_131 : f32 to vector<34x128xf32>
    %128 = arith.mulf %127, %124 : vector<34x128xf32>
    %129 = arith.select %126, %124, %128 : vector<34x128xi1>, vector<34x128xf32>
    %c0_132 = arith.constant 0 : index
    %c0_133 = arith.constant 0 : index
    %130 = vector.load %arg7[%c0_132, %c0_133] : memref<34x128xf32, #tpu.memory_space<vmem>>, vector<34x128xf32>
    %131 = arith.mulf %129, %130 : vector<34x128xf32>
    %cst_134 = arith.constant dense<0.000000e+00> : vector<34xf32>
    %132 = vector.multi_reduction <add>, %131, %cst_134 [1] : vector<34x128xf32> to vector<34xf32>
    %133 = vector.shape_cast %132 : vector<34xf32> to vector<34x1xf32>
    %cst_135 = arith.constant dense<0.000000e+00> : vector<1xf32>
    %134 = vector.multi_reduction <add>, %133, %cst_135 [0] : vector<34x1xf32> to vector<1xf32>
    %135 = vector.shape_cast %134 : vector<1xf32> to vector<1x1xf32>
    %c0_136 = arith.constant 0 : index
    %c0_137 = arith.constant 0 : index
    %136 = vector.load %arg8[%c0_136, %c0_137] : memref<1x1xf32, #tpu.memory_space<vmem>>, vector<1x1xf32>
    %137 = arith.addf %135, %136 : vector<1x1xf32>
    %138 = arith.negf %137 : vector<1x1xf32>
    %139 = math.exp %138 : vector<1x1xf32>
    %cst_138 = arith.constant 1.000000e+00 : f32
    %140 = vector.broadcast %cst_138 : f32 to vector<1x1xf32>
    %141 = arith.addf %140, %139 : vector<1x1xf32>
    %142 = arith.divf %140, %141 : vector<1x1xf32>
    %143 = vector.shape_cast %142 : vector<1x1xf32> to vector<1x1x1xf32>
    %144 = vector.shape_cast %143 : vector<1x1x1xf32> to vector<1x1x1xf32>
    %145 = vector.broadcast %144 : vector<1x1x1xf32> to vector<1x1x128xf32>
    %c0_139 = arith.constant 0 : index
    %c0_140 = arith.constant 0 : index
    %c0_141 = arith.constant 0 : index
    %146 = vector.load %arg9[%c0_139, %c0_140, %c0_141] : memref<1x1x128xf32, #tpu.memory_space<vmem>>, vector<1x1x128xf32>
    tpu.vector_store %arg9[%c0_139, %c0_140, %c0_141], %145 {strides = array<i32>} : memref<1x1x128xf32, #tpu.memory_space<vmem>>, vector<1x1x128xf32>,
    return
  }
  func.func @transform_0(%arg0: i32) -> (i32, i32, i32, i32) {
    %c0_i32 = arith.constant 0 : i32
    %c0_i32_0 = arith.constant 0 : i32
    %c0_i32_1 = arith.constant 0 : i32
    %c0_i32_2 = arith.constant 0 : i32
    return %arg0, %c0_i32, %c0_i32_0, %c0_i32_1 : i32, i32, i32, i32
  }
  func.func @transform_1(%arg0: i32) -> (i32, i32) {
    %c0_i32 = arith.constant 0 : i32
    %c0_i32_0 = arith.constant 0 : i32
    %c0_i32_1 = arith.constant 0 : i32
    return %c0_i32, %c0_i32_0 : i32, i32
  }
  func.func @transform_2(%arg0: i32) -> (i32, i32, i32) {
    %c0_i32 = arith.constant 0 : i32
    %c0_i32_0 = arith.constant 0 : i32
    %c0_i32_1 = arith.constant 0 : i32
    %c0_i32_2 = arith.constant 0 : i32
    return %c0_i32, %c0_i32_0, %c0_i32_1 : i32, i32, i32
  }
  func.func @transform_3(%arg0: i32) -> (i32, i32) {
    %c0_i32 = arith.constant 0 : i32
    %c0_i32_0 = arith.constant 0 : i32
    %c0_i32_1 = arith.constant 0 : i32
    return %c0_i32, %c0_i32_0 : i32, i32
  }
  func.func @transform_4(%arg0: i32) -> (i32, i32, i32) {
    %c0_i32 = arith.constant 0 : i32
    %c0_i32_0 = arith.constant 0 : i32
    %c0_i32_1 = arith.constant 0 : i32
    %c0_i32_2 = arith.constant 0 : i32
    return %c0_i32, %c0_i32_0, %c0_i32_1 : i32, i32, i32
  }
  func.func @transform_5(%arg0: i32) -> (i32, i32) {
    %c0_i32 = arith.constant 0 : i32
    %c0_i32_0 = arith.constant 0 : i32
    %c0_i32_1 = arith.constant 0 : i32
    return %c0_i32, %c0_i32_0 : i32, i32
  }
  func.func @transform_6(%arg0: i32) -> (i32, i32) {
    %c0_i32 = arith.constant 0 : i32
    %c0_i32_0 = arith.constant 0 : i32
    %c0_i32_1 = arith.constant 0 : i32
    return %c0_i32, %c0_i32_0 : i32, i32
  }
  func.func @transform_7(%arg0: i32) -> (i32, i32) {
    %c0_i32 = arith.constant 0 : i32
    %c0_i32_0 = arith.constant 0 : i32
    %c0_i32_1 = arith.constant 0 : i32
    return %c0_i32, %c0_i32_0 : i32, i32
  }
  func.func @transform_8(%arg0: i32) -> (i32, i32, i32) {
    %c0_i32 = arith.constant 0 : i32
    %c0_i32_0 = arith.constant 0 : i32
    %c0_i32_1 = arith.constant 0 : i32
    return %arg0, %c0_i32, %c0_i32_0 : i32, i32, i32
  }
}

</mosaic_0001>

<llo_original>
// kernel: discriminator_forward.1
$region0: #{discriminator_forward.1}
  #allocation0 [shape = 'u32[]', space=smem, size = 0x4, offset = 0x4, fixed_abs, tag = 'smem constant byte address 0x4 - core index']
  #allocation1 [shape = 'u32[144,128]{1,0:T(1,128)}', space=vmem, size = 0x12000, scoped, tag = 'internal scratch']
  #allocation2 [shape = 'bf16[56,128]{1,0:T(8,128)(2,1)}', space=vmem, size = 0x3800, scoped, tag = 'scratch operand']
  #allocation3 [shape = 'f32[1,1]{1,0:T(1,128)S(1)}', space=vmem, size = 0x200, scoped, tag = 'scoped memory for discriminator_forward.1']
  %s0 = inlined_call_operand.vmem [shape: bf16[2,2,45,12], index: 0, kind: input, shape index: {}]
  %s1 = inlined_call_operand.vmem [shape: f32[39,128], index: 1, kind: input, shape index: {}]
  %s2 = inlined_call_operand.vmem [shape: bf16[8,12,128], index: 2, kind: input, shape index: {}]
  %s3 = inlined_call_operand.vmem [shape: f32[1,128], index: 3, kind: input, shape index: {}]
  %s4 = inlined_call_operand.vmem [shape: bf16[12,128,128], index: 4, kind: input, shape index: {}]
  %s5 = inlined_call_operand.vmem [shape: f32[1,128], index: 5, kind: input, shape index: {}]
  %s6 = inlined_call_operand.vmem [shape: f32[34,128], index: 6, kind: input, shape index: {}]
  %s7 = inlined_call_operand.<no memory space> [shape: f32[1,1], index: 7, kind: input, shape index: {}]
  %s8 = inlined_call_operand.vmem [shape: f32[2,1,128], index: 8, kind: output, shape index: {}]
  %s9 = sld [smem:[#allocation0]]
  $region65: #{discriminator_forward.1} parent=0
    _
  %s11 = ssub.s32 1, %s9
  %s12 = scalar_select 0, %s11, %s9
  %v13 = vstv %s7
  %14 = vst [vmem:[#allocation3] sm:$0x1] %v13
  loop: start=0, step=1, limit=4
  $region2: #{discriminator_forward.1} parent=0 // loop_pre_header
    _
  $region3: #{discriminator_forward.1} parent=0 // loop_header
    %s16 = sphi 0, %s20
    %p17 = scmp.ge.s32.totalorder %s16, 4
    %s26 = sphi 0, %s28
    %s29 = sphi 0, %s26
    %s30 = sphi 0, %s29
    %s46 = sphi 0, %s30
    %s50 = sphi 0, %s50
    %s52 = sphi 0, %s50
    %s53 = sphi 0, %s52
    %s67 = sphi 0, %s53
    %s71 = sphi 0, %s71
    %s73 = sphi 0, %s71
    %s74 = sphi 0, %s73
    %s88 = sphi 0, %s74
    %s92 = sphi 0, %s92
    %s94 = sphi 0, %s92
    %s95 = sphi 0, %s94
    %s109 = sphi 0, %s95
    %s113 = sphi 0, %s113
    %s115 = sphi 0, %s113
    %s116 = sphi 0, %s115
    %s130 = sphi 0, %s116
    %s134 = sphi 0, %s134
    %s136 = sphi 0, %s134
    %s137 = sphi 0, %s136
    %s151 = sphi 0, %s137
    %s155 = sphi 0, %s155
    %s157 = sphi 0, %s155
    %s158 = sphi 0, %s157
    %s172 = sphi 0, %s158
    %s176 = sphi 0, %s176
    %s178 = sphi 0, %s176
    %s179 = sphi 0, %s178
    %s193 = sphi 0, %s179
    %s199 = sphi 0, %s201
    %s202 = sphi 0, %s199
    %s203 = sphi 0, %s202
    %s219 = sphi 0, %s203
  $region4: #{discriminator_forward.1} parent=0 // loop_header_branch
    %19 = sbr.rel (%p17) target = $region8
  $region5: #{discriminator_forward.1} parent=0 // loop_body
    %s21 = ssub.s32 %s16, 1
    %s22 = ssub.s32 %s16, 2
    %s23 = sadd.s32 %s16, 1
    %s24 = ssub.s32 %s16, %s23
    %p25 = scmp.eq.s32.totalorder %s24, 0
    %s27 = sadd.s32 %s26, 1
    %s28 = scalar_select %p25, %s26, %s27
    %p31 = pneg %p25
    %p32 = scmp.eq.s32.totalorder %s16, 1
    %p33 = por %p31, %p32
    %p34 = scmp.ne.s32.totalorder %s26, %s29
    %p35 = scmp.eq.s32.totalorder %s16, 0
    %p36 = por %p34, %p35
    %p37 = scmp.ne.s32.totalorder %s26, %s29
    %p38 = scmp.eq.s32.totalorder %s21, 1
    %p39 = por %p37, %p38
    %p40 = scmp.ne.s32.totalorder %s29, %s30
    %p41 = scmp.eq.s32.totalorder %s21, 0
    %p42 = por %p40, %p41
    %p43 = scmp.ne.s32.totalorder %s29, %s30
    %p44 = scmp.eq.s32.totalorder %s22, 1
    %p45 = por %p43, %p44
    %p47 = scmp.ne.s32.totalorder %s30, %s46
    %p48 = scmp.eq.s32.totalorder %s22, 0
    %p49 = por %p47, %p48
    %s51 = sadd.s32 %s50, 1
    %p54 = scmp.eq.s32.totalorder %s16, 1
    %p55 = scmp.ne.s32.totalorder %s50, %s52
    %p56 = scmp.eq.s32.totalorder %s16, 0
    %p57 = por %p55, %p56
    %p58 = scmp.ne.s32.totalorder %s50, %s52
    %p59 = scmp.eq.s32.totalorder %s21, 1
    %p60 = por %p58, %p59
    %p61 = scmp.ne.s32.totalorder %s52, %s53
    %p62 = scmp.eq.s32.totalorder %s21, 0
    %p63 = por %p61, %p62
    %p64 = scmp.ne.s32.totalorder %s52, %s53
    %p65 = scmp.eq.s32.totalorder %s22, 1
    %p66 = por %p64, %p65
    %p68 = scmp.ne.s32.totalorder %s53, %s67
    %p69 = scmp.eq.s32.totalorder %s22, 0
    %p70 = por %p68, %p69
    %s72 = sadd.s32 %s71, 1
    %p75 = scmp.eq.s32.totalorder %s16, 1
    %p76 = scmp.ne.s32.totalorder %s71, %s73
    %p77 = scmp.eq.s32.totalorder %s16, 0
    %p78 = por %p76, %p77
    %p79 = scmp.ne.s32.totalorder %s71, %s73
    %p80 = scmp.eq.s32.totalorder %s21, 1
    %p81 = por %p79, %p80
    %p82 = scmp.ne.s32.totalorder %s73, %s74
    %p83 = scmp.eq.s32.totalorder %s21, 0
    %p84 = por %p82, %p83
    %p85 = scmp.ne.s32.totalorder %s73, %s74
    %p86 = scmp.eq.s32.totalorder %s22, 1
    %p87 = por %p85, %p86
    %p89 = scmp.ne.s32.totalorder %s74, %s88
    %p90 = scmp.eq.s32.totalorder %s22, 0
    %p91 = por %p89, %p90
    %s93 = sadd.s32 %s92, 1
    %p96 = scmp.eq.s32.totalorder %s16, 1
    %p97 = scmp.ne.s32.totalorder %s92, %s94
    %p98 = scmp.eq.s32.totalorder %s16, 0
    %p99 = por %p97, %p98
    %p100 = scmp.ne.s32.totalorder %s92, %s94
    %p101 = scmp.eq.s32.totalorder %s21, 1
    %p102 = por %p100, %p101
    %p103 = scmp.ne.s32.totalorder %s94, %s95
    %p104 = scmp.eq.s32.totalorder %s21, 0
    %p105 = por %p103, %p104
    %p106 = scmp.ne.s32.totalorder %s94, %s95
    %p107 = scmp.eq.s32.totalorder %s22, 1
    %p108 = por %p106, %p107
    %p110 = scmp.ne.s32.totalorder %s95, %s109
    %p111 = scmp.eq.s32.totalorder %s22, 0
    %p112 = por %p110, %p111
    %s114 = sadd.s32 %s113, 1
    %p117 = scmp.eq.s32.totalorder %s16, 1
    %p118 = scmp.ne.s32.totalorder %s113, %s115
    %p119 = scmp.eq.s32.totalorder %s16, 0
    %p120 = por %p118, %p119
    %p121 = scmp.ne.s32.totalorder %s113, %s115
    %p122 = scmp.eq.s32.totalorder %s21, 1
    %p123 = por %p121, %p122
    %p124 = scmp.ne.s32.totalorder %s115, %s116
    %p125 = scmp.eq.s32.totalorder %s21, 0
    %p126 = por %p124, %p125
    %p127 = scmp.ne.s32.totalorder %s115, %s116
    %p128 = scmp.eq.s32.totalorder %s22, 1
    %p129 = por %p127, %p128
    %p131 = scmp.ne.s32.totalorder %s116, %s130
    %p132 = scmp.eq.s32.totalorder %s22, 0
    %p133 = por %p131, %p132
    %s135 = sadd.s32 %s134, 1
    %p138 = scmp.eq.s32.totalorder %s16, 1
    %p139 = scmp.ne.s32.totalorder %s134, %s136
    %p140 = scmp.eq.s32.totalorder %s16, 0
    %p141 = por %p139, %p140
    %p142 = scmp.ne.s32.totalorder %s134, %s136
    %p143 = scmp.eq.s32.totalorder %s21, 1
    %p144 = por %p142, %p143
    %p145 = scmp.ne.s32.totalorder %s136, %s137
    %p146 = scmp.eq.s32.totalorder %s21, 0
    %p147 = por %p145, %p146
    %p148 = scmp.ne.s32.totalorder %s136, %s137
    %p149 = scmp.eq.s32.totalorder %s22, 1
    %p150 = por %p148, %p149
    %p152 = scmp.ne.s32.totalorder %s137, %s151
    %p153 = scmp.eq.s32.totalorder %s22, 0
    %p154 = por %p152, %p153
    %s156 = sadd.s32 %s155, 1
    %p159 = scmp.eq.s32.totalorder %s16, 1
    %p160 = scmp.ne.s32.totalorder %s155, %s157
    %p161 = scmp.eq.s32.totalorder %s16, 0
    %p162 = por %p160, %p161
    %p163 = scmp.ne.s32.totalorder %s155, %s157
    %p164 = scmp.eq.s32.totalorder %s21, 1
    %p165 = por %p163, %p164
    %p166 = scmp.ne.s32.totalorder %s157, %s158
    %p167 = scmp.eq.s32.totalorder %s21, 0
    %p168 = por %p166, %p167
    %p169 = scmp.ne.s32.totalorder %s157, %s158
    %p170 = scmp.eq.s32.totalorder %s22, 1
    %p171 = por %p169, %p170
    %p173 = scmp.ne.s32.totalorder %s158, %s172
    %p174 = scmp.eq.s32.totalorder %s22, 0
    %p175 = por %p173, %p174
    %s177 = sadd.s32 %s176, 1
    %p180 = scmp.eq.s32.totalorder %s16, 1
    %p181 = scmp.ne.s32.totalorder %s176, %s178
    %p182 = scmp.eq.s32.totalorder %s16, 0
    %p183 = por %p181, %p182
    %p184 = scmp.ne.s32.totalorder %s176, %s178
    %p185 = scmp.eq.s32.totalorder %s21, 1
    %p186 = por %p184, %p185
    %p187 = scmp.ne.s32.totalorder %s178, %s179
    %p188 = scmp.eq.s32.totalorder %s21, 0
    %p189 = por %p187, %p188
    %p190 = scmp.ne.s32.totalorder %s178, %s179
    %p191 = scmp.eq.s32.totalorder %s22, 1
    %p192 = por %p190, %p191
    %p194 = scmp.ne.s32.totalorder %s179, %s193
    %p195 = scmp.eq.s32.totalorder %s22, 0
    %p196 = por %p194, %p195
    %s197 = ssub.s32 %s16, %s23
    %p198 = scmp.eq.s32.totalorder %s197, 0
    %s200 = sadd.s32 %s199, 1
    %s201 = scalar_select %p198, %s199, %s200
    %p204 = pneg %p198
    %p205 = scmp.eq.s32.totalorder %s16, 1
    %p206 = por %p204, %p205
    %p207 = scmp.ne.s32.totalorder %s199, %s202
    %p208 = scmp.eq.s32.totalorder %s16, 0
    %p209 = por %p207, %p208
    %p210 = scmp.ne.s32.totalorder %s199, %s202
    %p211 = scmp.eq.s32.totalorder %s21, 1
    %p212 = por %p210, %p211
    %p213 = scmp.ne.s32.totalorder %s202, %s203
    %p214 = scmp.eq.s32.totalorder %s21, 0
    %p215 = por %p213, %p214
    %p216 = scmp.ne.s32.totalorder %s202, %s203
    %p217 = scmp.eq.s32.totalorder %s22, 1
    %p218 = por %p216, %p217
    %p220 = scmp.ne.s32.totalorder %s203, %s219
    %p221 = scmp.eq.s32.totalorder %s22, 0
    %p222 = por %p220, %p221
    %p223 = scmp.le.s32.totalorder 1, %s16
    %p224 = scmp.lt.s32.totalorder %s16, 3
    %p225 = pnand %p223, %p224
    %p226 = pneg %p225
    // Predicated region
    $region9: #{discriminator_forward.1} parent=5 // pred_check
      _
    $region10: #{discriminator_forward.1} parent=5 // pred_check_branch
      %228 = sbr.rel (%p225) target = $region12
    $region11: #{discriminator_forward.1} parent=5 // pred_region
      %s229 = ssub.s32 %s16, 1
      // Predicated region
      $region13: #{discriminator_forward.1} parent=11 // pred_check
        %p230 = pneg %p63
      $region14: #{discriminator_forward.1} parent=11 // pred_check_branch
        %232 = sbr.rel (%p230) target = $region16
      $region15: #{discriminator_forward.1} parent=11 // pred_region
        _
      $region16: #{discriminator_forward.1} parent=11 // pred_fallthru
        _
      // Predicated region
      $region17: #{discriminator_forward.1} parent=11 // pred_check
        %p233 = pneg %p84
      $region18: #{discriminator_forward.1} parent=11 // pred_check_branch
        %235 = sbr.rel (%p233) target = $region20
      $region19: #{discriminator_forward.1} parent=11 // pred_region
        _
      $region20: #{discriminator_forward.1} parent=11 // pred_fallthru
        _
      // Predicated region
      $region21: #{discriminator_forward.1} parent=11 // pred_check
        %p236 = pneg %p105
      $region22: #{discriminator_forward.1} parent=11 // pred_check_branch
        %238 = sbr.rel (%p236) target = $region24
      $region23: #{discriminator_forward.1} parent=11 // pred_region
        _
      $region24: #{discriminator_forward.1} parent=11 // pred_fallthru
        _
      // Predicated region
      $region25: #{discriminator_forward.1} parent=11 // pred_check
        %p239 = pneg %p126
      $region26: #{discriminator_forward.1} parent=11 // pred_check_branch
        %241 = sbr.rel (%p239) target = $region28
      $region27: #{discriminator_forward.1} parent=11 // pred_region
        _
      $region28: #{discriminator_forward.1} parent=11 // pred_fallthru
        _
      // Predicated region
      $region29: #{discriminator_forward.1} parent=11 // pred_check
        %p242 = pneg %p147
      $region30: #{discriminator_forward.1} parent=11 // pred_check_branch
        %244 = sbr.rel (%p242) target = $region32
      $region31: #{discriminator_forward.1} parent=11 // pred_region
        _
      $region32: #{discriminator_forward.1} parent=11 // pred_fallthru
        _
      // Predicated region
      $region33: #{discriminator_forward.1} parent=11 // pred_check
        %p245 = pneg %p168
      $region34: #{discriminator_forward.1} parent=11 // pred_check_branch
        %247 = sbr.rel (%p245) target = $region36
      $region35: #{discriminator_forward.1} parent=11 // pred_region
        _
      $region36: #{discriminator_forward.1} parent=11 // pred_fallthru
        _
      // Predicated region
      $region37: #{discriminator_forward.1} parent=11 // pred_check
        %p248 = pneg %p189
      $region38: #{discriminator_forward.1} parent=11 // pred_check_branch
        %250 = sbr.rel (%p248) target = $region40
      $region39: #{discriminator_forward.1} parent=11 // pred_region
        _
      $region40: #{discriminator_forward.1} parent=11 // pred_fallthru
        _
    $region12: #{discriminator_forward.1} parent=5 // pred_fallthru
      _
    %p251 = scmp.lt.s32.totalorder %s16, 2
    // Predicated region
    $region41: #{discriminator_forward.1} parent=5 // pred_check
      %p252 = pneg %p251
    $region42: #{discriminator_forward.1} parent=5 // pred_check_branch
      %254 = sbr.rel (%p252) target = $region44
    $region43: #{discriminator_forward.1} parent=5 // pred_region
      // Predicated region
      $region45: #{discriminator_forward.1} parent=43 // pred_check
        %p255 = pneg %p36
      $region46: #{discriminator_forward.1} parent=43 // pred_check_branch
        %257 = sbr.rel (%p255) target = $region48
      $region47: #{discriminator_forward.1} parent=43 // pred_region
        %p258 = scmp.lt.s32.totalorder %s16, 1
        %s259 = scalar_select %p258, %s16, 1
        %s260 = smul.addr %s259, 12
        %s261 = smul.addr %s260, 4
        %s262 = scalar_lea.vmem %s0, %s261
      $region48: #{discriminator_forward.1} parent=43 // pred_fallthru
        _
    $region44: #{discriminator_forward.1} parent=5 // pred_fallthru
      _
    %p263 = scmp.le.s32.totalorder 1, %s16
    %p264 = scmp.lt.s32.totalorder %s16, 3
    %p265 = pnand %p263, %p264
    %p266 = pneg %p265
    // Predicated region
    $region49: #{discriminator_forward.1} parent=5 // pred_check
      _
    $region50: #{discriminator_forward.1} parent=5 // pred_check_branch
      %268 = sbr.rel (%p265) target = $region52
    $region51: #{discriminator_forward.1} parent=5 // pred_region
      %s269 = ssub.s32 %s16, 1
      %p270 = scmp.lt.s32.totalorder %s21, 1
      %s271 = scalar_select %p270, %s21, 1
      %s272 = smul.addr %s271, 12
      %s273 = smul.addr %s272, 4
      %s274 = scalar_lea.vmem %s0, %s273
      %p275 = pneg %p42
      %p276 = pneg %p39
      %p277 = pneg %p63
      %p278 = pneg %p60
      %p279 = pneg %p84
      %p280 = pneg %p81
      %p281 = pneg %p105
      %p282 = pneg %p102
      %p283 = pneg %p126
      %p284 = pneg %p123
      %p285 = pneg %p147
      %p286 = pneg %p144
      %p287 = pneg %p168
      %p288 = pneg %p165
      %p289 = pneg %p189
      %p290 = pneg %p186
      %p291 = pneg %p215
      %p292 = pneg %p212
      %p293 = scmp.lt.s32.totalorder %s21, 1
      %s294 = scalar_select %p293, %s21, 1
      %s295 = scalar_lea.vmem %s8, %s294
      %p296 = scmp.lt.s32.totalorder %s21, 1
      %s297 = scalar_select %p296, %s21, 1
      %s298 = smul.addr %s297, 12
      %s299 = smul.addr %s298, 4
      %s300 = scalar_lea.vmem %s0, %s299
      %p301 = scmp.lt.s32.totalorder %s21, 1
      %s302 = scalar_select %p301, %s21, 1
      %s303 = scalar_lea.vmem %s8, %s302
      %305 = vst [vmem:[#allocation2] sm:$0xf] 0
      %306 = vst [vmem:[#allocation2 + $0x4] sm:$0xf] 0
      %307 = vst [vmem:[#allocation2 + $0x8] sm:$0xf] 0
      %308 = vst [vmem:[#allocation2 + $0xc] sm:$0xf] 0
      %309 = vst [vmem:[#allocation2 + $0x10] sm:$0xf] 0
      %310 = vst [vmem:[#allocation2 + $0x14] sm:$0xf] 0
      %311 = vst [vmem:[#allocation2 + $0x18] sm:$0xf] 0
      %v312 = vld [vmem:[%s3] sm:$0x1]
      %v314 = vlaneseq
      %v315 = vshrl.u32 %v314, 7
      %v316 = vsub.s32 0, %v315
      %v317 = vrot.slane %v312, %v316
      %v319 = vld [vmem:[%s300] sm:$0xf]
      %v320 = vld [vmem:[%s300 + $0x4] sm:$0xf]
      %v321 = vld [vmem:[%s300 + $0x8] sm:$0xf]
      %v322 = vld [vmem:[%s300 + $0xc] sm:$0xf]
      %v323 = vld [vmem:[%s300 + $0x10] sm:$0xf]
      %v324 = vld [vmem:[%s2] sm:$0xf]
      %v325 = vld [vmem:[%s2 + $0x4] sm:$0x3]
      %v331 = vunpack.c.l.b16 %v319
      %v332 = vunpack.c.l.b16 %v320
      %v333 = vunpack.c.l.b16 %v321
      %v334 = vunpack.c.l.b16 %v322
      %v335 = vunpack.c.l.b16 %v323
      %v336 = vpack.c.b16 %v332, %v331
      %v337 = vpack.c.b16 %v334, %v333
      %v338 = vpack.c.b16 %v335, %v335
      %v341 = vunpack.c.l.b16 %v324
      %v342 = vunpack.c.l.b16 %v325
      %v343 = vpack.c.b16 %v342, %v341
      %vm344 = vcmask 97280
      %v346 = vsel %vm344, %v336, 0
      %v349 = vsel %vm344, %v337, 0
      %v352 = vsel %vm344, %v338, 0
      %vm354 = vcmask 1045504
      %v356 = vsel %vm354, %v343, 0
      %358 = vmatprep.subr.bf16.mxu0 0
      %359 = vmatpush1.bf16.msra.mxu0 0
      %360 = vmatprep.subr.bf16.mxu0 0
      %361 = vmatpush1.bf16.msra.mxu0 0
      %362 = vmatprep.subr.bf16.mxu0 0
      %363 = vmatpush1.bf16.msra.mxu0 0
      %364 = vmatprep.subr.bf16.mxu0 0
      %365 = vmatpush1.bf16.msra.mxu0 0
      %366 = vmatprep.subr.bf16.mxu0 0
      %367 = vmatpush1.bf16.msra.mxu0 0
      %368 = vmatprep.subr.bf16.mxu0 0
      %369 = vmatpush1.bf16.msra.mxu0 0
      %370 = vmatprep.subr.bf16.mxu0 0
      %371 = vmatpush1.bf16.msra.mxu0 0
      %372 = vmatprep.subr.bf16.mxu0 0
      %373 = vmatpush1.bf16.msra.mxu0 %v356
      %374 = vmatprep.subr.bf16.mxu0 0
      %375 = vmatpush2.bf16.msra.mxu0 0
      %376 = vmatprep.subr.bf16.mxu0 0
      %377 = vmatpush2.bf16.msra.mxu0 0
      %378 = vmatprep.subr.bf16.mxu0 0
      %379 = vmatpush2.bf16.msra.mxu0 0
      %380 = vmatprep.subr.bf16.mxu0 0
      %381 = vmatpush2.bf16.msra.mxu0 0
      %382 = vmatprep.subr.bf16.mxu0 0
      %383 = vmatpush2.bf16.msra.mxu0 0
      %384 = vmatprep.subr.bf16.mxu0 0
      %385 = vmatpush2.bf16.msra.mxu0 0
      %386 = vmatprep.subr.bf16.mxu0 0
      %387 = vmatpush2.bf16.msra.mxu0 0
      %388 = vmatprep.subr.bf16.mxu0 0
      %389 = vmatpush2.bf16.msra.mxu0 0
      %390 = vmatprep.mubr.bf16.mxu0 0
      %391 = vmatmul.mubr.bf16.gmra.mxu0 %v346
      %v392 = vpop.f32.mrf.mxu0
      %v393 = vadd.f32 0.0, %v392
      %v394 = vpop.f32.mrf.mxu0
      %v395 = vpop.f32.mrf.mxu0
      %v396 = vadd.f32 0.0, %v395
      %v397 = vpop.f32.mrf.mxu0
      %398 = vmatprep.mubr.bf16.mxu0 0
      %399 = vmatmul.mubr.bf16.gmra.mxu0 %v349
      %v400 = vpop.f32.mrf.mxu0
      %v401 = vadd.f32 0.0, %v400
      %v402 = vpop.f32.mrf.mxu0
      %v403 = vpop.f32.mrf.mxu0
      %v404 = vadd.f32 0.0, %v403
      %v405 = vpop.f32.mrf.mxu0
      %406 = vmatprep.mubr.bf16.mxu0 0
      %407 = vmatmul.mubr.bf16.gmra.mxu0 %v352
      %v408 = vpop.f32.mrf.mxu0
      %v409 = vadd.f32 0.0, %v408
      %v410 = vpop.f32.mrf.mxu0
      %v411 = vpop.f32.mrf.mxu0
      %v412 = vpop.f32.mrf.mxu0
      %413 = vdwg.mxu0
      %v414 = vadd.f32 %v317, %v393
      %v415 = vadd.f32 %v317, %v396
      %v416 = vadd.f32 %v317, %v401
      %v417 = vadd.f32 %v317, %v404
      %v418 = vadd.f32 %v317, %v409
      %s419 = scalar_lea.vmem %s2, 8
      %v420 = vld [vmem:[%s419] sm:$0xf]
      %v421 = vld [vmem:[%s419 + $0x4] sm:$0x3]
      %vm422 = vsmask.f32 7424
      %v423 = vshrl.u32 %v336, 16
      %v425 = vshll.u32 %v336, 16
      %v427 = vrot.slane %v425, 1
      %v428 = vor.u32 %v423, %v427
      %v429 = vshll.u32 %v337, 16
      %v431 = vrot.slane %v429, 1
      %v432 = vsel %vm422, %v428, %v431
      %v433 = vshrl.u32 %v337, 16
      %v435 = vor.u32 %v433, %v431
      %v436 = vshll.u32 %v338, 16
      %v438 = vrot.slane %v436, 1
      %v439 = vsel %vm422, %v435, %v438
      %v440 = vshrl.u32 %v338, 16
      %v442 = vor.u32 %v440, %v438
      %v445 = vunpack.c.l.b16 %v420
      %v446 = vunpack.c.l.b16 %v421
      %v447 = vpack.c.b16 %v446, %v445
      %v449 = vsel %vm344, %v432, 0
      %v452 = vsel %vm344, %v439, 0
      %v455 = vsel %vm344, %v442, 0
      %v458 = vsel %vm354, %v447, 0
      %460 = vmatprep.subr.bf16.mxu0 0
      %461 = vmatpush1.bf16.msra.mxu0 0
      %462 = vmatprep.subr.bf16.mxu0 0
      %463 = vmatpush1.bf16.msra.mxu0 0
      %464 = vmatprep.subr.bf16.mxu0 0
      %465 = vmatpush1.bf16.msra.mxu0 0
      %466 = vmatprep.subr.bf16.mxu0 0
      %467 = vmatpush1.bf16.msra.mxu0 0
      %468 = vmatprep.subr.bf16.mxu0 0
      %469 = vmatpush1.bf16.msra.mxu0 0
      %470 = vmatprep.subr.bf16.mxu0 0
      %471 = vmatpush1.bf16.msra.mxu0 0
      %472 = vmatprep.subr.bf16.mxu0 0
      %473 = vmatpush1.bf16.msra.mxu0 0
      %474 = vmatprep.subr.bf16.mxu0 0
      %475 = vmatpush1.bf16.msra.mxu0 %v458
      %476 = vmatprep.subr.bf16.mxu0 0
      %477 = vmatpush2.bf16.msra.mxu0 0
      %478 = vmatprep.subr.bf16.mxu0 0
      %479 = vmatpush2.bf16.msra.mxu0 0
      %480 = vmatprep.subr.bf16.mxu0 0
      %481 = vmatpush2.bf16.msra.mxu0 0
      %482 = vmatprep.subr.bf16.mxu0 0
      %483 = vmatpush2.bf16.msra.mxu0 0
      %484 = vmatprep.subr.bf16.mxu0 0
      %485 = vmatpush2.bf16.msra.mxu0 0
      %486 = vmatprep.subr.bf16.mxu0 0
      %487 = vmatpush2.bf16.msra.mxu0 0
      %488 = vmatprep.subr.bf16.mxu0 0
      %489 = vmatpush2.bf16.msra.mxu0 0
      %490 = vmatprep.subr.bf16.mxu0 0
      %491 = vmatpush2.bf16.msra.mxu0 0
      %492 = vmatprep.mubr.bf16.mxu0 0
      %493 = vmatmul.mubr.bf16.gmra.mxu0 %v449
      %v494 = vpop.f32.mrf.mxu0
      %v495 = vadd.f32 0.0, %v494
      %v496 = vpop.f32.mrf.mxu0
      %v497 = vpop.f32.mrf.mxu0
      %v498 = vadd.f32 0.0, %v497
      %v499 = vpop.f32.mrf.mxu0
      %500 = vmatprep.mubr.bf16.mxu0 0
      %501 = vmatmul.mubr.bf16.gmra.mxu0 %v452
      %v502 = vpop.f32.mrf.mxu0
      %v503 = vadd.f32 0.0, %v502
      %v504 = vpop.f32.mrf.mxu0
      %v505 = vpop.f32.mrf.mxu0
      %v506 = vadd.f32 0.0, %v505
      %v507 = vpop.f32.mrf.mxu0
      %508 = vmatprep.mubr.bf16.mxu0 0
      %509 = vmatmul.mubr.bf16.gmra.mxu0 %v455
      %v510 = vpop.f32.mrf.mxu0
      %v511 = vadd.f32 0.0, %v510
      %v512 = vpop.f32.mrf.mxu0
      %v513 = vpop.f32.mrf.mxu0
      %v514 = vpop.f32.mrf.mxu0
      %515 = vdwg.mxu0
      %v516 = vadd.f32 %v414, %v495
      %v517 = vadd.f32 %v415, %v498
      %v518 = vadd.f32 %v416, %v503
      %v519 = vadd.f32 %v417, %v506
      %v520 = vadd.f32 %v418, %v511
      %s521 = scalar_lea.vmem %s300, 24
      %v522 = vld [vmem:[%s521] sm:$0xf]
      %v523 = vld [vmem:[%s521 + $0x4] sm:$0xf]
      %v524 = vld [vmem:[%s521 + $0x8] sm:$0xf]
      %v525 = vld [vmem:[%s521 + $0xc] sm:$0xf]
      %v526 = vld [vmem:[%s521 + $0x10] sm:$0xf]
      %s527 = scalar_lea.vmem %s2, 16
      %v528 = vld [vmem:[%s527] sm:$0xf]
      %v529 = vld [vmem:[%s527 + $0x4] sm:$0x3]
      %v535 = vunpack.c.l.b16 %v522
      %v536 = vunpack.c.l.b16 %v523
      %v537 = vunpack.c.l.b16 %v524
      %v538 = vunpack.c.l.b16 %v525
      %v539 = vunpack.c.l.b16 %v526
      %v540 = vpack.c.b16 %v536, %v535
      %v541 = vpack.c.b16 %v538, %v537
      %v542 = vpack.c.b16 %v539, %v539
      %v545 = vunpack.c.l.b16 %v528
      %v546 = vunpack.c.l.b16 %v529
      %v547 = vpack.c.b16 %v546, %v545
      %v549 = vsel %vm344, %v540, 0
      %v552 = vsel %vm344, %v541, 0
      %v555 = vsel %vm344, %v542, 0
      %v558 = vsel %vm354, %v547, 0
      %560 = vmatprep.subr.bf16.mxu0 0
      %561 = vmatpush1.bf16.msra.mxu0 0
      %562 = vmatprep.subr.bf16.mxu0 0
      %563 = vmatpush1.bf16.msra.mxu0 0
      %564 = vmatprep.subr.bf16.mxu0 0
      %565 = vmatpush1.bf16.msra.mxu0 0
      %566 = vmatprep.subr.bf16.mxu0 0
      %567 = vmatpush1.bf16.msra.mxu0 0
      %568 = vmatprep.subr.bf16.mxu0 0
      %569 = vmatpush1.bf16.msra.mxu0 0
      %570 = vmatprep.subr.bf16.mxu0 0
      %571 = vmatpush1.bf16.msra.mxu0 0
      %572 = vmatprep.subr.bf16.mxu0 0
      %573 = vmatpush1.bf16.msra.mxu0 0
      %574 = vmatprep.subr.bf16.mxu0 0
      %575 = vmatpush1.bf16.msra.mxu0 %v558
      %576 = vmatprep.subr.bf16.mxu0 0
      %577 = vmatpush2.bf16.msra.mxu0 0
      %578 = vmatprep.subr.bf16.mxu0 0
      %579 = vmatpush2.bf16.msra.mxu0 0
      %580 = vmatprep.subr.bf16.mxu0 0
      %581 = vmatpush2.bf16.msra.mxu0 0
      %582 = vmatprep.subr.bf16.mxu0 0
      %583 = vmatpush2.bf16.msra.mxu0 0
      %584 = vmatprep.subr.bf16.mxu0 0
      %585 = vmatpush2.bf16.msra.mxu0 0
      %586 = vmatprep.subr.bf16.mxu0 0
      %587 = vmatpush2.bf16.msra.mxu0 0
      %588 = vmatprep.subr.bf16.mxu0 0
      %589 = vmatpush2.bf16.msra.mxu0 0
      %590 = vmatprep.subr.bf16.mxu0 0
      %591 = vmatpush2.bf16.msra.mxu0 0
      %592 = vmatprep.mubr.bf16.mxu0 0
      %593 = vmatmul.mubr.bf16.gmra.mxu0 %v549
      %v594 = vpop.f32.mrf.mxu0
      %v595 = vadd.f32 0.0, %v594
      %v596 = vpop.f32.mrf.mxu0
      %v597 = vpop.f32.mrf.mxu0
      %v598 = vadd.f32 0.0, %v597
      %v599 = vpop.f32.mrf.mxu0
      %600 = vmatprep.mubr.bf16.mxu0 0
      %601 = vmatmul.mubr.bf16.gmra.mxu0 %v552
      %v602 = vpop.f32.mrf.mxu0
      %v603 = vadd.f32 0.0, %v602
      %v604 = vpop.f32.mrf.mxu0
      %v605 = vpop.f32.mrf.mxu0
      %v606 = vadd.f32 0.0, %v605
      %v607 = vpop.f32.mrf.mxu0
      %608 = vmatprep.mubr.bf16.mxu0 0
      %609 = vmatmul.mubr.bf16.gmra.mxu0 %v555
      %v610 = vpop.f32.mrf.mxu0
      %v611 = vadd.f32 0.0, %v610
      %v612 = vpop.f32.mrf.mxu0
      %v613 = vpop.f32.mrf.mxu0
      %v614 = vpop.f32.mrf.mxu0
      %615 = vdwg.mxu0
      %v616 = vadd.f32 %v516, %v595
      %v617 = vadd.f32 %v517, %v598
      %v618 = vadd.f32 %v518, %v603
      %v619 = vadd.f32 %v519, %v606
      %v620 = vadd.f32 %v520, %v611
      %s621 = scalar_lea.vmem %s2, 24
      %v622 = vld [vmem:[%s621] sm:$0xf]
      %v623 = vld [vmem:[%s621 + $0x4] sm:$0x3]
      %v624 = vshrl.u32 %v540, 16
      %v626 = vshll.u32 %v540, 16
      %v628 = vrot.slane %v626, 1
      %v629 = vor.u32 %v624, %v628
      %v630 = vshll.u32 %v541, 16
      %v632 = vrot.slane %v630, 1
      %v633 = vsel %vm422, %v629, %v632
      %v634 = vshrl.u32 %v541, 16
      %v636 = vor.u32 %v634, %v632
      %v637 = vshll.u32 %v542, 16
      %v639 = vrot.slane %v637, 1
      %v640 = vsel %vm422, %v636, %v639
      %v641 = vshrl.u32 %v542, 16
      %v643 = vor.u32 %v641, %v639
      %v646 = vunpack.c.l.b16 %v622
      %v647 = vunpack.c.l.b16 %v623
      %v648 = vpack.c.b16 %v647, %v646
      %v650 = vsel %vm344, %v633, 0
      %v653 = vsel %vm344, %v640, 0
      %v656 = vsel %vm344, %v643, 0
      %v659 = vsel %vm354, %v648, 0
      %661 = vmatprep.subr.bf16.mxu0 0
      %662 = vmatpush1.bf16.msra.mxu0 0
      %663 = vmatprep.subr.bf16.mxu0 0
      %664 = vmatpush1.bf16.msra.mxu0 0
      %665 = vmatprep.subr.bf16.mxu0 0
      %666 = vmatpush1.bf16.msra.mxu0 0
      %667 = vmatprep.subr.bf16.mxu0 0
      %668 = vmatpush1.bf16.msra.mxu0 0
      %669 = vmatprep.subr.bf16.mxu0 0
      %670 = vmatpush1.bf16.msra.mxu0 0
      %671 = vmatprep.subr.bf16.mxu0 0
      %672 = vmatpush1.bf16.msra.mxu0 0
      %673 = vmatprep.subr.bf16.mxu0 0
      %674 = vmatpush1.bf16.msra.mxu0 0
      %675 = vmatprep.subr.bf16.mxu0 0
      %676 = vmatpush1.bf16.msra.mxu0 %v659
      %677 = vmatprep.subr.bf16.mxu0 0
      %678 = vmatpush2.bf16.msra.mxu0 0
      %679 = vmatprep.subr.bf16.mxu0 0
      %680 = vmatpush2.bf16.msra.mxu0 0
      %681 = vmatprep.subr.bf16.mxu0 0
      %682 = vmatpush2.bf16.msra.mxu0 0
      %683 = vmatprep.subr.bf16.mxu0 0
      %684 = vmatpush2.bf16.msra.mxu0 0
      %685 = vmatprep.subr.bf16.mxu0 0
      %686 = vmatpush2.bf16.msra.mxu0 0
      %687 = vmatprep.subr.bf16.mxu0 0
      %688 = vmatpush2.bf16.msra.mxu0 0
      %689 = vmatprep.subr.bf16.mxu0 0
      %690 = vmatpush2.bf16.msra.mxu0 0
      %691 = vmatprep.subr.bf16.mxu0 0
      %692 = vmatpush2.bf16.msra.mxu0 0
      %693 = vmatprep.mubr.bf16.mxu0 0
      %694 = vmatmul.mubr.bf16.gmra.mxu0 %v650
      %v695 = vpop.f32.mrf.mxu0
      %v696 = vadd.f32 0.0, %v695
      %v697 = vpop.f32.mrf.mxu0
      %v698 = vpop.f32.mrf.mxu0
      %v699 = vadd.f32 0.0, %v698
      %v700 = vpop.f32.mrf.mxu0
      %701 = vmatprep.mubr.bf16.mxu0 0
      %702 = vmatmul.mubr.bf16.gmra.mxu0 %v653
      %v703 = vpop.f32.mrf.mxu0
      %v704 = vadd.f32 0.0, %v703
      %v705 = vpop.f32.mrf.mxu0
      %v706 = vpop.f32.mrf.mxu0
      %v707 = vadd.f32 0.0, %v706
      %v708 = vpop.f32.mrf.mxu0
      %709 = vmatprep.mubr.bf16.mxu0 0
      %710 = vmatmul.mubr.bf16.gmra.mxu0 %v656
      %v711 = vpop.f32.mrf.mxu0
      %v712 = vadd.f32 0.0, %v711
      %v713 = vpop.f32.mrf.mxu0
      %v714 = vpop.f32.mrf.mxu0
      %v715 = vpop.f32.mrf.mxu0
      %716 = vdwg.mxu0
      %v717 = vadd.f32 %v616, %v696
      %v718 = vadd.f32 %v617, %v699
      %v719 = vadd.f32 %v618, %v704
      %v720 = vadd.f32 %v619, %v707
      %v721 = vadd.f32 %v620, %v712
      %v722 = vld [vmem:[%s300] sm:$0xc]
      %v723 = vld [vmem:[%s300 + $0x4] sm:$0xf]
      %v724 = vld [vmem:[%s300 + $0x8] sm:$0xf]
      %v725 = vld [vmem:[%s300 + $0xc] sm:$0xf]
      %v726 = vld [vmem:[%s300 + $0x10] sm:$0xf]
      %v727 = vld [vmem:[%s300 + $0x14] sm:$0x3]
      %s728 = scalar_lea.vmem %s2, 32
      %v729 = vld [vmem:[%s728] sm:$0xf]
      %v730 = vld [vmem:[%s728 + $0x4] sm:$0x3]
      %v737 = vunpack.c.l.b16 %v722
      %v738 = vunpack.c.l.b16 %v723
      %v739 = vunpack.c.l.b16 %v724
      %v740 = vunpack.c.l.b16 %v725
      %v741 = vunpack.c.l.b16 %v726
      %v742 = vunpack.c.l.b16 %v727
      %v743 = vpack.c.b16 %v738, %v737
      %v744 = vpack.c.b16 %v740, %v739
      %v745 = vpack.c.b16 %v742, %v741
      %vm746 = vsmask.f32 5376
      %v748 = vshrl.u32 %v743, 16
      %v750 = vrot.slane %v748, 2
      %v751 = vshll.u32 %v743, 16
      %v753 = vrot.slane %v751, 3
      %v754 = vor.u32 %v750, %v753
      %v756 = vshrl.u32 %v744, 16
      %v758 = vrot.slane %v756, 2
      %v759 = vshll.u32 %v744, 16
      %v761 = vrot.slane %v759, 3
      %v762 = vor.u32 %v758, %v761
      %v763 = vsel %vm746, %v754, %v762
      %v765 = vshrl.u32 %v745, 16
      %v767 = vrot.slane %v765, 2
      %v768 = vshll.u32 %v745, 16
      %v770 = vrot.slane %v768, 3
      %v771 = vor.u32 %v767, %v770
      %v772 = vsel %vm746, %v762, %v771
      %v775 = vunpack.c.l.b16 %v729
      %v776 = vunpack.c.l.b16 %v730
      %v777 = vpack.c.b16 %v776, %v775
      %v779 = vsel %vm344, %v763, 0
      %v782 = vsel %vm344, %v772, 0
      %v785 = vsel %vm344, %v771, 0
      %v788 = vsel %vm354, %v777, 0
      %790 = vmatprep.subr.bf16.mxu0 0
      %791 = vmatpush1.bf16.msra.mxu0 0
      %792 = vmatprep.subr.bf16.mxu0 0
      %793 = vmatpush1.bf16.msra.mxu0 0
      %794 = vmatprep.subr.bf16.mxu0 0
      %795 = vmatpush1.bf16.msra.mxu0 0
      %796 = vmatprep.subr.bf16.mxu0 0
      %797 = vmatpush1.bf16.msra.mxu0 0
      %798 = vmatprep.subr.bf16.mxu0 0
      %799 = vmatpush1.bf16.msra.mxu0 0
      %800 = vmatprep.subr.bf16.mxu0 0
      %801 = vmatpush1.bf16.msra.mxu0 0
      %802 = vmatprep.subr.bf16.mxu0 0
      %803 = vmatpush1.bf16.msra.mxu0 0
      %804 = vmatprep.subr.bf16.mxu0 0
      %805 = vmatpush1.bf16.msra.mxu0 %v788
      %806 = vmatprep.subr.bf16.mxu0 0
      %807 = vmatpush2.bf16.msra.mxu0 0
      %808 = vmatprep.subr.bf16.mxu0 0
      %809 = vmatpush2.bf16.msra.mxu0 0
      %810 = vmatprep.subr.bf16.mxu0 0
      %811 = vmatpush2.bf16.msra.mxu0 0
      %812 = vmatprep.subr.bf16.mxu0 0
      %813 = vmatpush2.bf16.msra.mxu0 0
      %814 = vmatprep.subr.bf16.mxu0 0
      %815 = vmatpush2.bf16.msra.mxu0 0
      %816 = vmatprep.subr.bf16.mxu0 0
      %817 = vmatpush2.bf16.msra.mxu0 0
      %818 = vmatprep.subr.bf16.mxu0 0
      %819 = vmatpush2.bf16.msra.mxu0 0
      %820 = vmatprep.subr.bf16.mxu0 0
      %821 = vmatpush2.bf16.msra.mxu0 0
      %822 = vmatprep.mubr.bf16.mxu0 0
      %823 = vmatmul.mubr.bf16.gmra.mxu0 %v779
      %v824 = vpop.f32.mrf.mxu0
      %v825 = vadd.f32 0.0, %v824
      %v826 = vpop.f32.mrf.mxu0
      %v827 = vpop.f32.mrf.mxu0
      %v828 = vadd.f32 0.0, %v827
      %v829 = vpop.f32.mrf.mxu0
      %830 = vmatprep.mubr.bf16.mxu0 0
      %831 = vmatmul.mubr.bf16.gmra.mxu0 %v782
      %v832 = vpop.f32.mrf.mxu0
      %v833 = vadd.f32 0.0, %v832
      %v834 = vpop.f32.mrf.mxu0
      %v835 = vpop.f32.mrf.mxu0
      %v836 = vadd.f32 0.0, %v835
      %v837 = vpop.f32.mrf.mxu0
      %838 = vmatprep.mubr.bf16.mxu0 0
      %839 = vmatmul.mubr.bf16.gmra.mxu0 %v785
      %v840 = vpop.f32.mrf.mxu0
      %v841 = vadd.f32 0.0, %v840
      %v842 = vpop.f32.mrf.mxu0
      %v843 = vpop.f32.mrf.mxu0
      %v844 = vpop.f32.mrf.mxu0
      %845 = vdwg.mxu0
      %v846 = vadd.f32 %v717, %v825
      %v847 = vadd.f32 %v718, %v828
      %v848 = vadd.f32 %v719, %v833
      %v849 = vadd.f32 %v720, %v836
      %v850 = vadd.f32 %v721, %v841
      %v851 = vld [vmem:[%s300] sm:$0x8]
      %v852 = vld [vmem:[%s300 + $0x14] sm:$0x7]
      %s853 = scalar_lea.vmem %s2, 40
      %v854 = vld [vmem:[%s853] sm:$0xf]
      %v855 = vld [vmem:[%s853 + $0x4] sm:$0x3]
      %v858 = vunpack.c.l.b16 %v851
      %v859 = vunpack.c.l.b16 %v852
      %v860 = vpack.c.b16 %v738, %v858
      %v861 = vpack.c.b16 %v859, %v741
      %vm862 = vcmask 1044480
      %v863 = vrot.slane %v860, 3
      %v864 = vrot.slane %v744, 3
      %v865 = vsel %vm862, %v863, %v864
      %v866 = vrot.slane %v861, 3
      %v867 = vsel %vm862, %v864, %v866
      %v870 = vunpack.c.l.b16 %v854
      %v871 = vunpack.c.l.b16 %v855
      %v872 = vpack.c.b16 %v871, %v870
      %v874 = vsel %vm344, %v865, 0
      %v877 = vsel %vm344, %v867, 0
      %v880 = vsel %vm344, %v866, 0
      %v883 = vsel %vm354, %v872, 0
      %885 = vmatprep.subr.bf16.mxu0 0
      %886 = vmatpush1.bf16.msra.mxu0 0
      %887 = vmatprep.subr.bf16.mxu0 0
      %888 = vmatpush1.bf16.msra.mxu0 0
      %889 = vmatprep.subr.bf16.mxu0 0
      %890 = vmatpush1.bf16.msra.mxu0 0
      %891 = vmatprep.subr.bf16.mxu0 0
      %892 = vmatpush1.bf16.msra.mxu0 0
      %893 = vmatprep.subr.bf16.mxu0 0
      %894 = vmatpush1.bf16.msra.mxu0 0
      %895 = vmatprep.subr.bf16.mxu0 0
      %896 = vmatpush1.bf16.msra.mxu0 0
      %897 = vmatprep.subr.bf16.mxu0 0
      %898 = vmatpush1.bf16.msra.mxu0 0
      %899 = vmatprep.subr.bf16.mxu0 0
      %900 = vmatpush1.bf16.msra.mxu0 %v883
      %901 = vmatprep.subr.bf16.mxu0 0
      %902 = vmatpush2.bf16.msra.mxu0 0
      %903 = vmatprep.subr.bf16.mxu0 0
      %904 = vmatpush2.bf16.msra.mxu0 0
      %905 = vmatprep.subr.bf16.mxu0 0
      %906 = vmatpush2.bf16.msra.mxu0 0
      %907 = vmatprep.subr.bf16.mxu0 0
      %908 = vmatpush2.bf16.msra.mxu0 0
      %909 = vmatprep.subr.bf16.mxu0 0
      %910 = vmatpush2.bf16.msra.mxu0 0
      %911 = vmatprep.subr.bf16.mxu0 0
      %912 = vmatpush2.bf16.msra.mxu0 0
      %913 = vmatprep.subr.bf16.mxu0 0
      %914 = vmatpush2.bf16.msra.mxu0 0
      %915 = vmatprep.subr.bf16.mxu0 0
      %916 = vmatpush2.bf16.msra.mxu0 0
      %917 = vmatprep.mubr.bf16.mxu0 0
      %918 = vmatmul.mubr.bf16.gmra.mxu0 %v874
      %v919 = vpop.f32.mrf.mxu0
      %v920 = vadd.f32 0.0, %v919
      %v921 = vpop.f32.mrf.mxu0
      %v922 = vpop.f32.mrf.mxu0
      %v923 = vadd.f32 0.0, %v922
      %v924 = vpop.f32.mrf.mxu0
      %925 = vmatprep.mubr.bf16.mxu0 0
      %926 = vmatmul.mubr.bf16.gmra.mxu0 %v877
      %v927 = vpop.f32.mrf.mxu0
      %v928 = vadd.f32 0.0, %v927
      %v929 = vpop.f32.mrf.mxu0
      %v930 = vpop.f32.mrf.mxu0
      %v931 = vadd.f32 0.0, %v930
      %v932 = vpop.f32.mrf.mxu0
      %933 = vmatprep.mubr.bf16.mxu0 0
      %934 = vmatmul.mubr.bf16.gmra.mxu0 %v880
      %v935 = vpop.f32.mrf.mxu0
      %v936 = vadd.f32 0.0, %v935
      %v937 = vpop.f32.mrf.mxu0
      %v938 = vpop.f32.mrf.mxu0
      %v939 = vpop.f32.mrf.mxu0
      %940 = vdwg.mxu0
      %v941 = vadd.f32 %v846, %v920
      %v942 = vadd.f32 %v847, %v923
      %v943 = vadd.f32 %v848, %v928
      %v944 = vadd.f32 %v849, %v931
      %v945 = vadd.f32 %v850, %v936
      %v946 = vld [vmem:[%s521] sm:$0xc]
      %v947 = vld [vmem:[%s521 + $0x4] sm:$0xf]
      %v948 = vld [vmem:[%s521 + $0x8] sm:$0xf]
      %v949 = vld [vmem:[%s521 + $0xc] sm:$0xf]
      %v950 = vld [vmem:[%s521 + $0x10] sm:$0xf]
      %v951 = vld [vmem:[%s521 + $0x14] sm:$0x3]
      %s952 = scalar_lea.vmem %s2, 48
      %v953 = vld [vmem:[%s952] sm:$0xf]
      %v954 = vld [vmem:[%s952 + $0x4] sm:$0x3]
      %v961 = vunpack.c.l.b16 %v946
      %v962 = vunpack.c.l.b16 %v947
      %v963 = vunpack.c.l.b16 %v948
      %v964 = vunpack.c.l.b16 %v949
      %v965 = vunpack.c.l.b16 %v950
      %v966 = vunpack.c.l.b16 %v951
      %v967 = vpack.c.b16 %v962, %v961
      %v968 = vpack.c.b16 %v964, %v963
      %v969 = vpack.c.b16 %v966, %v965
      %v971 = vshrl.u32 %v967, 16
      %v973 = vrot.slane %v971, 2
      %v974 = vshll.u32 %v967, 16
      %v976 = vrot.slane %v974, 3
      %v977 = vor.u32 %v973, %v976
      %v979 = vshrl.u32 %v968, 16
      %v981 = vrot.slane %v979, 2
      %v982 = vshll.u32 %v968, 16
      %v984 = vrot.slane %v982, 3
      %v985 = vor.u32 %v981, %v984
      %v986 = vsel %vm746, %v977, %v985
      %v988 = vshrl.u32 %v969, 16
      %v990 = vrot.slane %v988, 2
      %v991 = vshll.u32 %v969, 16
      %v993 = vrot.slane %v991, 3
      %v994 = vor.u32 %v990, %v993
      %v995 = vsel %vm746, %v985, %v994
      %v998 = vunpack.c.l.b16 %v953
      %v999 = vunpack.c.l.b16 %v954
      %v1000 = vpack.c.b16 %v999, %v998
      %v1002 = vsel %vm344, %v986, 0
      %v1005 = vsel %vm344, %v995, 0
      %v1008 = vsel %vm344, %v994, 0
      %v1011 = vsel %vm354, %v1000, 0
      %1013 = vmatprep.subr.bf16.mxu0 0
      %1014 = vmatpush1.bf16.msra.mxu0 0
      %1015 = vmatprep.subr.bf16.mxu0 0
      %1016 = vmatpush1.bf16.msra.mxu0 0
      %1017 = vmatprep.subr.bf16.mxu0 0
      %1018 = vmatpush1.bf16.msra.mxu0 0
      %1019 = vmatprep.subr.bf16.mxu0 0
      %1020 = vmatpush1.bf16.msra.mxu0 0
      %1021 = vmatprep.subr.bf16.mxu0 0
      %1022 = vmatpush1.bf16.msra.mxu0 0
      %1023 = vmatprep.subr.bf16.mxu0 0
      %1024 = vmatpush1.bf16.msra.mxu0 0
      %1025 = vmatprep.subr.bf16.mxu0 0
      %1026 = vmatpush1.bf16.msra.mxu0 0
      %1027 = vmatprep.subr.bf16.mxu0 0
      %1028 = vmatpush1.bf16.msra.mxu0 %v1011
      %1029 = vmatprep.subr.bf16.mxu0 0
      %1030 = vmatpush2.bf16.msra.mxu0 0
      %1031 = vmatprep.subr.bf16.mxu0 0
      %1032 = vmatpush2.bf16.msra.mxu0 0
      %1033 = vmatprep.subr.bf16.mxu0 0
      %1034 = vmatpush2.bf16.msra.mxu0 0
      %1035 = vmatprep.subr.bf16.mxu0 0
      %1036 = vmatpush2.bf16.msra.mxu0 0
      %1037 = vmatprep.subr.bf16.mxu0 0
      %1038 = vmatpush2.bf16.msra.mxu0 0
      %1039 = vmatprep.subr.bf16.mxu0 0
      %1040 = vmatpush2.bf16.msra.mxu0 0
      %1041 = vmatprep.subr.bf16.mxu0 0
      %1042 = vmatpush2.bf16.msra.mxu0 0
      %1043 = vmatprep.subr.bf16.mxu0 0
      %1044 = vmatpush2.bf16.msra.mxu0 0
      %1045 = vmatprep.mubr.bf16.mxu0 0
      %1046 = vmatmul.mubr.bf16.gmra.mxu0 %v1002
      %v1047 = vpop.f32.mrf.mxu0
      %v1048 = vadd.f32 0.0, %v1047
      %v1049 = vpop.f32.mrf.mxu0
      %v1050 = vpop.f32.mrf.mxu0
      %v1051 = vadd.f32 0.0, %v1050
      %v1052 = vpop.f32.mrf.mxu0
      %1053 = vmatprep.mubr.bf16.mxu0 0
      %1054 = vmatmul.mubr.bf16.gmra.mxu0 %v1005
      %v1055 = vpop.f32.mrf.mxu0
      %v1056 = vadd.f32 0.0, %v1055
      %v1057 = vpop.f32.mrf.mxu0
      %v1058 = vpop.f32.mrf.mxu0
      %v1059 = vadd.f32 0.0, %v1058
      %v1060 = vpop.f32.mrf.mxu0
      %1061 = vmatprep.mubr.bf16.mxu0 0
      %1062 = vmatmul.mubr.bf16.gmra.mxu0 %v1008
      %v1063 = vpop.f32.mrf.mxu0
      %v1064 = vadd.f32 0.0, %v1063
      %v1065 = vpop.f32.mrf.mxu0
      %v1066 = vpop.f32.mrf.mxu0
      %v1067 = vpop.f32.mrf.mxu0
      %1068 = vdwg.mxu0
      %v1069 = vadd.f32 %v941, %v1048
      %v1070 = vadd.f32 %v942, %v1051
      %v1071 = vadd.f32 %v943, %v1056
      %v1072 = vadd.f32 %v944, %v1059
      %v1073 = vadd.f32 %v945, %v1064
      %v1074 = vld [vmem:[%s521] sm:$0x8]
      %v1075 = vld [vmem:[%s521 + $0x14] sm:$0x7]
      %s1076 = scalar_lea.vmem %s2, 56
      %v1077 = vld [vmem:[%s1076] sm:$0xf]
      %v1078 = vld [vmem:[%s1076 + $0x4] sm:$0x3]
      %v1081 = vunpack.c.l.b16 %v1074
      %v1082 = vunpack.c.l.b16 %v1075
      %v1083 = vpack.c.b16 %v962, %v1081
      %v1084 = vpack.c.b16 %v1082, %v965
      %v1085 = vrot.slane %v1083, 3
      %v1086 = vrot.slane %v968, 3
      %v1087 = vsel %vm862, %v1085, %v1086
      %v1088 = vrot.slane %v1084, 3
      %v1089 = vsel %vm862, %v1086, %v1088
      %v1092 = vunpack.c.l.b16 %v1077
      %v1093 = vunpack.c.l.b16 %v1078
      %v1094 = vpack.c.b16 %v1093, %v1092
      %v1096 = vsel %vm344, %v1087, 0
      %v1099 = vsel %vm344, %v1089, 0
      %v1102 = vsel %vm344, %v1088, 0
      %v1105 = vsel %vm354, %v1094, 0
      %1107 = vmatprep.subr.bf16.mxu0 0
      %1108 = vmatpush1.bf16.msra.mxu0 0
      %1109 = vmatprep.subr.bf16.mxu0 0
      %1110 = vmatpush1.bf16.msra.mxu0 0
      %1111 = vmatprep.subr.bf16.mxu0 0
      %1112 = vmatpush1.bf16.msra.mxu0 0
      %1113 = vmatprep.subr.bf16.mxu0 0
      %1114 = vmatpush1.bf16.msra.mxu0 0
      %1115 = vmatprep.subr.bf16.mxu0 0
      %1116 = vmatpush1.bf16.msra.mxu0 0
      %1117 = vmatprep.subr.bf16.mxu0 0
      %1118 = vmatpush1.bf16.msra.mxu0 0
      %1119 = vmatprep.subr.bf16.mxu0 0
      %1120 = vmatpush1.bf16.msra.mxu0 0
      %1121 = vmatprep.subr.bf16.mxu0 0
      %1122 = vmatpush1.bf16.msra.mxu0 %v1105
      %1123 = vmatprep.subr.bf16.mxu0 0
      %1124 = vmatpush2.bf16.msra.mxu0 0
      %1125 = vmatprep.subr.bf16.mxu0 0
      %1126 = vmatpush2.bf16.msra.mxu0 0
      %1127 = vmatprep.subr.bf16.mxu0 0
      %1128 = vmatpush2.bf16.msra.mxu0 0
      %1129 = vmatprep.subr.bf16.mxu0 0
      %1130 = vmatpush2.bf16.msra.mxu0 0
      %1131 = vmatprep.subr.bf16.mxu0 0
      %1132 = vmatpush2.bf16.msra.mxu0 0
      %1133 = vmatprep.subr.bf16.mxu0 0
      %1134 = vmatpush2.bf16.msra.mxu0 0
      %1135 = vmatprep.subr.bf16.mxu0 0
      %1136 = vmatpush2.bf16.msra.mxu0 0
      %1137 = vmatprep.subr.bf16.mxu0 0
      %1138 = vmatpush2.bf16.msra.mxu0 0
      %1139 = vmatprep.mubr.bf16.mxu0 0
      %1140 = vmatmul.mubr.bf16.gmra.mxu0 %v1096
      %v1141 = vpop.f32.mrf.mxu0
      %v1142 = vadd.f32 0.0, %v1141
      %v1143 = vpop.f32.mrf.mxu0
      %v1144 = vpop.f32.mrf.mxu0
      %v1145 = vadd.f32 0.0, %v1144
      %v1146 = vpop.f32.mrf.mxu0
      %1147 = vmatprep.mubr.bf16.mxu0 0
      %1148 = vmatmul.mubr.bf16.gmra.mxu0 %v1099
      %v1149 = vpop.f32.mrf.mxu0
      %v1150 = vadd.f32 0.0, %v1149
      %v1151 = vpop.f32.mrf.mxu0
      %v1152 = vpop.f32.mrf.mxu0
      %v1153 = vadd.f32 0.0, %v1152
      %v1154 = vpop.f32.mrf.mxu0
      %1155 = vmatprep.mubr.bf16.mxu0 0
      %1156 = vmatmul.mubr.bf16.gmra.mxu0 %v1102
      %v1157 = vpop.f32.mrf.mxu0
      %v1158 = vadd.f32 0.0, %v1157
      %v1159 = vpop.f32.mrf.mxu0
      %v1160 = vpop.f32.mrf.mxu0
      %v1161 = vpop.f32.mrf.mxu0
      %1162 = vdwg.mxu0
      %v1163 = vadd.f32 %v1069, %v1142
      %v1164 = vadd.f32 %v1070, %v1145
      %v1165 = vadd.f32 %v1071, %v1150
      %v1166 = vadd.f32 %v1072, %v1153
      %v1167 = vadd.f32 %v1073, %v1158
      %vm1168 = vcmp.gt.f32.partialorder %v1163, 0.0
      %vm1169 = vcmp.gt.f32.partialorder %v1164, 0.0
      %vm1170 = vcmp.gt.f32.partialorder %v1165, 0.0
      %vm1171 = vcmp.gt.f32.partialorder %v1166, 0.0
      %vm1172 = vcmp.gt.f32.partialorder %v1167, 0.0
      %v1173 = vmul.f32 %v1163, 0.2
      %v1174 = vmul.f32 %v1164, 0.2
      %v1175 = vmul.f32 %v1165, 0.2
      %v1176 = vmul.f32 %v1166, 0.2
      %v1177 = vmul.f32 %v1167, 0.2
      %v1178 = vsel %vm1168, %v1163, %v1173
      %v1179 = vsel %vm1169, %v1164, %v1174
      %v1180 = vsel %vm1170, %v1165, %v1175
      %v1181 = vsel %vm1171, %v1166, %v1176
      %v1182 = vsel %vm1172, %v1167, %v1177
      %v1183 = vld [vmem:[%s1] sm:$0xff]
      %v1184 = vld [vmem:[%s1 + $0x8] sm:$0xff]
      %v1185 = vld [vmem:[%s1 + $0x10] sm:$0xff]
      %v1186 = vld [vmem:[%s1 + $0x18] sm:$0xff]
      %v1187 = vld [vmem:[%s1 + $0x20] sm:$0x7f]
      %v1188 = vmul.f32 %v1178, %v1183
      %v1189 = vmul.f32 %v1179, %v1184
      %v1190 = vmul.f32 %v1180, %v1185
      %v1191 = vmul.f32 %v1181, %v1186
      %v1192 = vmul.f32 %v1182, %v1187
      %v1193 = vpack.c.bf16 %v1189, %v1188
      %v1194 = vpack.c.bf16 %v1191, %v1190
      %v1195 = vpack.c.bf16 %v1192, %v1192
      %v1199 = vunpack.c.l.b16 %v1193
      %v1200 = vunpack.c.h.b16 %v1193
      %v1201 = vunpack.c.l.b16 %v1194
      %v1202 = vunpack.c.h.b16 %v1194
      %v1203 = vunpack.c.l.b16 %v1195
      %v1204 = vpack.c.b16 %v1199, %v1199
      %v1205 = vpack.c.b16 %v1200, %v1200
      %v1206 = vpack.c.b16 %v1201, %v1201
      %v1207 = vpack.c.b16 %v1202, %v1202
      %v1208 = vpack.c.b16 %v1203, %v1203
      %1214 = vst [vmem:[#allocation2 + $0x4] sm:$0xf] %v1204
      %1215 = vst [vmem:[#allocation2 + $0x8] sm:$0xf] %v1205
      %1216 = vst [vmem:[#allocation2 + $0xc] sm:$0xf] %v1206
      %1217 = vst [vmem:[#allocation2 + $0x10] sm:$0xf] %v1207
      %vm1218 = vcmask 1043456
      %vm1219 = vsmask.f32 3328
      %vm1220 = vmand %vm1218, %vm1219
      %v1221 = vld [vmem:[#allocation2 + $0x14] sm:$0xf]
      %v1222 = vsel %vm1220, %v1208, %v1221
      %1223 = vst [vmem:[#allocation2 + $0x14] sm:$0xf] %v1222
      %v1224 = vld [vmem:[%s5] sm:$0x1]
      %v1226 = vlaneseq
      %v1227 = vshrl.u32 %v1226, 7
      %v1228 = vsub.s32 0, %v1227
      %v1229 = vrot.slane %v1224, %v1228
      %v1231 = vld [vmem:[#allocation2] sm:$0xe]
      %v1232 = vld [vmem:[#allocation2 + $0x4] sm:$0xf]
      %v1233 = vld [vmem:[#allocation2 + $0x8] sm:$0xf]
      %v1234 = vld [vmem:[#allocation2 + $0xc] sm:$0xf]
      %v1235 = vld [vmem:[#allocation2 + $0x10] sm:$0x3]
      %v1236 = vld [vmem:[%s4] sm:$0xf]
      %v1237 = vld [vmem:[%s4 + $0x4] sm:$0xf]
      %v1238 = vld [vmem:[%s4 + $0x8] sm:$0xf]
      %v1239 = vld [vmem:[%s4 + $0xc] sm:$0xf]
      %v1240 = vld [vmem:[%s4 + $0x10] sm:$0xf]
      %v1241 = vld [vmem:[%s4 + $0x14] sm:$0xf]
      %v1242 = vld [vmem:[%s4 + $0x18] sm:$0xf]
      %v1243 = vld [vmem:[%s4 + $0x1c] sm:$0xf]
      %v1244 = vld [vmem:[%s4 + $0x20] sm:$0xf]
      %v1245 = vld [vmem:[%s4 + $0x24] sm:$0xf]
      %v1246 = vld [vmem:[%s4 + $0x28] sm:$0xf]
      %v1247 = vld [vmem:[%s4 + $0x2c] sm:$0xf]
      %v1248 = vld [vmem:[%s4 + $0x30] sm:$0xf]
      %v1249 = vld [vmem:[%s4 + $0x34] sm:$0xf]
      %v1250 = vld [vmem:[%s4 + $0x38] sm:$0xf]
      %v1251 = vld [vmem:[%s4 + $0x3c] sm:$0xf]
      %v1257 = vunpack.c.l.b16 %v1231
      %v1258 = vunpack.c.l.b16 %v1232
      %v1259 = vunpack.c.l.b16 %v1233
      %v1260 = vunpack.c.l.b16 %v1234
      %v1261 = vunpack.c.l.b16 %v1235
      %v1262 = vpack.c.b16 %v1258, %v1257
      %v1263 = vpack.c.b16 %v1260, %v1259
      %v1264 = vpack.c.b16 %v1261, %v1261
      %vm1265 = vcmask 1046528
      %v1266 = vrot.slane %v1262, 1
      %v1267 = vrot.slane %v1263, 1
      %v1268 = vsel %vm1265, %v1266, %v1267
      %v1269 = vrot.slane %v1264, 1
      %v1270 = vsel %vm1265, %v1267, %v1269
      %v1290 = vunpack.c.l.b16 %v1236
      %v1291 = vunpack.c.l.b16 %v1237
      %v1292 = vunpack.c.l.b16 %v1238
      %v1293 = vunpack.c.l.b16 %v1239
      %v1294 = vunpack.c.l.b16 %v1240
      %v1295 = vunpack.c.l.b16 %v1241
      %v1296 = vunpack.c.l.b16 %v1242
      %v1297 = vunpack.c.l.b16 %v1243
      %v1298 = vunpack.c.l.b16 %v1244
      %v1299 = vunpack.c.l.b16 %v1245
      %v1300 = vunpack.c.l.b16 %v1246
      %v1301 = vunpack.c.l.b16 %v1247
      %v1302 = vunpack.c.l.b16 %v1248
      %v1303 = vunpack.c.l.b16 %v1249
      %v1304 = vunpack.c.l.b16 %v1250
      %v1305 = vunpack.c.l.b16 %v1251
      %v1306 = vpack.c.b16 %v1291, %v1290
      %v1307 = vpack.c.b16 %v1293, %v1292
      %v1308 = vpack.c.b16 %v1295, %v1294
      %v1309 = vpack.c.b16 %v1297, %v1296
      %v1310 = vpack.c.b16 %v1299, %v1298
      %v1311 = vpack.c.b16 %v1301, %v1300
      %v1312 = vpack.c.b16 %v1303, %v1302
      %v1313 = vpack.c.b16 %v1305, %v1304
      %1322 = vmatprep.subr.bf16.mxu0 0
      %1323 = vmatpush1.bf16.msra.mxu0 %v1313
      %1324 = vmatprep.subr.bf16.mxu0 0
      %1325 = vmatpush1.bf16.msra.mxu0 %v1312
      %1326 = vmatprep.subr.bf16.mxu0 0
      %1327 = vmatpush1.bf16.msra.mxu0 %v1311
      %1328 = vmatprep.subr.bf16.mxu0 0
      %1329 = vmatpush1.bf16.msra.mxu0 %v1310
      %1330 = vmatprep.subr.bf16.mxu0 0
      %1331 = vmatpush1.bf16.msra.mxu0 %v1309
      %1332 = vmatprep.subr.bf16.mxu0 0
      %1333 = vmatpush1.bf16.msra.mxu0 %v1308
      %1334 = vmatprep.subr.bf16.mxu0 0
      %1335 = vmatpush1.bf16.msra.mxu0 %v1307
      %1336 = vmatprep.subr.bf16.mxu0 0
      %1337 = vmatpush1.bf16.msra.mxu0 %v1306
      %1338 = vmatprep.subr.bf16.mxu0 0
      %1339 = vmatpush2.bf16.msra.mxu0 0
      %1340 = vmatprep.subr.bf16.mxu0 0
      %1341 = vmatpush2.bf16.msra.mxu0 0
      %1342 = vmatprep.subr.bf16.mxu0 0
      %1343 = vmatpush2.bf16.msra.mxu0 0
      %1344 = vmatprep.subr.bf16.mxu0 0
      %1345 = vmatpush2.bf16.msra.mxu0 0
      %1346 = vmatprep.subr.bf16.mxu0 0
      %1347 = vmatpush2.bf16.msra.mxu0 0
      %1348 = vmatprep.subr.bf16.mxu0 0
      %1349 = vmatpush2.bf16.msra.mxu0 0
      %1350 = vmatprep.subr.bf16.mxu0 0
      %1351 = vmatpush2.bf16.msra.mxu0 0
      %1352 = vmatprep.subr.bf16.mxu0 0
      %1353 = vmatpush2.bf16.msra.mxu0 0
      %1354 = vmatprep.mubr.bf16.mxu0 0
      %1355 = vmatmul.mubr.bf16.gmra.mxu0 %v1268
      %v1356 = vpop.f32.mrf.mxu0
      %v1357 = vadd.f32 0.0, %v1356
      %v1358 = vpop.f32.mrf.mxu0
      %v1359 = vpop.f32.mrf.mxu0
      %v1360 = vadd.f32 0.0, %v1359
      %v1361 = vpop.f32.mrf.mxu0
      %1362 = vmatprep.mubr.bf16.mxu0 0
      %1363 = vmatmul.mubr.bf16.gmra.mxu0 %v1270
      %v1364 = vpop.f32.mrf.mxu0
      %v1365 = vadd.f32 0.0, %v1364
      %v1366 = vpop.f32.mrf.mxu0
      %v1367 = vpop.f32.mrf.mxu0
      %v1368 = vadd.f32 0.0, %v1367
      %v1369 = vpop.f32.mrf.mxu0
      %1370 = vmatprep.mubr.bf16.mxu0 0
      %1371 = vmatmul.mubr.bf16.gmra.mxu0 %v1269
      %v1372 = vpop.f32.mrf.mxu0
      %v1373 = vadd.f32 0.0, %v1372
      %v1374 = vpop.f32.mrf.mxu0
      %v1375 = vpop.f32.mrf.mxu0
      %v1376 = vpop.f32.mrf.mxu0
      %1377 = vdwg.mxu0
      %v1378 = vadd.f32 %v1229, %v1357
      %v1379 = vadd.f32 %v1229, %v1360
      %v1380 = vadd.f32 %v1229, %v1365
      %v1381 = vadd.f32 %v1229, %v1368
      %v1382 = vadd.f32 %v1229, %v1373
      %v1383 = vld [vmem:[#allocation2 + $0x10] sm:$0x7]
      %s1384 = scalar_lea.vmem %s4, 64
      %v1385 = vld [vmem:[%s1384] sm:$0xf]
      %v1386 = vld [vmem:[%s1384 + $0x4] sm:$0xf]
      %v1387 = vld [vmem:[%s1384 + $0x8] sm:$0xf]
      %v1388 = vld [vmem:[%s1384 + $0xc] sm:$0xf]
      %v1389 = vld [vmem:[%s1384 + $0x10] sm:$0xf]
      %v1390 = vld [vmem:[%s1384 + $0x14] sm:$0xf]
      %v1391 = vld [vmem:[%s1384 + $0x18] sm:$0xf]
      %v1392 = vld [vmem:[%s1384 + $0x1c] sm:$0xf]
      %v1393 = vld [vmem:[%s1384 + $0x20] sm:$0xf]
      %v1394 = vld [vmem:[%s1384 + $0x24] sm:$0xf]
      %v1395 = vld [vmem:[%s1384 + $0x28] sm:$0xf]
      %v1396 = vld [vmem:[%s1384 + $0x2c] sm:$0xf]
      %v1397 = vld [vmem:[%s1384 + $0x30] sm:$0xf]
      %v1398 = vld [vmem:[%s1384 + $0x34] sm:$0xf]
      %v1399 = vld [vmem:[%s1384 + $0x38] sm:$0xf]
      %v1400 = vld [vmem:[%s1384 + $0x3c] sm:$0xf]
      %v1402 = vunpack.c.l.b16 %v1383
      %v1403 = vpack.c.b16 %v1402, %v1402
      %vm1404 = vsmask.f32 6400
      %v1406 = vshrl.u32 %v1262, 16
      %v1408 = vrot.slane %v1406, 1
      %v1409 = vshll.u32 %v1262, 16
      %v1411 = vrot.slane %v1409, 2
      %v1412 = vor.u32 %v1408, %v1411
      %v1414 = vshrl.u32 %v1263, 16
      %v1416 = vrot.slane %v1414, 1
      %v1417 = vshll.u32 %v1263, 16
      %v1419 = vrot.slane %v1417, 2
      %v1420 = vor.u32 %v1416, %v1419
      %v1421 = vsel %vm1404, %v1412, %v1420
      %v1423 = vshrl.u32 %v1403, 16
      %v1425 = vrot.slane %v1423, 1
      %v1426 = vshll.u32 %v1403, 16
      %v1428 = vrot.slane %v1426, 2
      %v1429 = vor.u32 %v1425, %v1428
      %v1430 = vsel %vm1404, %v1420, %v1429
      %v1450 = vunpack.c.l.b16 %v1385
      %v1451 = vunpack.c.l.b16 %v1386
      %v1452 = vunpack.c.l.b16 %v1387
      %v1453 = vunpack.c.l.b16 %v1388
      %v1454 = vunpack.c.l.b16 %v1389
      %v1455 = vunpack.c.l.b16 %v1390
      %v1456 = vunpack.c.l.b16 %v1391
      %v1457 = vunpack.c.l.b16 %v1392
      %v1458 = vunpack.c.l.b16 %v1393
      %v1459 = vunpack.c.l.b16 %v1394
      %v1460 = vunpack.c.l.b16 %v1395
      %v1461 = vunpack.c.l.b16 %v1396
      %v1462 = vunpack.c.l.b16 %v1397
      %v1463 = vunpack.c.l.b16 %v1398
      %v1464 = vunpack.c.l.b16 %v1399
      %v1465 = vunpack.c.l.b16 %v1400
      %v1466 = vpack.c.b16 %v1451, %v1450
      %v1467 = vpack.c.b16 %v1453, %v1452
      %v1468 = vpack.c.b16 %v1455, %v1454
      %v1469 = vpack.c.b16 %v1457, %v1456
      %v1470 = vpack.c.b16 %v1459, %v1458
      %v1471 = vpack.c.b16 %v1461, %v1460
      %v1472 = vpack.c.b16 %v1463, %v1462
      %v1473 = vpack.c.b16 %v1465, %v1464
      %1482 = vmatprep.subr.bf16.mxu0 0
      %1483 = vmatpush1.bf16.msra.mxu0 %v1473
      %1484 = vmatprep.subr.bf16.mxu0 0
      %1485 = vmatpush1.bf16.msra.mxu0 %v1472
      %1486 = vmatprep.subr.bf16.mxu0 0
      %1487 = vmatpush1.bf16.msra.mxu0 %v1471
      %1488 = vmatprep.subr.bf16.mxu0 0
      %1489 = vmatpush1.bf16.msra.mxu0 %v1470
      %1490 = vmatprep.subr.bf16.mxu0 0
      %1491 = vmatpush1.bf16.msra.mxu0 %v1469
      %1492 = vmatprep.subr.bf16.mxu0 0
      %1493 = vmatpush1.bf16.msra.mxu0 %v1468
      %1494 = vmatprep.subr.bf16.mxu0 0
      %1495 = vmatpush1.bf16.msra.mxu0 %v1467
      %1496 = vmatprep.subr.bf16.mxu0 0
      %1497 = vmatpush1.bf16.msra.mxu0 %v1466
      %1498 = vmatprep.subr.bf16.mxu0 0
      %1499 = vmatpush2.bf16.msra.mxu0 0
      %1500 = vmatprep.subr.bf16.mxu0 0
      %1501 = vmatpush2.bf16.msra.mxu0 0
      %1502 = vmatprep.subr.bf16.mxu0 0
      %1503 = vmatpush2.bf16.msra.mxu0 0
      %1504 = vmatprep.subr.bf16.mxu0 0
      %1505 = vmatpush2.bf16.msra.mxu0 0
      %1506 = vmatprep.subr.bf16.mxu0 0
      %1507 = vmatpush2.bf16.msra.mxu0 0
      %1508 = vmatprep.subr.bf16.mxu0 0
      %1509 = vmatpush2.bf16.msra.mxu0 0
      %1510 = vmatprep.subr.bf16.mxu0 0
      %1511 = vmatpush2.bf16.msra.mxu0 0
      %1512 = vmatprep.subr.bf16.mxu0 0
      %1513 = vmatpush2.bf16.msra.mxu0 0
      %1514 = vmatprep.mubr.bf16.mxu0 0
      %1515 = vmatmul.mubr.bf16.gmra.mxu0 %v1421
      %v1516 = vpop.f32.mrf.mxu0
      %v1517 = vadd.f32 0.0, %v1516
      %v1518 = vpop.f32.mrf.mxu0
      %v1519 = vpop.f32.mrf.mxu0
      %v1520 = vadd.f32 0.0, %v1519
      %v1521 = vpop.f32.mrf.mxu0
      %1522 = vmatprep.mubr.bf16.mxu0 0
      %1523 = vmatmul.mubr.bf16.gmra.mxu0 %v1430
      %v1524 = vpop.f32.mrf.mxu0
      %v1525 = vadd.f32 0.0, %v1524
      %v1526 = vpop.f32.mrf.mxu0
      %v1527 = vpop.f32.mrf.mxu0
      %v1528 = vadd.f32 0.0, %v1527
      %v1529 = vpop.f32.mrf.mxu0
      %1530 = vmatprep.mubr.bf16.mxu0 0
      %1531 = vmatmul.mubr.bf16.gmra.mxu0 %v1429
      %v1532 = vpop.f32.mrf.mxu0
      %v1533 = vadd.f32 0.0, %v1532
      %v1534 = vpop.f32.mrf.mxu0
      %v1535 = vpop.f32.mrf.mxu0
      %v1536 = vpop.f32.mrf.mxu0
      %1537 = vdwg.mxu0
      %v1538 = vadd.f32 %v1378, %v1517
      %v1539 = vadd.f32 %v1379, %v1520
      %v1540 = vadd.f32 %v1380, %v1525
      %v1541 = vadd.f32 %v1381, %v1528
      %v1542 = vadd.f32 %v1382, %v1533
      %v1543 = vld [vmem:[#allocation2] sm:$0xc]
      %s1544 = scalar_lea.vmem %s4, 128
      %v1545 = vld [vmem:[%s1544] sm:$0xf]
      %v1546 = vld [vmem:[%s1544 + $0x4] sm:$0xf]
      %v1547 = vld [vmem:[%s1544 + $0x8] sm:$0xf]
      %v1548 = vld [vmem:[%s1544 + $0xc] sm:$0xf]
      %v1549 = vld [vmem:[%s1544 + $0x10] sm:$0xf]
      %v1550 = vld [vmem:[%s1544 + $0x14] sm:$0xf]
      %v1551 = vld [vmem:[%s1544 + $0x18] sm:$0xf]
      %v1552 = vld [vmem:[%s1544 + $0x1c] sm:$0xf]
      %v1553 = vld [vmem:[%s1544 + $0x20] sm:$0xf]
      %v1554 = vld [vmem:[%s1544 + $0x24] sm:$0xf]
      %v1555 = vld [vmem:[%s1544 + $0x28] sm:$0xf]
      %v1556 = vld [vmem:[%s1544 + $0x2c] sm:$0xf]
      %v1557 = vld [vmem:[%s1544 + $0x30] sm:$0xf]
      %v1558 = vld [vmem:[%s1544 + $0x34] sm:$0xf]
      %v1559 = vld [vmem:[%s1544 + $0x38] sm:$0xf]
      %v1560 = vld [vmem:[%s1544 + $0x3c] sm:$0xf]
      %v1562 = vunpack.c.l.b16 %v1543
      %v1563 = vpack.c.b16 %v1258, %v1562
      %vm1564 = vcmask 1045504
      %v1565 = vrot.slane %v1563, 2
      %v1566 = vrot.slane %v1263, 2
      %v1567 = vsel %vm1564, %v1565, %v1566
      %v1568 = vrot.slane %v1403, 2
      %v1569 = vsel %vm1564, %v1566, %v1568
      %v1589 = vunpack.c.l.b16 %v1545
      %v1590 = vunpack.c.l.b16 %v1546
      %v1591 = vunpack.c.l.b16 %v1547
      %v1592 = vunpack.c.l.b16 %v1548
      %v1593 = vunpack.c.l.b16 %v1549
      %v1594 = vunpack.c.l.b16 %v1550
      %v1595 = vunpack.c.l.b16 %v1551
      %v1596 = vunpack.c.l.b16 %v1552
      %v1597 = vunpack.c.l.b16 %v1553
      %v1598 = vunpack.c.l.b16 %v1554
      %v1599 = vunpack.c.l.b16 %v1555
      %v1600 = vunpack.c.l.b16 %v1556
      %v1601 = vunpack.c.l.b16 %v1557
      %v1602 = vunpack.c.l.b16 %v1558
      %v1603 = vunpack.c.l.b16 %v1559
      %v1604 = vunpack.c.l.b16 %v1560
      %v1605 = vpack.c.b16 %v1590, %v1589
      %v1606 = vpack.c.b16 %v1592, %v1591
      %v1607 = vpack.c.b16 %v1594, %v1593
      %v1608 = vpack.c.b16 %v1596, %v1595
      %v1609 = vpack.c.b16 %v1598, %v1597
      %v1610 = vpack.c.b16 %v1600, %v1599
      %v1611 = vpack.c.b16 %v1602, %v1601
      %v1612 = vpack.c.b16 %v1604, %v1603
      %1621 = vmatprep.subr.bf16.mxu0 0
      %1622 = vmatpush1.bf16.msra.mxu0 %v1612
      %1623 = vmatprep.subr.bf16.mxu0 0
      %1624 = vmatpush1.bf16.msra.mxu0 %v1611
      %1625 = vmatprep.subr.bf16.mxu0 0
      %1626 = vmatpush1.bf16.msra.mxu0 %v1610
      %1627 = vmatprep.subr.bf16.mxu0 0
      %1628 = vmatpush1.bf16.msra.mxu0 %v1609
      %1629 = vmatprep.subr.bf16.mxu0 0
      %1630 = vmatpush1.bf16.msra.mxu0 %v1608
      %1631 = vmatprep.subr.bf16.mxu0 0
      %1632 = vmatpush1.bf16.msra.mxu0 %v1607
      %1633 = vmatprep.subr.bf16.mxu0 0
      %1634 = vmatpush1.bf16.msra.mxu0 %v1606
      %1635 = vmatprep.subr.bf16.mxu0 0
      %1636 = vmatpush1.bf16.msra.mxu0 %v1605
      %1637 = vmatprep.subr.bf16.mxu0 0
      %1638 = vmatpush2.bf16.msra.mxu0 0
      %1639 = vmatprep.subr.bf16.mxu0 0
      %1640 = vmatpush2.bf16.msra.mxu0 0
      %1641 = vmatprep.subr.bf16.mxu0 0
      %1642 = vmatpush2.bf16.msra.mxu0 0
      %1643 = vmatprep.subr.bf16.mxu0 0
      %1644 = vmatpush2.bf16.msra.mxu0 0
      %1645 = vmatprep.subr.bf16.mxu0 0
      %1646 = vmatpush2.bf16.msra.mxu0 0
      %1647 = vmatprep.subr.bf16.mxu0 0
      %1648 = vmatpush2.bf16.msra.mxu0 0
      %1649 = vmatprep.subr.bf16.mxu0 0
      %1650 = vmatpush2.bf16.msra.mxu0 0
      %1651 = vmatprep.subr.bf16.mxu0 0
      %1652 = vmatpush2.bf16.msra.mxu0 0
      %1653 = vmatprep.mubr.bf16.mxu0 0
      %1654 = vmatmul.mubr.bf16.gmra.mxu0 %v1567
      %v1655 = vpop.f32.mrf.mxu0
      %v1656 = vadd.f32 0.0, %v1655
      %v1657 = vpop.f32.mrf.mxu0
      %v1658 = vpop.f32.mrf.mxu0
      %v1659 = vadd.f32 0.0, %v1658
      %v1660 = vpop.f32.mrf.mxu0
      %1661 = vmatprep.mubr.bf16.mxu0 0
      %1662 = vmatmul.mubr.bf16.gmra.mxu0 %v1569
      %v1663 = vpop.f32.mrf.mxu0
      %v1664 = vadd.f32 0.0, %v1663
      %v1665 = vpop.f32.mrf.mxu0
      %v1666 = vpop.f32.mrf.mxu0
      %v1667 = vadd.f32 0.0, %v1666
      %v1668 = vpop.f32.mrf.mxu0
      %1669 = vmatprep.mubr.bf16.mxu0 0
      %1670 = vmatmul.mubr.bf16.gmra.mxu0 %v1568
      %v1671 = vpop.f32.mrf.mxu0
      %v1672 = vadd.f32 0.0, %v1671
      %v1673 = vpop.f32.mrf.mxu0
      %v1674 = vpop.f32.mrf.mxu0
      %v1675 = vpop.f32.mrf.mxu0
      %1676 = vdwg.mxu0
      %v1677 = vadd.f32 %v1538, %v1656
      %v1678 = vadd.f32 %v1539, %v1659
      %v1679 = vadd.f32 %v1540, %v1664
      %v1680 = vadd.f32 %v1541, %v1667
      %v1681 = vadd.f32 %v1542, %v1672
      %v1682 = vld [vmem:[#allocation2] sm:$0x8]
      %v1683 = vld [vmem:[#allocation2 + $0x4] sm:$0xf]
      %v1684 = vld [vmem:[#allocation2 + $0x8] sm:$0xf]
      %v1685 = vld [vmem:[#allocation2 + $0xc] sm:$0xf]
      %v1686 = vld [vmem:[#allocation2 + $0x10] sm:$0xf]
      %v1687 = vld [vmem:[#allocation2 + $0x14] sm:$0x1]
      %s1688 = scalar_lea.vmem %s4, 192
      %v1689 = vld [vmem:[%s1688] sm:$0xf]
      %v1690 = vld [vmem:[%s1688 + $0x4] sm:$0xf]
      %v1691 = vld [vmem:[%s1688 + $0x8] sm:$0xf]
      %v1692 = vld [vmem:[%s1688 + $0xc] sm:$0xf]
      %v1693 = vld [vmem:[%s1688 + $0x10] sm:$0xf]
      %v1694 = vld [vmem:[%s1688 + $0x14] sm:$0xf]
      %v1695 = vld [vmem:[%s1688 + $0x18] sm:$0xf]
      %v1696 = vld [vmem:[%s1688 + $0x1c] sm:$0xf]
      %v1697 = vld [vmem:[%s1688 + $0x20] sm:$0xf]
      %v1698 = vld [vmem:[%s1688 + $0x24] sm:$0xf]
      %v1699 = vld [vmem:[%s1688 + $0x28] sm:$0xf]
      %v1700 = vld [vmem:[%s1688 + $0x2c] sm:$0xf]
      %v1701 = vld [vmem:[%s1688 + $0x30] sm:$0xf]
      %v1702 = vld [vmem:[%s1688 + $0x34] sm:$0xf]
      %v1703 = vld [vmem:[%s1688 + $0x38] sm:$0xf]
      %v1704 = vld [vmem:[%s1688 + $0x3c] sm:$0xf]
      %v1711 = vunpack.c.l.b16 %v1682
      %v1712 = vunpack.c.l.b16 %v1683
      %v1713 = vunpack.c.l.b16 %v1684
      %v1714 = vunpack.c.l.b16 %v1685
      %v1715 = vunpack.c.l.b16 %v1686
      %v1716 = vunpack.c.l.b16 %v1687
      %v1717 = vpack.c.b16 %v1712, %v1711
      %v1718 = vpack.c.b16 %v1714, %v1713
      %v1719 = vpack.c.b16 %v1716, %v1715
      %vm1720 = vsmask.f32 4352
      %v1722 = vshrl.u32 %v1717, 16
      %v1724 = vrot.slane %v1722, 3
      %v1725 = vshll.u32 %v1717, 16
      %v1727 = vrot.slane %v1725, 4
      %v1728 = vor.u32 %v1724, %v1727
      %v1730 = vshrl.u32 %v1718, 16
      %v1732 = vrot.slane %v1730, 3
      %v1733 = vshll.u32 %v1718, 16
      %v1735 = vrot.slane %v1733, 4
      %v1736 = vor.u32 %v1732, %v1735
      %v1737 = vsel %vm1720, %v1728, %v1736
      %v1739 = vshrl.u32 %v1719, 16
      %v1741 = vrot.slane %v1739, 3
      %v1742 = vshll.u32 %v1719, 16
      %v1744 = vrot.slane %v1742, 4
      %v1745 = vor.u32 %v1741, %v1744
      %v1746 = vsel %vm1720, %v1736, %v1745
      %v1766 = vunpack.c.l.b16 %v1689
      %v1767 = vunpack.c.l.b16 %v1690
      %v1768 = vunpack.c.l.b16 %v1691
      %v1769 = vunpack.c.l.b16 %v1692
      %v1770 = vunpack.c.l.b16 %v1693
      %v1771 = vunpack.c.l.b16 %v1694
      %v1772 = vunpack.c.l.b16 %v1695
      %v1773 = vunpack.c.l.b16 %v1696
      %v1774 = vunpack.c.l.b16 %v1697
      %v1775 = vunpack.c.l.b16 %v1698
      %v1776 = vunpack.c.l.b16 %v1699
      %v1777 = vunpack.c.l.b16 %v1700
      %v1778 = vunpack.c.l.b16 %v1701
      %v1779 = vunpack.c.l.b16 %v1702
      %v1780 = vunpack.c.l.b16 %v1703
      %v1781 = vunpack.c.l.b16 %v1704
      %v1782 = vpack.c.b16 %v1767, %v1766
      %v1783 = vpack.c.b16 %v1769, %v1768
      %v1784 = vpack.c.b16 %v1771, %v1770
      %v1785 = vpack.c.b16 %v1773, %v1772
      %v1786 = vpack.c.b16 %v1775, %v1774
      %v1787 = vpack.c.b16 %v1777, %v1776
      %v1788 = vpack.c.b16 %v1779, %v1778
      %v1789 = vpack.c.b16 %v1781, %v1780
      %1798 = vmatprep.subr.bf16.mxu0 0
      %1799 = vmatpush1.bf16.msra.mxu0 %v1789
      %1800 = vmatprep.subr.bf16.mxu0 0
      %1801 = vmatpush1.bf16.msra.mxu0 %v1788
      %1802 = vmatprep.subr.bf16.mxu0 0
      %1803 = vmatpush1.bf16.msra.mxu0 %v1787
      %1804 = vmatprep.subr.bf16.mxu0 0
      %1805 = vmatpush1.bf16.msra.mxu0 %v1786
      %1806 = vmatprep.subr.bf16.mxu0 0
      %1807 = vmatpush1.bf16.msra.mxu0 %v1785
      %1808 = vmatprep.subr.bf16.mxu0 0
      %1809 = vmatpush1.bf16.msra.mxu0 %v1784
      %1810 = vmatprep.subr.bf16.mxu0 0
      %1811 = vmatpush1.bf16.msra.mxu0 %v1783
      %1812 = vmatprep.subr.bf16.mxu0 0
      %1813 = vmatpush1.bf16.msra.mxu0 %v1782
      %1814 = vmatprep.subr.bf16.mxu0 0
      %1815 = vmatpush2.bf16.msra.mxu0 0
      %1816 = vmatprep.subr.bf16.mxu0 0
      %1817 = vmatpush2.bf16.msra.mxu0 0
      %1818 = vmatprep.subr.bf16.mxu0 0
      %1819 = vmatpush2.bf16.msra.mxu0 0
      %1820 = vmatprep.subr.bf16.mxu0 0
      %1821 = vmatpush2.bf16.msra.mxu0 0
      %1822 = vmatprep.subr.bf16.mxu0 0
      %1823 = vmatpush2.bf16.msra.mxu0 0
      %1824 = vmatprep.subr.bf16.mxu0 0
      %1825 = vmatpush2.bf16.msra.mxu0 0
      %1826 = vmatprep.subr.bf16.mxu0 0
      %1827 = vmatpush2.bf16.msra.mxu0 0
      %1828 = vmatprep.subr.bf16.mxu0 0
      %1829 = vmatpush2.bf16.msra.mxu0 0
      %1830 = vmatprep.mubr.bf16.mxu0 0
      %1831 = vmatmul.mubr.bf16.gmra.mxu0 %v1737
      %v1832 = vpop.f32.mrf.mxu0
      %v1833 = vadd.f32 0.0, %v1832
      %v1834 = vpop.f32.mrf.mxu0
      %v1835 = vpop.f32.mrf.mxu0
      %v1836 = vadd.f32 0.0, %v1835
      %v1837 = vpop.f32.mrf.mxu0
      %1838 = vmatprep.mubr.bf16.mxu0 0
      %1839 = vmatmul.mubr.bf16.gmra.mxu0 %v1746
      %v1840 = vpop.f32.mrf.mxu0
      %v1841 = vadd.f32 0.0, %v1840
      %v1842 = vpop.f32.mrf.mxu0
      %v1843 = vpop.f32.mrf.mxu0
      %v1844 = vadd.f32 0.0, %v1843
      %v1845 = vpop.f32.mrf.mxu0
      %1846 = vmatprep.mubr.bf16.mxu0 0
      %1847 = vmatmul.mubr.bf16.gmra.mxu0 %v1745
      %v1848 = vpop.f32.mrf.mxu0
      %v1849 = vadd.f32 0.0, %v1848
      %v1850 = vpop.f32.mrf.mxu0
      %v1851 = vpop.f32.mrf.mxu0
      %v1852 = vpop.f32.mrf.mxu0
      %1853 = vdwg.mxu0
      %v1854 = vadd.f32 %v1677, %v1833
      %v1855 = vadd.f32 %v1678, %v1836
      %v1856 = vadd.f32 %v1679, %v1841
      %v1857 = vadd.f32 %v1680, %v1844
      %v1858 = vadd.f32 %v1681, %v1849
      %s1859 = scalar_lea.vmem %s4, 256
      %v1860 = vld [vmem:[%s1859] sm:$0xf]
      %v1861 = vld [vmem:[%s1859 + $0x4] sm:$0xf]
      %v1862 = vld [vmem:[%s1859 + $0x8] sm:$0xf]
      %v1863 = vld [vmem:[%s1859 + $0xc] sm:$0xf]
      %v1864 = vld [vmem:[%s1859 + $0x10] sm:$0xf]
      %v1865 = vld [vmem:[%s1859 + $0x14] sm:$0xf]
      %v1866 = vld [vmem:[%s1859 + $0x18] sm:$0xf]
      %v1867 = vld [vmem:[%s1859 + $0x1c] sm:$0xf]
      %v1868 = vld [vmem:[%s1859 + $0x20] sm:$0xf]
      %v1869 = vld [vmem:[%s1859 + $0x24] sm:$0xf]
      %v1870 = vld [vmem:[%s1859 + $0x28] sm:$0xf]
      %v1871 = vld [vmem:[%s1859 + $0x2c] sm:$0xf]
      %v1872 = vld [vmem:[%s1859 + $0x30] sm:$0xf]
      %v1873 = vld [vmem:[%s1859 + $0x34] sm:$0xf]
      %v1874 = vld [vmem:[%s1859 + $0x38] sm:$0xf]
      %v1875 = vld [vmem:[%s1859 + $0x3c] sm:$0xf]
      %v1876 = vpack.c.b16 %v1713, %v1712
      %v1877 = vpack.c.b16 %v1715, %v1714
      %v1878 = vpack.c.b16 %v1716, %v1716
      %v1898 = vunpack.c.l.b16 %v1860
      %v1899 = vunpack.c.l.b16 %v1861
      %v1900 = vunpack.c.l.b16 %v1862
      %v1901 = vunpack.c.l.b16 %v1863
      %v1902 = vunpack.c.l.b16 %v1864
      %v1903 = vunpack.c.l.b16 %v1865
      %v1904 = vunpack.c.l.b16 %v1866
      %v1905 = vunpack.c.l.b16 %v1867
      %v1906 = vunpack.c.l.b16 %v1868
      %v1907 = vunpack.c.l.b16 %v1869
      %v1908 = vunpack.c.l.b16 %v1870
      %v1909 = vunpack.c.l.b16 %v1871
      %v1910 = vunpack.c.l.b16 %v1872
      %v1911 = vunpack.c.l.b16 %v1873
      %v1912 = vunpack.c.l.b16 %v1874
      %v1913 = vunpack.c.l.b16 %v1875
      %v1914 = vpack.c.b16 %v1899, %v1898
      %v1915 = vpack.c.b16 %v1901, %v1900
      %v1916 = vpack.c.b16 %v1903, %v1902
      %v1917 = vpack.c.b16 %v1905, %v1904
      %v1918 = vpack.c.b16 %v1907, %v1906
      %v1919 = vpack.c.b16 %v1909, %v1908
      %v1920 = vpack.c.b16 %v1911, %v1910
      %v1921 = vpack.c.b16 %v1913, %v1912
      %1930 = vmatprep.subr.bf16.mxu0 0
      %1931 = vmatpush1.bf16.msra.mxu0 %v1921
      %1932 = vmatprep.subr.bf16.mxu0 0
      %1933 = vmatpush1.bf16.msra.mxu0 %v1920
      %1934 = vmatprep.subr.bf16.mxu0 0
      %1935 = vmatpush1.bf16.msra.mxu0 %v1919
      %1936 = vmatprep.subr.bf16.mxu0 0
      %1937 = vmatpush1.bf16.msra.mxu0 %v1918
      %1938 = vmatprep.subr.bf16.mxu0 0
      %1939 = vmatpush1.bf16.msra.mxu0 %v1917
      %1940 = vmatprep.subr.bf16.mxu0 0
      %1941 = vmatpush1.bf16.msra.mxu0 %v1916
      %1942 = vmatprep.subr.bf16.mxu0 0
      %1943 = vmatpush1.bf16.msra.mxu0 %v1915
      %1944 = vmatprep.subr.bf16.mxu0 0
      %1945 = vmatpush1.bf16.msra.mxu0 %v1914
      %1946 = vmatprep.subr.bf16.mxu0 0
      %1947 = vmatpush2.bf16.msra.mxu0 0
      %1948 = vmatprep.subr.bf16.mxu0 0
      %1949 = vmatpush2.bf16.msra.mxu0 0
      %1950 = vmatprep.subr.bf16.mxu0 0
      %1951 = vmatpush2.bf16.msra.mxu0 0
      %1952 = vmatprep.subr.bf16.mxu0 0
      %1953 = vmatpush2.bf16.msra.mxu0 0
      %1954 = vmatprep.subr.bf16.mxu0 0
      %1955 = vmatpush2.bf16.msra.mxu0 0
      %1956 = vmatprep.subr.bf16.mxu0 0
      %1957 = vmatpush2.bf16.msra.mxu0 0
      %1958 = vmatprep.subr.bf16.mxu0 0
      %1959 = vmatpush2.bf16.msra.mxu0 0
      %1960 = vmatprep.subr.bf16.mxu0 0
      %1961 = vmatpush2.bf16.msra.mxu0 0
      %1962 = vmatprep.mubr.bf16.mxu0 0
      %1963 = vmatmul.mubr.bf16.gmra.mxu0 %v1876
      %v1964 = vpop.f32.mrf.mxu0
      %v1965 = vadd.f32 0.0, %v1964
      %v1966 = vpop.f32.mrf.mxu0
      %v1967 = vpop.f32.mrf.mxu0
      %v1968 = vadd.f32 0.0, %v1967
      %v1969 = vpop.f32.mrf.mxu0
      %1970 = vmatprep.mubr.bf16.mxu0 0
      %1971 = vmatmul.mubr.bf16.gmra.mxu0 %v1877
      %v1972 = vpop.f32.mrf.mxu0
      %v1973 = vadd.f32 0.0, %v1972
      %v1974 = vpop.f32.mrf.mxu0
      %v1975 = vpop.f32.mrf.mxu0
      %v1976 = vadd.f32 0.0, %v1975
      %v1977 = vpop.f32.mrf.mxu0
      %1978 = vmatprep.mubr.bf16.mxu0 0
      %1979 = vmatmul.mubr.bf16.gmra.mxu0 %v1878
      %v1980 = vpop.f32.mrf.mxu0
      %v1981 = vadd.f32 0.0, %v1980
      %v1982 = vpop.f32.mrf.mxu0
      %v1983 = vpop.f32.mrf.mxu0
      %v1984 = vpop.f32.mrf.mxu0
      %1985 = vdwg.mxu0
      %v1986 = vadd.f32 %v1854, %v1965
      %v1987 = vadd.f32 %v1855, %v1968
      %v1988 = vadd.f32 %v1856, %v1973
      %v1989 = vadd.f32 %v1857, %v1976
      %v1990 = vadd.f32 %v1858, %v1981
      %v1991 = vld [vmem:[#allocation2 + $0x14] sm:$0x3]
      %s1992 = scalar_lea.vmem %s4, 320
      %v1993 = vld [vmem:[%s1992] sm:$0xf]
      %v1994 = vld [vmem:[%s1992 + $0x4] sm:$0xf]
      %v1995 = vld [vmem:[%s1992 + $0x8] sm:$0xf]
      %v1996 = vld [vmem:[%s1992 + $0xc] sm:$0xf]
      %v1997 = vld [vmem:[%s1992 + $0x10] sm:$0xf]
      %v1998 = vld [vmem:[%s1992 + $0x14] sm:$0xf]
      %v1999 = vld [vmem:[%s1992 + $0x18] sm:$0xf]
      %v2000 = vld [vmem:[%s1992 + $0x1c] sm:$0xf]
      %v2001 = vld [vmem:[%s1992 + $0x20] sm:$0xf]
      %v2002 = vld [vmem:[%s1992 + $0x24] sm:$0xf]
      %v2003 = vld [vmem:[%s1992 + $0x28] sm:$0xf]
      %v2004 = vld [vmem:[%s1992 + $0x2c] sm:$0xf]
      %v2005 = vld [vmem:[%s1992 + $0x30] sm:$0xf]
      %v2006 = vld [vmem:[%s1992 + $0x34] sm:$0xf]
      %v2007 = vld [vmem:[%s1992 + $0x38] sm:$0xf]
      %v2008 = vld [vmem:[%s1992 + $0x3c] sm:$0xf]
      %v2010 = vunpack.c.l.b16 %v1991
      %v2011 = vpack.c.b16 %v2010, %v2010
      %v2013 = vshrl.u32 %v1876, 16
      %v2015 = vshll.u32 %v1876, 16
      %v2017 = vrot.slane %v2015, 1
      %v2018 = vor.u32 %v2013, %v2017
      %v2020 = vshll.u32 %v1877, 16
      %v2022 = vrot.slane %v2020, 1
      %v2023 = vsel %vm422, %v2018, %v2022
      %v2024 = vshrl.u32 %v1877, 16
      %v2026 = vor.u32 %v2024, %v2022
      %v2028 = vshll.u32 %v2011, 16
      %v2030 = vrot.slane %v2028, 1
      %v2031 = vsel %vm422, %v2026, %v2030
      %v2032 = vshrl.u32 %v2011, 16
      %v2034 = vor.u32 %v2032, %v2030
      %v2054 = vunpack.c.l.b16 %v1993
      %v2055 = vunpack.c.l.b16 %v1994
      %v2056 = vunpack.c.l.b16 %v1995
      %v2057 = vunpack.c.l.b16 %v1996
      %v2058 = vunpack.c.l.b16 %v1997
      %v2059 = vunpack.c.l.b16 %v1998
      %v2060 = vunpack.c.l.b16 %v1999
      %v2061 = vunpack.c.l.b16 %v2000
      %v2062 = vunpack.c.l.b16 %v2001
      %v2063 = vunpack.c.l.b16 %v2002
      %v2064 = vunpack.c.l.b16 %v2003
      %v2065 = vunpack.c.l.b16 %v2004
      %v2066 = vunpack.c.l.b16 %v2005
      %v2067 = vunpack.c.l.b16 %v2006
      %v2068 = vunpack.c.l.b16 %v2007
      %v2069 = vunpack.c.l.b16 %v2008
      %v2070 = vpack.c.b16 %v2055, %v2054
      %v2071 = vpack.c.b16 %v2057, %v2056
      %v2072 = vpack.c.b16 %v2059, %v2058
      %v2073 = vpack.c.b16 %v2061, %v2060
      %v2074 = vpack.c.b16 %v2063, %v2062
      %v2075 = vpack.c.b16 %v2065, %v2064
      %v2076 = vpack.c.b16 %v2067, %v2066
      %v2077 = vpack.c.b16 %v2069, %v2068
      %2086 = vmatprep.subr.bf16.mxu0 0
      %2087 = vmatpush1.bf16.msra.mxu0 %v2077
      %2088 = vmatprep.subr.bf16.mxu0 0
      %2089 = vmatpush1.bf16.msra.mxu0 %v2076
      %2090 = vmatprep.subr.bf16.mxu0 0
      %2091 = vmatpush1.bf16.msra.mxu0 %v2075
      %2092 = vmatprep.subr.bf16.mxu0 0
      %2093 = vmatpush1.bf16.msra.mxu0 %v2074
      %2094 = vmatprep.subr.bf16.mxu0 0
      %2095 = vmatpush1.bf16.msra.mxu0 %v2073
      %2096 = vmatprep.subr.bf16.mxu0 0
      %2097 = vmatpush1.bf16.msra.mxu0 %v2072
      %2098 = vmatprep.subr.bf16.mxu0 0
      %2099 = vmatpush1.bf16.msra.mxu0 %v2071
      %2100 = vmatprep.subr.bf16.mxu0 0
      %2101 = vmatpush1.bf16.msra.mxu0 %v2070
      %2102 = vmatprep.subr.bf16.mxu0 0
      %2103 = vmatpush2.bf16.msra.mxu0 0
      %2104 = vmatprep.subr.bf16.mxu0 0
      %2105 = vmatpush2.bf16.msra.mxu0 0
      %2106 = vmatprep.subr.bf16.mxu0 0
      %2107 = vmatpush2.bf16.msra.mxu0 0
      %2108 = vmatprep.subr.bf16.mxu0 0
      %2109 = vmatpush2.bf16.msra.mxu0 0
      %2110 = vmatprep.subr.bf16.mxu0 0
      %2111 = vmatpush2.bf16.msra.mxu0 0
      %2112 = vmatprep.subr.bf16.mxu0 0
      %2113 = vmatpush2.bf16.msra.mxu0 0
      %2114 = vmatprep.subr.bf16.mxu0 0
      %2115 = vmatpush2.bf16.msra.mxu0 0
      %2116 = vmatprep.subr.bf16.mxu0 0
      %2117 = vmatpush2.bf16.msra.mxu0 0
      %2118 = vmatprep.mubr.bf16.mxu0 0
      %2119 = vmatmul.mubr.bf16.gmra.mxu0 %v2023
      %v2120 = vpop.f32.mrf.mxu0
      %v2121 = vadd.f32 0.0, %v2120
      %v2122 = vpop.f32.mrf.mxu0
      %v2123 = vpop.f32.mrf.mxu0
      %v2124 = vadd.f32 0.0, %v2123
      %v2125 = vpop.f32.mrf.mxu0
      %2126 = vmatprep.mubr.bf16.mxu0 0
      %2127 = vmatmul.mubr.bf16.gmra.mxu0 %v2031
      %v2128 = vpop.f32.mrf.mxu0
      %v2129 = vadd.f32 0.0, %v2128
      %v2130 = vpop.f32.mrf.mxu0
      %v2131 = vpop.f32.mrf.mxu0
      %v2132 = vadd.f32 0.0, %v2131
      %v2133 = vpop.f32.mrf.mxu0
      %2134 = vmatprep.mubr.bf16.mxu0 0
      %2135 = vmatmul.mubr.bf16.gmra.mxu0 %v2034
      %v2136 = vpop.f32.mrf.mxu0
      %v2137 = vadd.f32 0.0, %v2136
      %v2138 = vpop.f32.mrf.mxu0
      %v2139 = vpop.f32.mrf.mxu0
      %v2140 = vpop.f32.mrf.mxu0
      %2141 = vdwg.mxu0
      %v2142 = vadd.f32 %v1986, %v2121
      %v2143 = vadd.f32 %v1987, %v2124
      %v2144 = vadd.f32 %v1988, %v2129
      %v2145 = vadd.f32 %v1989, %v2132
      %v2146 = vadd.f32 %v1990, %v2137
      %v2147 = vld [vmem:[#allocation2 + $0x4] sm:$0xc]
      %v2148 = vld [vmem:[#allocation2 + $0x14] sm:$0x7]
      %s2149 = scalar_lea.vmem %s4, 384
      %v2150 = vld [vmem:[%s2149] sm:$0xf]
      %v2151 = vld [vmem:[%s2149 + $0x4] sm:$0xf]
      %v2152 = vld [vmem:[%s2149 + $0x8] sm:$0xf]
      %v2153 = vld [vmem:[%s2149 + $0xc] sm:$0xf]
      %v2154 = vld [vmem:[%s2149 + $0x10] sm:$0xf]
      %v2155 = vld [vmem:[%s2149 + $0x14] sm:$0xf]
      %v2156 = vld [vmem:[%s2149 + $0x18] sm:$0xf]
      %v2157 = vld [vmem:[%s2149 + $0x1c] sm:$0xf]
      %v2158 = vld [vmem:[%s2149 + $0x20] sm:$0xf]
      %v2159 = vld [vmem:[%s2149 + $0x24] sm:$0xf]
      %v2160 = vld [vmem:[%s2149 + $0x28] sm:$0xf]
      %v2161 = vld [vmem:[%s2149 + $0x2c] sm:$0xf]
      %v2162 = vld [vmem:[%s2149 + $0x30] sm:$0xf]
      %v2163 = vld [vmem:[%s2149 + $0x34] sm:$0xf]
      %v2164 = vld [vmem:[%s2149 + $0x38] sm:$0xf]
      %v2165 = vld [vmem:[%s2149 + $0x3c] sm:$0xf]
      %v2168 = vunpack.c.l.b16 %v2147
      %v2169 = vunpack.c.l.b16 %v2148
      %v2170 = vpack.c.b16 %v1713, %v2168
      %v2171 = vpack.c.b16 %v2169, %v2169
      %v2172 = vrot.slane %v2170, 2
      %v2173 = vrot.slane %v1877, 2
      %v2174 = vsel %vm1564, %v2172, %v2173
      %v2175 = vrot.slane %v2171, 2
      %v2176 = vsel %vm1564, %v2173, %v2175
      %v2196 = vunpack.c.l.b16 %v2150
      %v2197 = vunpack.c.l.b16 %v2151
      %v2198 = vunpack.c.l.b16 %v2152
      %v2199 = vunpack.c.l.b16 %v2153
      %v2200 = vunpack.c.l.b16 %v2154
      %v2201 = vunpack.c.l.b16 %v2155
      %v2202 = vunpack.c.l.b16 %v2156
      %v2203 = vunpack.c.l.b16 %v2157
      %v2204 = vunpack.c.l.b16 %v2158
      %v2205 = vunpack.c.l.b16 %v2159
      %v2206 = vunpack.c.l.b16 %v2160
      %v2207 = vunpack.c.l.b16 %v2161
      %v2208 = vunpack.c.l.b16 %v2162
      %v2209 = vunpack.c.l.b16 %v2163
      %v2210 = vunpack.c.l.b16 %v2164
      %v2211 = vunpack.c.l.b16 %v2165
      %v2212 = vpack.c.b16 %v2197, %v2196
      %v2213 = vpack.c.b16 %v2199, %v2198
      %v2214 = vpack.c.b16 %v2201, %v2200
      %v2215 = vpack.c.b16 %v2203, %v2202
      %v2216 = vpack.c.b16 %v2205, %v2204
      %v2217 = vpack.c.b16 %v2207, %v2206
      %v2218 = vpack.c.b16 %v2209, %v2208
      %v2219 = vpack.c.b16 %v2211, %v2210
      %2228 = vmatprep.subr.bf16.mxu0 0
      %2229 = vmatpush1.bf16.msra.mxu0 %v2219
      %2230 = vmatprep.subr.bf16.mxu0 0
      %2231 = vmatpush1.bf16.msra.mxu0 %v2218
      %2232 = vmatprep.subr.bf16.mxu0 0
      %2233 = vmatpush1.bf16.msra.mxu0 %v2217
      %2234 = vmatprep.subr.bf16.mxu0 0
      %2235 = vmatpush1.bf16.msra.mxu0 %v2216
      %2236 = vmatprep.subr.bf16.mxu0 0
      %2237 = vmatpush1.bf16.msra.mxu0 %v2215
      %2238 = vmatprep.subr.bf16.mxu0 0
      %2239 = vmatpush1.bf16.msra.mxu0 %v2214
      %2240 = vmatprep.subr.bf16.mxu0 0
      %2241 = vmatpush1.bf16.msra.mxu0 %v2213
      %2242 = vmatprep.subr.bf16.mxu0 0
      %2243 = vmatpush1.bf16.msra.mxu0 %v2212
      %2244 = vmatprep.subr.bf16.mxu0 0
      %2245 = vmatpush2.bf16.msra.mxu0 0
      %2246 = vmatprep.subr.bf16.mxu0 0
      %2247 = vmatpush2.bf16.msra.mxu0 0
      %2248 = vmatprep.subr.bf16.mxu0 0
      %2249 = vmatpush2.bf16.msra.mxu0 0
      %2250 = vmatprep.subr.bf16.mxu0 0
      %2251 = vmatpush2.bf16.msra.mxu0 0
      %2252 = vmatprep.subr.bf16.mxu0 0
      %2253 = vmatpush2.bf16.msra.mxu0 0
      %2254 = vmatprep.subr.bf16.mxu0 0
      %2255 = vmatpush2.bf16.msra.mxu0 0
      %2256 = vmatprep.subr.bf16.mxu0 0
      %2257 = vmatpush2.bf16.msra.mxu0 0
      %2258 = vmatprep.subr.bf16.mxu0 0
      %2259 = vmatpush2.bf16.msra.mxu0 0
      %2260 = vmatprep.mubr.bf16.mxu0 0
      %2261 = vmatmul.mubr.bf16.gmra.mxu0 %v2174
      %v2262 = vpop.f32.mrf.mxu0
      %v2263 = vadd.f32 0.0, %v2262
      %v2264 = vpop.f32.mrf.mxu0
      %v2265 = vpop.f32.mrf.mxu0
      %v2266 = vadd.f32 0.0, %v2265
      %v2267 = vpop.f32.mrf.mxu0
      %2268 = vmatprep.mubr.bf16.mxu0 0
      %2269 = vmatmul.mubr.bf16.gmra.mxu0 %v2176
      %v2270 = vpop.f32.mrf.mxu0
      %v2271 = vadd.f32 0.0, %v2270
      %v2272 = vpop.f32.mrf.mxu0
      %v2273 = vpop.f32.mrf.mxu0
      %v2274 = vadd.f32 0.0, %v2273
      %v2275 = vpop.f32.mrf.mxu0
      %2276 = vmatprep.mubr.bf16.mxu0 0
      %2277 = vmatmul.mubr.bf16.gmra.mxu0 %v2175
      %v2278 = vpop.f32.mrf.mxu0
      %v2279 = vadd.f32 0.0, %v2278
      %v2280 = vpop.f32.mrf.mxu0
      %v2281 = vpop.f32.mrf.mxu0
      %v2282 = vpop.f32.mrf.mxu0
      %2283 = vdwg.mxu0
      %v2284 = vadd.f32 %v2142, %v2263
      %v2285 = vadd.f32 %v2143, %v2266
      %v2286 = vadd.f32 %v2144, %v2271
      %v2287 = vadd.f32 %v2145, %v2274
      %v2288 = vadd.f32 %v2146, %v2279
      %v2289 = vld [vmem:[#allocation2 + $0x14] sm:$0xf]
      %s2290 = scalar_lea.vmem %s4, 448
      %v2291 = vld [vmem:[%s2290] sm:$0xf]
      %v2292 = vld [vmem:[%s2290 + $0x4] sm:$0xf]
      %v2293 = vld [vmem:[%s2290 + $0x8] sm:$0xf]
      %v2294 = vld [vmem:[%s2290 + $0xc] sm:$0xf]
      %v2295 = vld [vmem:[%s2290 + $0x10] sm:$0xf]
      %v2296 = vld [vmem:[%s2290 + $0x14] sm:$0xf]
      %v2297 = vld [vmem:[%s2290 + $0x18] sm:$0xf]
      %v2298 = vld [vmem:[%s2290 + $0x1c] sm:$0xf]
      %v2299 = vld [vmem:[%s2290 + $0x20] sm:$0xf]
      %v2300 = vld [vmem:[%s2290 + $0x24] sm:$0xf]
      %v2301 = vld [vmem:[%s2290 + $0x28] sm:$0xf]
      %v2302 = vld [vmem:[%s2290 + $0x2c] sm:$0xf]
      %v2303 = vld [vmem:[%s2290 + $0x30] sm:$0xf]
      %v2304 = vld [vmem:[%s2290 + $0x34] sm:$0xf]
      %v2305 = vld [vmem:[%s2290 + $0x38] sm:$0xf]
      %v2306 = vld [vmem:[%s2290 + $0x3c] sm:$0xf]
      %v2308 = vunpack.c.l.b16 %v2289
      %v2309 = vpack.c.b16 %v2308, %v2308
      %v2311 = vshrl.u32 %v2170, 16
      %v2313 = vrot.slane %v2311, 2
      %v2314 = vshll.u32 %v2170, 16
      %v2316 = vrot.slane %v2314, 3
      %v2317 = vor.u32 %v2313, %v2316
      %v2318 = vrot.slane %v2024, 2
      %v2319 = vrot.slane %v2020, 3
      %v2320 = vor.u32 %v2318, %v2319
      %v2321 = vsel %vm746, %v2317, %v2320
      %v2323 = vshrl.u32 %v2309, 16
      %v2325 = vrot.slane %v2323, 2
      %v2326 = vshll.u32 %v2309, 16
      %v2328 = vrot.slane %v2326, 3
      %v2329 = vor.u32 %v2325, %v2328
      %v2330 = vsel %vm746, %v2320, %v2329
      %v2350 = vunpack.c.l.b16 %v2291
      %v2351 = vunpack.c.l.b16 %v2292
      %v2352 = vunpack.c.l.b16 %v2293
      %v2353 = vunpack.c.l.b16 %v2294
      %v2354 = vunpack.c.l.b16 %v2295
      %v2355 = vunpack.c.l.b16 %v2296
      %v2356 = vunpack.c.l.b16 %v2297
      %v2357 = vunpack.c.l.b16 %v2298
      %v2358 = vunpack.c.l.b16 %v2299
      %v2359 = vunpack.c.l.b16 %v2300
      %v2360 = vunpack.c.l.b16 %v2301
      %v2361 = vunpack.c.l.b16 %v2302
      %v2362 = vunpack.c.l.b16 %v2303
      %v2363 = vunpack.c.l.b16 %v2304
      %v2364 = vunpack.c.l.b16 %v2305
      %v2365 = vunpack.c.l.b16 %v2306
      %v2366 = vpack.c.b16 %v2351, %v2350
      %v2367 = vpack.c.b16 %v2353, %v2352
      %v2368 = vpack.c.b16 %v2355, %v2354
      %v2369 = vpack.c.b16 %v2357, %v2356
      %v2370 = vpack.c.b16 %v2359, %v2358
      %v2371 = vpack.c.b16 %v2361, %v2360
      %v2372 = vpack.c.b16 %v2363, %v2362
      %v2373 = vpack.c.b16 %v2365, %v2364
      %2382 = vmatprep.subr.bf16.mxu0 0
      %2383 = vmatpush1.bf16.msra.mxu0 %v2373
      %2384 = vmatprep.subr.bf16.mxu0 0
      %2385 = vmatpush1.bf16.msra.mxu0 %v2372
      %2386 = vmatprep.subr.bf16.mxu0 0
      %2387 = vmatpush1.bf16.msra.mxu0 %v2371
      %2388 = vmatprep.subr.bf16.mxu0 0
      %2389 = vmatpush1.bf16.msra.mxu0 %v2370
      %2390 = vmatprep.subr.bf16.mxu0 0
      %2391 = vmatpush1.bf16.msra.mxu0 %v2369
      %2392 = vmatprep.subr.bf16.mxu0 0
      %2393 = vmatpush1.bf16.msra.mxu0 %v2368
      %2394 = vmatprep.subr.bf16.mxu0 0
      %2395 = vmatpush1.bf16.msra.mxu0 %v2367
      %2396 = vmatprep.subr.bf16.mxu0 0
      %2397 = vmatpush1.bf16.msra.mxu0 %v2366
      %2398 = vmatprep.subr.bf16.mxu0 0
      %2399 = vmatpush2.bf16.msra.mxu0 0
      %2400 = vmatprep.subr.bf16.mxu0 0
      %2401 = vmatpush2.bf16.msra.mxu0 0
      %2402 = vmatprep.subr.bf16.mxu0 0
      %2403 = vmatpush2.bf16.msra.mxu0 0
      %2404 = vmatprep.subr.bf16.mxu0 0
      %2405 = vmatpush2.bf16.msra.mxu0 0
      %2406 = vmatprep.subr.bf16.mxu0 0
      %2407 = vmatpush2.bf16.msra.mxu0 0
      %2408 = vmatprep.subr.bf16.mxu0 0
      %2409 = vmatpush2.bf16.msra.mxu0 0
      %2410 = vmatprep.subr.bf16.mxu0 0
      %2411 = vmatpush2.bf16.msra.mxu0 0
      %2412 = vmatprep.subr.bf16.mxu0 0
      %2413 = vmatpush2.bf16.msra.mxu0 0
      %2414 = vmatprep.mubr.bf16.mxu0 0
      %2415 = vmatmul.mubr.bf16.gmra.mxu0 %v2321
      %v2416 = vpop.f32.mrf.mxu0
      %v2417 = vadd.f32 0.0, %v2416
      %v2418 = vpop.f32.mrf.mxu0
      %v2419 = vpop.f32.mrf.mxu0
      %v2420 = vadd.f32 0.0, %v2419
      %v2421 = vpop.f32.mrf.mxu0
      %2422 = vmatprep.mubr.bf16.mxu0 0
      %2423 = vmatmul.mubr.bf16.gmra.mxu0 %v2330
      %v2424 = vpop.f32.mrf.mxu0
      %v2425 = vadd.f32 0.0, %v2424
      %v2426 = vpop.f32.mrf.mxu0
      %v2427 = vpop.f32.mrf.mxu0
      %v2428 = vadd.f32 0.0, %v2427
      %v2429 = vpop.f32.mrf.mxu0
      %2430 = vmatprep.mubr.bf16.mxu0 0
      %2431 = vmatmul.mubr.bf16.gmra.mxu0 %v2329
      %v2432 = vpop.f32.mrf.mxu0
      %v2433 = vadd.f32 0.0, %v2432
      %v2434 = vpop.f32.mrf.mxu0
      %v2435 = vpop.f32.mrf.mxu0
      %v2436 = vpop.f32.mrf.mxu0
      %2437 = vdwg.mxu0
      %v2438 = vadd.f32 %v2284, %v2417
      %v2439 = vadd.f32 %v2285, %v2420
      %v2440 = vadd.f32 %v2286, %v2425
      %v2441 = vadd.f32 %v2287, %v2428
      %v2442 = vadd.f32 %v2288, %v2433
      %v2443 = vld [vmem:[#allocation2 + $0x4] sm:$0x8]
      %s2444 = scalar_lea.vmem %s4, 512
      %v2445 = vld [vmem:[%s2444] sm:$0xf]
      %v2446 = vld [vmem:[%s2444 + $0x4] sm:$0xf]
      %v2447 = vld [vmem:[%s2444 + $0x8] sm:$0xf]
      %v2448 = vld [vmem:[%s2444 + $0xc] sm:$0xf]
      %v2449 = vld [vmem:[%s2444 + $0x10] sm:$0xf]
      %v2450 = vld [vmem:[%s2444 + $0x14] sm:$0xf]
      %v2451 = vld [vmem:[%s2444 + $0x18] sm:$0xf]
      %v2452 = vld [vmem:[%s2444 + $0x1c] sm:$0xf]
      %v2453 = vld [vmem:[%s2444 + $0x20] sm:$0xf]
      %v2454 = vld [vmem:[%s2444 + $0x24] sm:$0xf]
      %v2455 = vld [vmem:[%s2444 + $0x28] sm:$0xf]
      %v2456 = vld [vmem:[%s2444 + $0x2c] sm:$0xf]
      %v2457 = vld [vmem:[%s2444 + $0x30] sm:$0xf]
      %v2458 = vld [vmem:[%s2444 + $0x34] sm:$0xf]
      %v2459 = vld [vmem:[%s2444 + $0x38] sm:$0xf]
      %v2460 = vld [vmem:[%s2444 + $0x3c] sm:$0xf]
      %v2462 = vunpack.c.l.b16 %v2443
      %v2463 = vpack.c.b16 %v1713, %v2462
      %v2464 = vrot.slane %v2463, 3
      %v2465 = vrot.slane %v1877, 3
      %v2466 = vsel %vm862, %v2464, %v2465
      %v2467 = vrot.slane %v2309, 3
      %v2468 = vsel %vm862, %v2465, %v2467
      %v2488 = vunpack.c.l.b16 %v2445
      %v2489 = vunpack.c.l.b16 %v2446
      %v2490 = vunpack.c.l.b16 %v2447
      %v2491 = vunpack.c.l.b16 %v2448
      %v2492 = vunpack.c.l.b16 %v2449
      %v2493 = vunpack.c.l.b16 %v2450
      %v2494 = vunpack.c.l.b16 %v2451
      %v2495 = vunpack.c.l.b16 %v2452
      %v2496 = vunpack.c.l.b16 %v2453
      %v2497 = vunpack.c.l.b16 %v2454
      %v2498 = vunpack.c.l.b16 %v2455
      %v2499 = vunpack.c.l.b16 %v2456
      %v2500 = vunpack.c.l.b16 %v2457
      %v2501 = vunpack.c.l.b16 %v2458
      %v2502 = vunpack.c.l.b16 %v2459
      %v2503 = vunpack.c.l.b16 %v2460
      %v2504 = vpack.c.b16 %v2489, %v2488
      %v2505 = vpack.c.b16 %v2491, %v2490
      %v2506 = vpack.c.b16 %v2493, %v2492
      %v2507 = vpack.c.b16 %v2495, %v2494
      %v2508 = vpack.c.b16 %v2497, %v2496
      %v2509 = vpack.c.b16 %v2499, %v2498
      %v2510 = vpack.c.b16 %v2501, %v2500
      %v2511 = vpack.c.b16 %v2503, %v2502
      %2520 = vmatprep.subr.bf16.mxu0 0
      %2521 = vmatpush1.bf16.msra.mxu0 %v2511
      %2522 = vmatprep.subr.bf16.mxu0 0
      %2523 = vmatpush1.bf16.msra.mxu0 %v2510
      %2524 = vmatprep.subr.bf16.mxu0 0
      %2525 = vmatpush1.bf16.msra.mxu0 %v2509
      %2526 = vmatprep.subr.bf16.mxu0 0
      %2527 = vmatpush1.bf16.msra.mxu0 %v2508
      %2528 = vmatprep.subr.bf16.mxu0 0
      %2529 = vmatpush1.bf16.msra.mxu0 %v2507
      %2530 = vmatprep.subr.bf16.mxu0 0
      %2531 = vmatpush1.bf16.msra.mxu0 %v2506
      %2532 = vmatprep.subr.bf16.mxu0 0
      %2533 = vmatpush1.bf16.msra.mxu0 %v2505
      %2534 = vmatprep.subr.bf16.mxu0 0
      %2535 = vmatpush1.bf16.msra.mxu0 %v2504
      %2536 = vmatprep.subr.bf16.mxu0 0
      %2537 = vmatpush2.bf16.msra.mxu0 0
      %2538 = vmatprep.subr.bf16.mxu0 0
      %2539 = vmatpush2.bf16.msra.mxu0 0
      %2540 = vmatprep.subr.bf16.mxu0 0
      %2541 = vmatpush2.bf16.msra.mxu0 0
      %2542 = vmatprep.subr.bf16.mxu0 0
      %2543 = vmatpush2.bf16.msra.mxu0 0
      %2544 = vmatprep.subr.bf16.mxu0 0
      %2545 = vmatpush2.bf16.msra.mxu0 0
      %2546 = vmatprep.subr.bf16.mxu0 0
      %2547 = vmatpush2.bf16.msra.mxu0 0
      %2548 = vmatprep.subr.bf16.mxu0 0
      %2549 = vmatpush2.bf16.msra.mxu0 0
      %2550 = vmatprep.subr.bf16.mxu0 0
      %2551 = vmatpush2.bf16.msra.mxu0 0
      %2552 = vmatprep.mubr.bf16.mxu0 0
      %2553 = vmatmul.mubr.bf16.gmra.mxu0 %v2466
      %v2554 = vpop.f32.mrf.mxu0
      %v2555 = vadd.f32 0.0, %v2554
      %v2556 = vpop.f32.mrf.mxu0
      %v2557 = vpop.f32.mrf.mxu0
      %v2558 = vadd.f32 0.0, %v2557
      %v2559 = vpop.f32.mrf.mxu0
      %2560 = vmatprep.mubr.bf16.mxu0 0
      %2561 = vmatmul.mubr.bf16.gmra.mxu0 %v2468
      %v2562 = vpop.f32.mrf.mxu0
      %v2563 = vadd.f32 0.0, %v2562
      %v2564 = vpop.f32.mrf.mxu0
      %v2565 = vpop.f32.mrf.mxu0
      %v2566 = vadd.f32 0.0, %v2565
      %v2567 = vpop.f32.mrf.mxu0
      %2568 = vmatprep.mubr.bf16.mxu0 0
      %2569 = vmatmul.mubr.bf16.gmra.mxu0 %v2467
      %v2570 = vpop.f32.mrf.mxu0
      %v2571 = vadd.f32 0.0, %v2570
      %v2572 = vpop.f32.mrf.mxu0
      %v2573 = vpop.f32.mrf.mxu0
      %v2574 = vpop.f32.mrf.mxu0
      %2575 = vdwg.mxu0
      %v2576 = vadd.f32 %v2438, %v2555
      %v2577 = vadd.f32 %v2439, %v2558
      %v2578 = vadd.f32 %v2440, %v2563
      %v2579 = vadd.f32 %v2441, %v2566
      %v2580 = vadd.f32 %v2442, %v2571
      %v2581 = vld [vmem:[#allocation2 + $0x8] sm:$0xf]
      %v2582 = vld [vmem:[#allocation2 + $0xc] sm:$0xf]
      %v2583 = vld [vmem:[#allocation2 + $0x10] sm:$0xf]
      %v2584 = vld [vmem:[#allocation2 + $0x14] sm:$0xf]
      %v2585 = vld [vmem:[#allocation2 + $0x18] sm:$0x3]
      %s2586 = scalar_lea.vmem %s4, 576
      %v2587 = vld [vmem:[%s2586] sm:$0xf]
      %v2588 = vld [vmem:[%s2586 + $0x4] sm:$0xf]
      %v2589 = vld [vmem:[%s2586 + $0x8] sm:$0xf]
      %v2590 = vld [vmem:[%s2586 + $0xc] sm:$0xf]
      %v2591 = vld [vmem:[%s2586 + $0x10] sm:$0xf]
      %v2592 = vld [vmem:[%s2586 + $0x14] sm:$0xf]
      %v2593 = vld [vmem:[%s2586 + $0x18] sm:$0xf]
      %v2594 = vld [vmem:[%s2586 + $0x1c] sm:$0xf]
      %v2595 = vld [vmem:[%s2586 + $0x20] sm:$0xf]
      %v2596 = vld [vmem:[%s2586 + $0x24] sm:$0xf]
      %v2597 = vld [vmem:[%s2586 + $0x28] sm:$0xf]
      %v2598 = vld [vmem:[%s2586 + $0x2c] sm:$0xf]
      %v2599 = vld [vmem:[%s2586 + $0x30] sm:$0xf]
      %v2600 = vld [vmem:[%s2586 + $0x34] sm:$0xf]
      %v2601 = vld [vmem:[%s2586 + $0x38] sm:$0xf]
      %v2602 = vld [vmem:[%s2586 + $0x3c] sm:$0xf]
      %v2608 = vunpack.c.l.b16 %v2581
      %v2609 = vunpack.c.l.b16 %v2582
      %v2610 = vunpack.c.l.b16 %v2583
      %v2611 = vunpack.c.l.b16 %v2584
      %v2612 = vunpack.c.l.b16 %v2585
      %v2613 = vpack.c.b16 %v2609, %v2608
      %v2614 = vpack.c.b16 %v2611, %v2610
      %v2615 = vpack.c.b16 %v2612, %v2612
      %v2617 = vshrl.u32 %v2613, 16
      %v2619 = vshll.u32 %v2613, 16
      %v2621 = vrot.slane %v2619, 1
      %v2622 = vor.u32 %v2617, %v2621
      %v2624 = vshll.u32 %v2614, 16
      %v2626 = vrot.slane %v2624, 1
      %v2627 = vsel %vm422, %v2622, %v2626
      %v2628 = vshrl.u32 %v2614, 16
      %v2630 = vor.u32 %v2628, %v2626
      %v2632 = vshll.u32 %v2615, 16
      %v2634 = vrot.slane %v2632, 1
      %v2635 = vsel %vm422, %v2630, %v2634
      %v2636 = vshrl.u32 %v2615, 16
      %v2638 = vor.u32 %v2636, %v2634
      %v2658 = vunpack.c.l.b16 %v2587
      %v2659 = vunpack.c.l.b16 %v2588
      %v2660 = vunpack.c.l.b16 %v2589
      %v2661 = vunpack.c.l.b16 %v2590
      %v2662 = vunpack.c.l.b16 %v2591
      %v2663 = vunpack.c.l.b16 %v2592
      %v2664 = vunpack.c.l.b16 %v2593
      %v2665 = vunpack.c.l.b16 %v2594
      %v2666 = vunpack.c.l.b16 %v2595
      %v2667 = vunpack.c.l.b16 %v2596
      %v2668 = vunpack.c.l.b16 %v2597
      %v2669 = vunpack.c.l.b16 %v2598
      %v2670 = vunpack.c.l.b16 %v2599
      %v2671 = vunpack.c.l.b16 %v2600
      %v2672 = vunpack.c.l.b16 %v2601
      %v2673 = vunpack.c.l.b16 %v2602
      %v2674 = vpack.c.b16 %v2659, %v2658
      %v2675 = vpack.c.b16 %v2661, %v2660
      %v2676 = vpack.c.b16 %v2663, %v2662
      %v2677 = vpack.c.b16 %v2665, %v2664
      %v2678 = vpack.c.b16 %v2667, %v2666
      %v2679 = vpack.c.b16 %v2669, %v2668
      %v2680 = vpack.c.b16 %v2671, %v2670
      %v2681 = vpack.c.b16 %v2673, %v2672
      %2690 = vmatprep.subr.bf16.mxu0 0
      %2691 = vmatpush1.bf16.msra.mxu0 %v2681
      %2692 = vmatprep.subr.bf16.mxu0 0
      %2693 = vmatpush1.bf16.msra.mxu0 %v2680
      %2694 = vmatprep.subr.bf16.mxu0 0
      %2695 = vmatpush1.bf16.msra.mxu0 %v2679
      %2696 = vmatprep.subr.bf16.mxu0 0
      %2697 = vmatpush1.bf16.msra.mxu0 %v2678
      %2698 = vmatprep.subr.bf16.mxu0 0
      %2699 = vmatpush1.bf16.msra.mxu0 %v2677
      %2700 = vmatprep.subr.bf16.mxu0 0
      %2701 = vmatpush1.bf16.msra.mxu0 %v2676
      %2702 = vmatprep.subr.bf16.mxu0 0
      %2703 = vmatpush1.bf16.msra.mxu0 %v2675
      %2704 = vmatprep.subr.bf16.mxu0 0
      %2705 = vmatpush1.bf16.msra.mxu0 %v2674
      %2706 = vmatprep.subr.bf16.mxu0 0
      %2707 = vmatpush2.bf16.msra.mxu0 0
      %2708 = vmatprep.subr.bf16.mxu0 0
      %2709 = vmatpush2.bf16.msra.mxu0 0
      %2710 = vmatprep.subr.bf16.mxu0 0
      %2711 = vmatpush2.bf16.msra.mxu0 0
      %2712 = vmatprep.subr.bf16.mxu0 0
      %2713 = vmatpush2.bf16.msra.mxu0 0
      %2714 = vmatprep.subr.bf16.mxu0 0
      %2715 = vmatpush2.bf16.msra.mxu0 0
      %2716 = vmatprep.subr.bf16.mxu0 0
      %2717 = vmatpush2.bf16.msra.mxu0 0
      %2718 = vmatprep.subr.bf16.mxu0 0
      %2719 = vmatpush2.bf16.msra.mxu0 0
      %2720 = vmatprep.subr.bf16.mxu0 0
      %2721 = vmatpush2.bf16.msra.mxu0 0
      %2722 = vmatprep.mubr.bf16.mxu0 0
      %2723 = vmatmul.mubr.bf16.gmra.mxu0 %v2627
      %v2724 = vpop.f32.mrf.mxu0
      %v2725 = vadd.f32 0.0, %v2724
      %v2726 = vpop.f32.mrf.mxu0
      %v2727 = vpop.f32.mrf.mxu0
      %v2728 = vadd.f32 0.0, %v2727
      %v2729 = vpop.f32.mrf.mxu0
      %2730 = vmatprep.mubr.bf16.mxu0 0
      %2731 = vmatmul.mubr.bf16.gmra.mxu0 %v2635
      %v2732 = vpop.f32.mrf.mxu0
      %v2733 = vadd.f32 0.0, %v2732
      %v2734 = vpop.f32.mrf.mxu0
      %v2735 = vpop.f32.mrf.mxu0
      %v2736 = vadd.f32 0.0, %v2735
      %v2737 = vpop.f32.mrf.mxu0
      %2738 = vmatprep.mubr.bf16.mxu0 0
      %2739 = vmatmul.mubr.bf16.gmra.mxu0 %v2638
      %v2740 = vpop.f32.mrf.mxu0
      %v2741 = vadd.f32 0.0, %v2740
      %v2742 = vpop.f32.mrf.mxu0
      %v2743 = vpop.f32.mrf.mxu0
      %v2744 = vpop.f32.mrf.mxu0
      %2745 = vdwg.mxu0
      %v2746 = vadd.f32 %v2576, %v2725
      %v2747 = vadd.f32 %v2577, %v2728
      %v2748 = vadd.f32 %v2578, %v2733
      %v2749 = vadd.f32 %v2579, %v2736
      %v2750 = vadd.f32 %v2580, %v2741
      %v2751 = vld [vmem:[#allocation2 + $0x8] sm:$0xe]
      %s2752 = scalar_lea.vmem %s4, 640
      %v2753 = vld [vmem:[%s2752] sm:$0xf]
      %v2754 = vld [vmem:[%s2752 + $0x4] sm:$0xf]
      %v2755 = vld [vmem:[%s2752 + $0x8] sm:$0xf]
      %v2756 = vld [vmem:[%s2752 + $0xc] sm:$0xf]
      %v2757 = vld [vmem:[%s2752 + $0x10] sm:$0xf]
      %v2758 = vld [vmem:[%s2752 + $0x14] sm:$0xf]
      %v2759 = vld [vmem:[%s2752 + $0x18] sm:$0xf]
      %v2760 = vld [vmem:[%s2752 + $0x1c] sm:$0xf]
      %v2761 = vld [vmem:[%s2752 + $0x20] sm:$0xf]
      %v2762 = vld [vmem:[%s2752 + $0x24] sm:$0xf]
      %v2763 = vld [vmem:[%s2752 + $0x28] sm:$0xf]
      %v2764 = vld [vmem:[%s2752 + $0x2c] sm:$0xf]
      %v2765 = vld [vmem:[%s2752 + $0x30] sm:$0xf]
      %v2766 = vld [vmem:[%s2752 + $0x34] sm:$0xf]
      %v2767 = vld [vmem:[%s2752 + $0x38] sm:$0xf]
      %v2768 = vld [vmem:[%s2752 + $0x3c] sm:$0xf]
      %v2770 = vunpack.c.l.b16 %v2751
      %v2771 = vpack.c.b16 %v2609, %v2770
      %v2772 = vrot.slane %v2771, 1
      %v2773 = vrot.slane %v2614, 1
      %v2774 = vsel %vm1265, %v2772, %v2773
      %v2775 = vrot.slane %v2615, 1
      %v2776 = vsel %vm1265, %v2773, %v2775
      %v2796 = vunpack.c.l.b16 %v2753
      %v2797 = vunpack.c.l.b16 %v2754
      %v2798 = vunpack.c.l.b16 %v2755
      %v2799 = vunpack.c.l.b16 %v2756
      %v2800 = vunpack.c.l.b16 %v2757
      %v2801 = vunpack.c.l.b16 %v2758
      %v2802 = vunpack.c.l.b16 %v2759
      %v2803 = vunpack.c.l.b16 %v2760
      %v2804 = vunpack.c.l.b16 %v2761
      %v2805 = vunpack.c.l.b16 %v2762
      %v2806 = vunpack.c.l.b16 %v2763
      %v2807 = vunpack.c.l.b16 %v2764
      %v2808 = vunpack.c.l.b16 %v2765
      %v2809 = vunpack.c.l.b16 %v2766
      %v2810 = vunpack.c.l.b16 %v2767
      %v2811 = vunpack.c.l.b16 %v2768
      %v2812 = vpack.c.b16 %v2797, %v2796
      %v2813 = vpack.c.b16 %v2799, %v2798
      %v2814 = vpack.c.b16 %v2801, %v2800
      %v2815 = vpack.c.b16 %v2803, %v2802
      %v2816 = vpack.c.b16 %v2805, %v2804
      %v2817 = vpack.c.b16 %v2807, %v2806
      %v2818 = vpack.c.b16 %v2809, %v2808
      %v2819 = vpack.c.b16 %v2811, %v2810
      %2828 = vmatprep.subr.bf16.mxu0 0
      %2829 = vmatpush1.bf16.msra.mxu0 %v2819
      %2830 = vmatprep.subr.bf16.mxu0 0
      %2831 = vmatpush1.bf16.msra.mxu0 %v2818
      %2832 = vmatprep.subr.bf16.mxu0 0
      %2833 = vmatpush1.bf16.msra.mxu0 %v2817
      %2834 = vmatprep.subr.bf16.mxu0 0
      %2835 = vmatpush1.bf16.msra.mxu0 %v2816
      %2836 = vmatprep.subr.bf16.mxu0 0
      %2837 = vmatpush1.bf16.msra.mxu0 %v2815
      %2838 = vmatprep.subr.bf16.mxu0 0
      %2839 = vmatpush1.bf16.msra.mxu0 %v2814
      %2840 = vmatprep.subr.bf16.mxu0 0
      %2841 = vmatpush1.bf16.msra.mxu0 %v2813
      %2842 = vmatprep.subr.bf16.mxu0 0
      %2843 = vmatpush1.bf16.msra.mxu0 %v2812
      %2844 = vmatprep.subr.bf16.mxu0 0
      %2845 = vmatpush2.bf16.msra.mxu0 0
      %2846 = vmatprep.subr.bf16.mxu0 0
      %2847 = vmatpush2.bf16.msra.mxu0 0
      %2848 = vmatprep.subr.bf16.mxu0 0
      %2849 = vmatpush2.bf16.msra.mxu0 0
      %2850 = vmatprep.subr.bf16.mxu0 0
      %2851 = vmatpush2.bf16.msra.mxu0 0
      %2852 = vmatprep.subr.bf16.mxu0 0
      %2853 = vmatpush2.bf16.msra.mxu0 0
      %2854 = vmatprep.subr.bf16.mxu0 0
      %2855 = vmatpush2.bf16.msra.mxu0 0
      %2856 = vmatprep.subr.bf16.mxu0 0
      %2857 = vmatpush2.bf16.msra.mxu0 0
      %2858 = vmatprep.subr.bf16.mxu0 0
      %2859 = vmatpush2.bf16.msra.mxu0 0
      %2860 = vmatprep.mubr.bf16.mxu0 0
      %2861 = vmatmul.mubr.bf16.gmra.mxu0 %v2774
      %v2862 = vpop.f32.mrf.mxu0
      %v2863 = vadd.f32 0.0, %v2862
      %v2864 = vpop.f32.mrf.mxu0
      %v2865 = vpop.f32.mrf.mxu0
      %v2866 = vadd.f32 0.0, %v2865
      %v2867 = vpop.f32.mrf.mxu0
      %2868 = vmatprep.mubr.bf16.mxu0 0
      %2869 = vmatmul.mubr.bf16.gmra.mxu0 %v2776
      %v2870 = vpop.f32.mrf.mxu0
      %v2871 = vadd.f32 0.0, %v2870
      %v2872 = vpop.f32.mrf.mxu0
      %v2873 = vpop.f32.mrf.mxu0
      %v2874 = vadd.f32 0.0, %v2873
      %v2875 = vpop.f32.mrf.mxu0
      %2876 = vmatprep.mubr.bf16.mxu0 0
      %2877 = vmatmul.mubr.bf16.gmra.mxu0 %v2775
      %v2878 = vpop.f32.mrf.mxu0
      %v2879 = vadd.f32 0.0, %v2878
      %v2880 = vpop.f32.mrf.mxu0
      %v2881 = vpop.f32.mrf.mxu0
      %v2882 = vpop.f32.mrf.mxu0
      %2883 = vdwg.mxu0
      %v2884 = vadd.f32 %v2746, %v2863
      %v2885 = vadd.f32 %v2747, %v2866
      %v2886 = vadd.f32 %v2748, %v2871
      %v2887 = vadd.f32 %v2749, %v2874
      %v2888 = vadd.f32 %v2750, %v2879
      %v2889 = vld [vmem:[#allocation2 + $0x18] sm:$0x7]
      %s2890 = scalar_lea.vmem %s4, 704
      %v2891 = vld [vmem:[%s2890] sm:$0xf]
      %v2892 = vld [vmem:[%s2890 + $0x4] sm:$0xf]
      %v2893 = vld [vmem:[%s2890 + $0x8] sm:$0xf]
      %v2894 = vld [vmem:[%s2890 + $0xc] sm:$0xf]
      %v2895 = vld [vmem:[%s2890 + $0x10] sm:$0xf]
      %v2896 = vld [vmem:[%s2890 + $0x14] sm:$0xf]
      %v2897 = vld [vmem:[%s2890 + $0x18] sm:$0xf]
      %v2898 = vld [vmem:[%s2890 + $0x1c] sm:$0xf]
      %v2899 = vld [vmem:[%s2890 + $0x20] sm:$0xf]
      %v2900 = vld [vmem:[%s2890 + $0x24] sm:$0xf]
      %v2901 = vld [vmem:[%s2890 + $0x28] sm:$0xf]
      %v2902 = vld [vmem:[%s2890 + $0x2c] sm:$0xf]
      %v2903 = vld [vmem:[%s2890 + $0x30] sm:$0xf]
      %v2904 = vld [vmem:[%s2890 + $0x34] sm:$0xf]
      %v2905 = vld [vmem:[%s2890 + $0x38] sm:$0xf]
      %v2906 = vld [vmem:[%s2890 + $0x3c] sm:$0xf]
      %v2908 = vunpack.c.l.b16 %v2889
      %v2909 = vpack.c.b16 %v2908, %v2908
      %v2911 = vshrl.u32 %v2771, 16
      %v2913 = vrot.slane %v2911, 1
      %v2914 = vshll.u32 %v2771, 16
      %v2916 = vrot.slane %v2914, 2
      %v2917 = vor.u32 %v2913, %v2916
      %v2918 = vrot.slane %v2628, 1
      %v2919 = vrot.slane %v2624, 2
      %v2920 = vor.u32 %v2918, %v2919
      %v2921 = vsel %vm1404, %v2917, %v2920
      %v2923 = vshrl.u32 %v2909, 16
      %v2925 = vrot.slane %v2923, 1
      %v2926 = vshll.u32 %v2909, 16
      %v2928 = vrot.slane %v2926, 2
      %v2929 = vor.u32 %v2925, %v2928
      %v2930 = vsel %vm1404, %v2920, %v2929
      %v2950 = vunpack.c.l.b16 %v2891
      %v2951 = vunpack.c.l.b16 %v2892
      %v2952 = vunpack.c.l.b16 %v2893
      %v2953 = vunpack.c.l.b16 %v2894
      %v2954 = vunpack.c.l.b16 %v2895
      %v2955 = vunpack.c.l.b16 %v2896
      %v2956 = vunpack.c.l.b16 %v2897
      %v2957 = vunpack.c.l.b16 %v2898
      %v2958 = vunpack.c.l.b16 %v2899
      %v2959 = vunpack.c.l.b16 %v2900
      %v2960 = vunpack.c.l.b16 %v2901
      %v2961 = vunpack.c.l.b16 %v2902
      %v2962 = vunpack.c.l.b16 %v2903
      %v2963 = vunpack.c.l.b16 %v2904
      %v2964 = vunpack.c.l.b16 %v2905
      %v2965 = vunpack.c.l.b16 %v2906
      %v2966 = vpack.c.b16 %v2951, %v2950
      %v2967 = vpack.c.b16 %v2953, %v2952
      %v2968 = vpack.c.b16 %v2955, %v2954
      %v2969 = vpack.c.b16 %v2957, %v2956
      %v2970 = vpack.c.b16 %v2959, %v2958
      %v2971 = vpack.c.b16 %v2961, %v2960
      %v2972 = vpack.c.b16 %v2963, %v2962
      %v2973 = vpack.c.b16 %v2965, %v2964
      %2982 = vmatprep.subr.bf16.mxu0 0
      %2983 = vmatpush1.bf16.msra.mxu0 %v2973
      %2984 = vmatprep.subr.bf16.mxu0 0
      %2985 = vmatpush1.bf16.msra.mxu0 %v2972
      %2986 = vmatprep.subr.bf16.mxu0 0
      %2987 = vmatpush1.bf16.msra.mxu0 %v2971
      %2988 = vmatprep.subr.bf16.mxu0 0
      %2989 = vmatpush1.bf16.msra.mxu0 %v2970
      %2990 = vmatprep.subr.bf16.mxu0 0
      %2991 = vmatpush1.bf16.msra.mxu0 %v2969
      %2992 = vmatprep.subr.bf16.mxu0 0
      %2993 = vmatpush1.bf16.msra.mxu0 %v2968
      %2994 = vmatprep.subr.bf16.mxu0 0
      %2995 = vmatpush1.bf16.msra.mxu0 %v2967
      %2996 = vmatprep.subr.bf16.mxu0 0
      %2997 = vmatpush1.bf16.msra.mxu0 %v2966
      %2998 = vmatprep.subr.bf16.mxu0 0
      %2999 = vmatpush2.bf16.msra.mxu0 0
      %3000 = vmatprep.subr.bf16.mxu0 0
      %3001 = vmatpush2.bf16.msra.mxu0 0
      %3002 = vmatprep.subr.bf16.mxu0 0
      %3003 = vmatpush2.bf16.msra.mxu0 0
      %3004 = vmatprep.subr.bf16.mxu0 0
      %3005 = vmatpush2.bf16.msra.mxu0 0
      %3006 = vmatprep.subr.bf16.mxu0 0
      %3007 = vmatpush2.bf16.msra.mxu0 0
      %3008 = vmatprep.subr.bf16.mxu0 0
      %3009 = vmatpush2.bf16.msra.mxu0 0
      %3010 = vmatprep.subr.bf16.mxu0 0
      %3011 = vmatpush2.bf16.msra.mxu0 0
      %3012 = vmatprep.subr.bf16.mxu0 0
      %3013 = vmatpush2.bf16.msra.mxu0 0
      %3014 = vmatprep.mubr.bf16.mxu0 0
      %3015 = vmatmul.mubr.bf16.gmra.mxu0 %v2921
      %v3016 = vpop.f32.mrf.mxu0
      %v3017 = vadd.f32 0.0, %v3016
      %v3018 = vpop.f32.mrf.mxu0
      %v3019 = vpop.f32.mrf.mxu0
      %v3020 = vadd.f32 0.0, %v3019
      %v3021 = vpop.f32.mrf.mxu0
      %3022 = vmatprep.mubr.bf16.mxu0 0
      %3023 = vmatmul.mubr.bf16.gmra.mxu0 %v2930
      %v3024 = vpop.f32.mrf.mxu0
      %v3025 = vadd.f32 0.0, %v3024
      %v3026 = vpop.f32.mrf.mxu0
      %v3027 = vpop.f32.mrf.mxu0
      %v3028 = vadd.f32 0.0, %v3027
      %v3029 = vpop.f32.mrf.mxu0
      %3030 = vmatprep.mubr.bf16.mxu0 0
      %3031 = vmatmul.mubr.bf16.gmra.mxu0 %v2929
      %v3032 = vpop.f32.mrf.mxu0
      %v3033 = vadd.f32 0.0, %v3032
      %v3034 = vpop.f32.mrf.mxu0
      %v3035 = vpop.f32.mrf.mxu0
      %v3036 = vpop.f32.mrf.mxu0
      %3037 = vdwg.mxu0
      %v3038 = vadd.f32 %v2884, %v3017
      %v3039 = vadd.f32 %v2885, %v3020
      %v3040 = vadd.f32 %v2886, %v3025
      %v3041 = vadd.f32 %v2887, %v3028
      %v3042 = vadd.f32 %v2888, %v3033
      %vm3043 = vcmp.gt.f32.partialorder %v3038, 0.0
      %vm3044 = vcmp.gt.f32.partialorder %v3039, 0.0
      %vm3045 = vcmp.gt.f32.partialorder %v3040, 0.0
      %vm3046 = vcmp.gt.f32.partialorder %v3041, 0.0
      %vm3047 = vcmp.gt.f32.partialorder %v3042, 0.0
      %v3048 = vmul.f32 %v3038, 0.2
      %v3049 = vmul.f32 %v3039, 0.2
      %v3050 = vmul.f32 %v3040, 0.2
      %v3051 = vmul.f32 %v3041, 0.2
      %v3052 = vmul.f32 %v3042, 0.2
      %v3053 = vsel %vm3043, %v3038, %v3048
      %v3054 = vsel %vm3044, %v3039, %v3049
      %v3055 = vsel %vm3045, %v3040, %v3050
      %v3056 = vsel %vm3046, %v3041, %v3051
      %v3057 = vsel %vm3047, %v3042, %v3052
      %v3058 = vld [vmem:[%s6] sm:$0xff]
      %v3059 = vld [vmem:[%s6 + $0x8] sm:$0xff]
      %v3060 = vld [vmem:[%s6 + $0x10] sm:$0xff]
      %v3061 = vld [vmem:[%s6 + $0x18] sm:$0xff]
      %v3062 = vld [vmem:[%s6 + $0x20] sm:$0x3]
      %v3063 = vmul.f32 %v3053, %v3058
      %v3064 = vmul.f32 %v3054, %v3059
      %v3065 = vmul.f32 %v3055, %v3060
      %v3066 = vmul.f32 %v3056, %v3061
      %v3067 = vmul.f32 %v3057, %v3062
      %3068 = vadd.xlane.f32.xlu0 %v3063
      %v3069 = vpop.xlane.xlu0 %3068
      %3070 = vadd.xlane.f32.xlu0 %v3064
      %v3071 = vpop.xlane.xlu0 %3070
      %3072 = vadd.xlane.f32.xlu0 %v3065
      %v3073 = vpop.xlane.xlu0 %3072
      %3074 = vadd.xlane.f32.xlu0 %v3066
      %v3075 = vpop.xlane.xlu0 %3074
      %vm3076 = vcmask 1041408
      %v3077 = vsel %vm3076, %v3067, 0.0
      %3078 = vadd.xlane.f32.xlu0 %v3077
      %v3079 = vpop.xlane.xlu0 %3078
      %v3080 = vadd.f32 %v3069, %v3071
      %v3081 = vadd.f32 %v3080, %v3073
      %v3082 = vadd.f32 %v3081, %v3075
      %v3083 = vsel %vm3076, %v3079, 0.0
      %v3084 = vadd.f32 %v3082, %v3083
      %v3085 = vrot.slane %v3084, 4
      %v3086 = vadd.f32 %v3084, %v3085
      %v3087 = vrot.slane %v3086, 2
      %v3088 = vadd.f32 %v3086, %v3087
      %v3089 = vrot.slane %v3088, 1
      %v3090 = vadd.f32 %v3088, %v3089
      %v3091 = vld [vmem:[#allocation3] sm:$0x1]
      %v3092 = vadd.f32 %v3090, %v3091
      %v3093 = vxor.u32 %v3092, 2147483648
      %v3094 = vmul.f32 %v3093, 1.442695
      %v3095 = vpow.pop %v3094
      %v3096 = vadd.f32 %v3095, 1.0
      %v3097 = vrcp.pop %v3096
      %v3098 = vmul.f32 1.0, %v3097
      %3100 = vset.pattern.permute.xlu0 0
      %3101 = vperm.xlu0 %3100, %v3098
      %v3102 = vpop.permute.xlu0 %3101
      %v3104 = vlaneseq
      %v3105 = vshrl.u32 %v3104, 7
      %v3106 = vsub.s32 0, %v3105
      %v3107 = vrot.slane %v3102, %v3106
      %3108 = vst [vmem:[%s303] sm:$0x1] %v3107
      %p3109 = scmp.lt.s32.totalorder %s21, 1
      %s3110 = scalar_select %p3109, %s21, 1
      %s3111 = scalar_lea.vmem %s8, %s3110
      // Predicated region
      $region53: #{discriminator_forward.1} parent=51 // pred_check
        %p3112 = pneg %p212
      $region54: #{discriminator_forward.1} parent=51 // pred_check_branch
        %3114 = sbr.rel (%p3112) target = $region56
      $region55: #{discriminator_forward.1} parent=51 // pred_region
        _
      $region56: #{discriminator_forward.1} parent=51 // pred_fallthru
        _
    $region52: #{discriminator_forward.1} parent=5 // pred_fallthru
      _
    %p3115 = scmp.le.s32.totalorder 2, %s16
    // Predicated region
    $region57: #{discriminator_forward.1} parent=5 // pred_check
      %p3116 = pneg %p3115
    $region58: #{discriminator_forward.1} parent=5 // pred_check_branch
      %3118 = sbr.rel (%p3116) target = $region60
    $region59: #{discriminator_forward.1} parent=5 // pred_region
      %s3119 = ssub.s32 %s16, 2
      // Predicated region
      $region61: #{discriminator_forward.1} parent=59 // pred_check
        %p3120 = pneg %p218
      $region62: #{discriminator_forward.1} parent=59 // pred_check_branch
        %3122 = sbr.rel (%p3120) target = $region64
      $region63: #{discriminator_forward.1} parent=59 // pred_region
        %p3123 = scmp.lt.s32.totalorder %s22, 1
        %s3124 = scalar_select %p3123, %s22, 1
        %s3125 = scalar_lea.vmem %s8, %s3124
      $region64: #{discriminator_forward.1} parent=59 // pred_fallthru
        _
    $region60: #{discriminator_forward.1} parent=5 // pred_fallthru
      _
  $region6: #{discriminator_forward.1} parent=0 // loop_footer
    %s20 = sadd.s32 1, %s16
  $region7: #{discriminator_forward.1} parent=0 // loop_footer_branch
    %15 = sbr.rel target = $region3
  $region8: #{discriminator_forward.1} parent=0 // loop_exit
    _

</llo_original>
